<compile_context>
chip_gen: v5e
topology: v5e:2x2
jax: 0.10.0
libtpu: 0.0.40
codegen_flags: <defaults>
</compile_context>

<pallas_src>
import functools

import jax
import jax.numpy as jnp
import numpy as np
from jax import lax
from jax.experimental import pallas as pl
from jax.experimental.pallas import tpu as pltpu

EXPANSION = 4
BN_EPS = 1e-5


# ----------------------------- helpers ---------------------------------------
def _stats(y):
    """Per-channel (sum, sum of squares) over rows of a channels-last tile."""
    return jnp.concatenate(
        [jnp.sum(y, axis=0, keepdims=True),
         jnp.sum(y * y, axis=0, keepdims=True)], axis=0)          # (2, C)


def _fold_bn(partials, gamma, beta, count):
    """Reduce per-tile (sum, sumsq) partials into folded BN scale/bias."""
    tot = jnp.sum(partials.astype(jnp.float32), axis=0)          # (2, C)
    mean = tot[0] / count
    var = jnp.maximum(tot[1] / count - mean * mean, 0.0)
    scale = gamma.reshape(-1) * lax.rsqrt(var + BN_EPS)
    bias = beta.reshape(-1) - mean * scale
    return scale.reshape(1, -1), bias.reshape(1, -1)


def _pick_tm(m, cap=4096):
    """Largest multiple-of-16 divisor of m that is <= cap (else whole extent)."""
    best = m
    t = 16
    while t <= min(cap, m):
        if m % t == 0:
            best = t
        t += 16
    return best


def _vmem_limit_bytes():
    """Generation-aware scoped-VMEM limit (128 MiB v5e/v6e, 64 MiB v7x)."""
    cap = 64 * 1024 * 1024
    try:
        info = pltpu.get_tpu_info()
        cap = int(getattr(info, "vmem_capacity_bytes", cap) or cap)
    except Exception:
        pass
    return max(32 * 1024 * 1024, min(100 * 1024 * 1024, (cap * 3) // 4))


# ----------------------------- kernels ----------------------------------------
def _conv1_kernel(x_ref, w_ref, y_ref, st_ref):
    # x block: (1, Cin, HW) f32 (NCHW image) -> channels-last rows via one
    # in-VMEM f32 transpose, then 1x1 conv as a single MXU matmul.
    xt = x_ref[0].T                                              # (HW, Cin) f32
    y = jnp.dot(xt.astype(jnp.bfloat16), w_ref[...],
                preferred_element_type=jnp.float32)              # (HW, P) f32
    y_ref[0] = y.astype(jnp.bfloat16)
    st_ref[0] = _stats(y)


def _conv2_kernel(y1_ref, s_ref, t_ref, w_ref, y_ref, st_ref, *, H, W):
    # bn1 + relu, then 3x3 conv (stride 1, pad 1) as 9 per-tap accumulated
    # matmuls (no im2col buffer), plus per-image BN partial stats.
    P = y1_ref.shape[-1]
    a = jnp.maximum(y1_ref[0].astype(jnp.float32) * s_ref[...] + t_ref[...],
                    0.0)                                         # (HW, P) f32
    a3 = a.reshape(H, W, P)
    zc = jnp.zeros((H, 1, P), jnp.float32)
    ap = jnp.concatenate([zc, a3, zc], axis=1)                   # (H, W+2, P)
    zr = jnp.zeros((1, W + 2, P), jnp.float32)
    ap = jnp.concatenate([zr, ap, zr], axis=0)                   # (H+2, W+2, P)
    acc = jnp.zeros((H * W, P), jnp.float32)
    for k in range(9):
        dh, dw = divmod(k, 3)
        tap = ap[dh:dh + H, dw:dw + W, :].reshape(H * W, P)
        acc = acc + jnp.dot(tap.astype(jnp.bfloat16), w_ref[k],
                            preferred_element_type=jnp.float32)  # (HW, P)
    y_ref[0] = acc.astype(jnp.bfloat16)
    st_ref[0] = _stats(acc)


def _conv3_kernel(y2_ref, s_ref, t_ref, w_ref, y_ref, st_ref):
    # bn2 + relu, then 1x1 conv, plus per-tile BN partial stats.
    a = jnp.maximum(y2_ref[...].astype(jnp.float32) * s_ref[...] + t_ref[...],
                    0.0)                                         # (TM, P)
    y = jnp.dot(a.astype(jnp.bfloat16), w_ref[...],
                preferred_element_type=jnp.float32)              # (TM, Cout)
    y_ref[...] = y.astype(jnp.bfloat16)
    st_ref[0] = _stats(y)


def _bn_add_relu_kernel(y3_ref, x_ref, s_ref, t_ref, o_ref):
    # bn3, residual add, relu; output written directly in NCHW layout
    # (one in-VMEM f32 transpose, lane-dense HW-wide store).
    z = y3_ref[0].astype(jnp.float32) * s_ref[...] + t_ref[...]  # (HW, Cout)
    o_ref[0] = jnp.maximum(z.T + x_ref[0], 0.0)                  # (Cout, HW)


# ----------------------------- wrapper ----------------------------------------
def bottleneck_forward(x_nchw, params):
    """Pallas forward of Bottleneck_Baseline.  x_nchw: (N, Cin, H, W) f32."""
    w1, w2, w3, g1, b1, g2, b2, g3, b3 = params
    N, Cin, H, W = x_nchw.shape
    P = w1.shape[1]
    Cout = w3.shape[1]
    assert Cin == Cout, "residual add requires inplanes == planes * expansion"
    HW = H * W
    M = N * HW
    TM = _pick_tm(M)
    nT = M // TM
    f32, bf16 = jnp.float32, jnp.bfloat16

    # Free (metadata-only) reshape: NCHW image seen as (N, Cin, H*W).
    x3 = x_nchw.reshape(N, Cin, HW)

    # Weights: natural shapes, cast to bf16 once (MXU inputs).
    w1b = w1.astype(bf16)                     # (Cin, P)
    w2b = w2.astype(bf16)                     # (9, P, P)   [tap, cin, cout]
    w3b = w3.astype(bf16)                     # (P, Cout)

    cparams = pltpu.CompilerParams(
        dimension_semantics=("parallel",),
        vmem_limit_bytes=_vmem_limit_bytes())

    # Per-image block specs.
    x_spec = pl.BlockSpec((1, Cin, HW), lambda n: (n, 0, 0))
    y1_spec = pl.BlockSpec((1, HW, P), lambda n: (n, 0, 0))
    y3v_spec = pl.BlockSpec((1, HW, Cout), lambda n: (n, 0, 0))
    o_spec = pl.BlockSpec((1, Cout, HW), lambda n: (n, 0, 0))
    stP_img = pl.BlockSpec((1, 2, P), lambda n: (n, 0, 0))
    vecP = pl.BlockSpec((1, P), lambda n: (0, 0))
    vecC = pl.BlockSpec((1, Cout), lambda n: (0, 0))
    w1_spec = pl.BlockSpec((Cin, P), lambda n: (0, 0))
    w2_spec = pl.BlockSpec((9, P, P), lambda n: (0, 0, 0))
    w3_spec = pl.BlockSpec((P, Cout), lambda n: (0, 0))
    # Row-tiled specs for conv3.
    row_in = pl.BlockSpec((TM, P), lambda i: (i, 0))
    row_out = pl.BlockSpec((TM, Cout), lambda i: (i, 0))
    stC_row = pl.BlockSpec((1, 2, Cout), lambda i: (i, 0, 0))
    vecP_r = pl.BlockSpec((1, P), lambda i: (0, 0))
    w3_spec_r = pl.BlockSpec((P, Cout), lambda i: (0, 0))

    # ---- conv1 (1x1) + bn1 partial stats (per image) -------------------------
    y1, st1 = pl.pallas_call(
        _conv1_kernel,
        grid=(N,),
        in_specs=[x_spec, w1_spec],
        out_specs=(y1_spec, stP_img),
        out_shape=(jax.ShapeDtypeStruct((N, HW, P), bf16),
                   jax.ShapeDtypeStruct((N, 2, P), f32)),
        compiler_params=cparams,
    )(x3, w1b)
    s1, t1 = _fold_bn(st1, g1, b1, M)

    # ---- bn1+relu -> conv2 (3x3, per-tap accumulated matmuls) ---------------
    y2, st2 = pl.pallas_call(
        functools.partial(_conv2_kernel, H=H, W=W),
        grid=(N,),
        in_specs=[y1_spec, vecP, vecP, w2_spec],
        out_specs=(y1_spec, stP_img),
        out_shape=(jax.ShapeDtypeStruct((N, HW, P), bf16),
                   jax.ShapeDtypeStruct((N, 2, P), f32)),
        compiler_params=cparams,
    )(y1, s1, t1, w2b)
    s2, t2 = _fold_bn(st2, g2, b2, M)

    # ---- bn2+relu -> conv3 (1x1, row-tiled) + bn3 partial stats --------------
    y3, st3 = pl.pallas_call(
        _conv3_kernel,
        grid=(nT,),
        in_specs=[row_in, vecP_r, vecP_r, w3_spec_r],
        out_specs=(row_out, stC_row),
        out_shape=(jax.ShapeDtypeStruct((M, Cout), bf16),
                   jax.ShapeDtypeStruct((nT, 2, Cout), f32)),
        compiler_params=cparams,
    )(y2.reshape(M, P), s2, t2, w3b)
    s3, t3 = _fold_bn(st3, g3, b3, M)

    # ---- bn3 + residual + relu, written straight back in NCHW ---------------
    out = pl.pallas_call(
        _bn_add_relu_kernel,
        grid=(N,),
        in_specs=[y3v_spec, x_spec, vecC, vecC],
        out_specs=o_spec,
        out_shape=jax.ShapeDtypeStruct((N, Cout, HW), f32),
        compiler_params=cparams,
    )(y3.reshape(N, HW, Cout), x3, s3, t3)

    return out.reshape(N, Cout, H, W)


# -------------------------- pure-JAX reference --------------------------------
def bottleneck_reference(x, params):
    w1, w2, w3, g1, b1, g2, b2, g3, b3 = params

    def bn(y, g, b):
        mean = y.mean(axis=(0, 2, 3), keepdims=True)
        var = ((y - mean) ** 2).mean(axis=(0, 2, 3), keepdims=True)
        return ((y - mean) / jnp.sqrt(var + BN_EPS)) * g.reshape(1, -1, 1, 1) \
               + b.reshape(1, -1, 1, 1)

    def conv1x1(y, w):                       # w: (Cin, Cout)
        k = w.T[:, :, None, None]            # OIHW
        return lax.conv_general_dilated(y, k, (1, 1), 'VALID',
                                        dimension_numbers=('NCHW', 'OIHW', 'NCHW'))

    def conv3x3(y, w9):                      # w9: (9, Cin, Cout)
        ci, co = w9.shape[1], w9.shape[2]
        k = w9.reshape(3, 3, ci, co).transpose(3, 2, 0, 1)   # OIHW
        return lax.conv_general_dilated(y, k, (1, 1), ((1, 1), (1, 1)),
                                        dimension_numbers=('NCHW', 'OIHW', 'NCHW'))

    residual = x
    out = jnp.maximum(bn(conv1x1(x, w1), g1, b1), 0.0)
    out = jnp.maximum(bn(conv3x3(out, w2), g2, b2), 0.0)
    out = bn(conv1x1(out, w3), g3, b3)
    return jnp.maximum(out + residual, 0.0)


if __name__ == "__main__":
    # small shapes: batch=2, inplanes=32, planes=8 (expansion=4 -> Cout=32), 16x16
    N, inplanes, planes, H, W = 2, 32, 8, 16, 16
    Cout = planes * EXPANSION
    assert Cout == inplanes

    key = jax.random.PRNGKey(0)
    ks = jax.random.split(key, 10)
    w1 = jax.random.normal(ks[0], (inplanes, planes), jnp.float32) / np.sqrt(inplanes)
    w2 = jax.random.normal(ks[1], (9, planes, planes), jnp.float32) / np.sqrt(9 * planes)
    w3 = jax.random.normal(ks[2], (planes, Cout), jnp.float32) / np.sqrt(planes)
    g1 = 1.0 + 0.1 * jax.random.normal(ks[3], (planes,), jnp.float32)
    b1 = 0.1 * jax.random.normal(ks[4], (planes,), jnp.float32)
    g2 = 1.0 + 0.1 * jax.random.normal(ks[5], (planes,), jnp.float32)
    b2 = 0.1 * jax.random.normal(ks[6], (planes,), jnp.float32)
    g3 = 1.0 + 0.1 * jax.random.normal(ks[7], (Cout,), jnp.float32)
    b3 = 0.1 * jax.random.normal(ks[8], (Cout,), jnp.float32)
    params = (w1, w2, w3, g1, b1, g2, b2, g3, b3)

    x = jax.random.normal(ks[9], (N, inplanes, H, W), jnp.float32)

    out = jax.block_until_ready(jax.jit(bottleneck_forward)(x, params))
    ref = jax.block_until_ready(bottleneck_reference(x, params))
    assert out.shape == (N, Cout, H, W)
    # bf16 intermediates + bf16 MXU inputs (f32 accumulation) -> looser tolerance.
    np.testing.assert_allclose(np.asarray(out), np.asarray(ref),
                               rtol=5e-2, atol=5e-2)
    print("KERNEL_OK")
</pallas_src>

<mosaic_0001>
module attributes {stable_mosaic.version = 11 : i64} {
  func.func @_conv1_kernel(%arg0: i32, %arg1: memref<1x32x256xf32, #tpu.memory_space<vmem>>, %arg2: memref<32x8xbf16, #tpu.memory_space<vmem>>, %arg3: memref<1x256x8xbf16, #tpu.memory_space<vmem>>, %arg4: memref<1x2x8xf32, #tpu.memory_space<vmem>>) attributes {dimension_semantics = [#tpu.dimension_semantics<parallel>], iteration_bounds = array<i64: 2>, scalar_prefetch = 0 : i64, scratch_operands = 0 : i64, tpu.core_type = #tpu.core_type<tc>, window_params = [{transform_indices = @transform_0, window_bounds = array<i64: 1, 32, 256>}, {pipeline_mode = #tpu.pipeline_mode<synchronous>, transform_indices = @transform_1, window_bounds = array<i64: 32, 8>}, {transform_indices = @transform_2, window_bounds = array<i64: 1, 256, 8>}, {transform_indices = @transform_3, window_bounds = array<i64: 1, 2, 8>}]} {
    %c0 = arith.constant 0 : index
    %c0_0 = arith.constant 0 : index
    %c0_1 = arith.constant 0 : index
    %0 = vector.load %arg1[%c0, %c0_0, %c0_1] : memref<1x32x256xf32, #tpu.memory_space<vmem>>, vector<1x32x256xf32>
    %1 = vector.shape_cast %0 : vector<1x32x256xf32> to vector<32x256xf32>
    %2 = tpu.transpose %1, [1, 0] : vector<32x256xf32> -> vector<256x32xf32>
    %3 = arith.truncf %2 : vector<256x32xf32> to vector<256x32xbf16>
    %c0_2 = arith.constant 0 : index
    %c0_3 = arith.constant 0 : index
    %4 = vector.load %arg2[%c0_2, %c0_3] : memref<32x8xbf16, #tpu.memory_space<vmem>>, vector<32x8xbf16>
    %cst = arith.constant dense<0.000000e+00> : vector<256x8xf32>
    %5 = tpu.matmul %3, %4, %cst {dimension_numbers = #tpu.dot_dimension_numbers<[1], [0], [0], [1], [0, 0, 1, 1], [], []>} : vector<256x32xbf16>, vector<32x8xbf16>, vector<256x8xf32> -> vector<256x8xf32>
    %6 = arith.truncf %5 : vector<256x8xf32> to vector<256x8xbf16>
    %c0_4 = arith.constant 0 : index
    %c0_5 = arith.constant 0 : index
    %c0_6 = arith.constant 0 : index
    %7 = vector.load %arg3[%c0_4, %c0_5, %c0_6] : memref<1x256x8xbf16, #tpu.memory_space<vmem>>, vector<1x256x8xbf16>
    %8 = vector.shape_cast %7 : vector<1x256x8xbf16> to vector<256x8xbf16>
    %9 = vector.shape_cast %6 : vector<256x8xbf16> to vector<1x256x8xbf16>
    tpu.vector_store %arg3[%c0_4, %c0_5, %c0_6], %9 {strides = array<i32>} : memref<1x256x8xbf16, #tpu.memory_space<vmem>>, vector<1x256x8xbf16>,
    %cst_7 = arith.constant dense<0.000000e+00> : vector<8xf32>
    %10 = vector.multi_reduction <add>, %5, %cst_7 [0] : vector<256x8xf32> to vector<8xf32>
    %11 = vector.shape_cast %10 : vector<8xf32> to vector<1x8xf32>
    %12 = arith.mulf %5, %5 : vector<256x8xf32>
    %cst_8 = arith.constant dense<0.000000e+00> : vector<8xf32>
    %13 = vector.multi_reduction <add>, %12, %cst_8 [0] : vector<256x8xf32> to vector<8xf32>
    %14 = vector.shape_cast %13 : vector<8xf32> to vector<1x8xf32>
    %15 = tpu.concatenate %11, %14 in 0 : vector<1x8xf32>, vector<1x8xf32> -> vector<2x8xf32>
    %c0_9 = arith.constant 0 : index
    %c0_10 = arith.constant 0 : index
    %c0_11 = arith.constant 0 : index
    %16 = vector.load %arg4[%c0_9, %c0_10, %c0_11] : memref<1x2x8xf32, #tpu.memory_space<vmem>>, vector<1x2x8xf32>
    %17 = vector.shape_cast %16 : vector<1x2x8xf32> to vector<2x8xf32>
    %18 = vector.shape_cast %15 : vector<2x8xf32> to vector<1x2x8xf32>
    tpu.vector_store %arg4[%c0_9, %c0_10, %c0_11], %18 {strides = array<i32>} : memref<1x2x8xf32, #tpu.memory_space<vmem>>, vector<1x2x8xf32>,
    return
  }
  func.func @transform_0(%arg0: i32) -> (i32, i32, i32) {
    %c0_i32 = arith.constant 0 : i32
    %c0_i32_0 = arith.constant 0 : i32
    %c0_i32_1 = arith.constant 0 : i32
    return %arg0, %c0_i32, %c0_i32_0 : i32, i32, i32
  }
  func.func @transform_1(%arg0: i32) -> (i32, i32) {
    %c0_i32 = arith.constant 0 : i32
    %c0_i32_0 = arith.constant 0 : i32
    %c0_i32_1 = arith.constant 0 : i32
    return %c0_i32, %c0_i32_0 : i32, i32
  }
  func.func @transform_2(%arg0: i32) -> (i32, i32, i32) {
    %c0_i32 = arith.constant 0 : i32
    %c0_i32_0 = arith.constant 0 : i32
    %c0_i32_1 = arith.constant 0 : i32
    return %arg0, %c0_i32, %c0_i32_0 : i32, i32, i32
  }
  func.func @transform_3(%arg0: i32) -> (i32, i32, i32) {
    %c0_i32 = arith.constant 0 : i32
    %c0_i32_0 = arith.constant 0 : i32
    %c0_i32_1 = arith.constant 0 : i32
    return %arg0, %c0_i32, %c0_i32_0 : i32, i32, i32
  }
}

module attributes {stable_mosaic.version = 11 : i64} {
  func.func @_bn_add_relu_kernel(%arg0: i32, %arg1: memref<1x256x32xbf16, #tpu.memory_space<vmem>>, %arg2: memref<1x32x256xf32, #tpu.memory_space<vmem>>, %arg3: memref<1x32xf32, #tpu.memory_space<vmem>>, %arg4: memref<1x32xf32, #tpu.memory_space<vmem>>, %arg5: memref<1x32x256xf32, #tpu.memory_space<vmem>>) attributes {dimension_semantics = [#tpu.dimension_semantics<parallel>], iteration_bounds = array<i64: 2>, scalar_prefetch = 0 : i64, scratch_operands = 0 : i64, tpu.core_type = #tpu.core_type<tc>, window_params = [{transform_indices = @transform_0, window_bounds = array<i64: 1, 256, 32>}, {transform_indices = @transform_1, window_bounds = array<i64: 1, 32, 256>}, {pipeline_mode = #tpu.pipeline_mode<synchronous>, transform_indices = @transform_2, window_bounds = array<i64: 1, 32>}, {pipeline_mode = #tpu.pipeline_mode<synchronous>, transform_indices = @transform_3, window_bounds = array<i64: 1, 32>}, {transform_indices = @transform_4, window_bounds = array<i64: 1, 32, 256>}]} {
    %c0 = arith.constant 0 : index
    %c0_0 = arith.constant 0 : index
    %c0_1 = arith.constant 0 : index
    %0 = vector.load %arg1[%c0, %c0_0, %c0_1] : memref<1x256x32xbf16, #tpu.memory_space<vmem>>, vector<1x256x32xbf16>
    %1 = vector.shape_cast %0 : vector<1x256x32xbf16> to vector<256x32xbf16>
    %2 = arith.extf %1 : vector<256x32xbf16> to vector<256x32xf32>
    %c0_2 = arith.constant 0 : index
    %c0_3 = arith.constant 0 : index
    %3 = vector.load %arg3[%c0_2, %c0_3] : memref<1x32xf32, #tpu.memory_space<vmem>>, vector<1x32xf32>
    %4 = vector.broadcast %3 : vector<1x32xf32> to vector<256x32xf32>
    %5 = arith.mulf %2, %4 : vector<256x32xf32>
    %c0_4 = arith.constant 0 : index
    %c0_5 = arith.constant 0 : index
    %6 = vector.load %arg4[%c0_4, %c0_5] : memref<1x32xf32, #tpu.memory_space<vmem>>, vector<1x32xf32>
    %7 = vector.broadcast %6 : vector<1x32xf32> to vector<256x32xf32>
    %8 = arith.addf %5, %7 : vector<256x32xf32>
    %9 = tpu.transpose %8, [1, 0] : vector<256x32xf32> -> vector<32x256xf32>
    %c0_6 = arith.constant 0 : index
    %c0_7 = arith.constant 0 : index
    %c0_8 = arith.constant 0 : index
    %10 = vector.load %arg2[%c0_6, %c0_7, %c0_8] : memref<1x32x256xf32, #tpu.memory_space<vmem>>, vector<1x32x256xf32>
    %11 = vector.shape_cast %10 : vector<1x32x256xf32> to vector<32x256xf32>
    %12 = arith.addf %9, %11 : vector<32x256xf32>
    %cst = arith.constant 0.000000e+00 : f32
    %13 = vector.broadcast %cst : f32 to vector<32x256xf32>
    %14 = arith.maximumf %12, %13 : vector<32x256xf32>
    %c0_9 = arith.constant 0 : index
    %c0_10 = arith.constant 0 : index
    %c0_11 = arith.constant 0 : index
    %15 = vector.load %arg5[%c0_9, %c0_10, %c0_11] : memref<1x32x256xf32, #tpu.memory_space<vmem>>, vector<1x32x256xf32>
    %16 = vector.shape_cast %15 : vector<1x32x256xf32> to vector<32x256xf32>
    %17 = vector.shape_cast %14 : vector<32x256xf32> to vector<1x32x256xf32>
    tpu.vector_store %arg5[%c0_9, %c0_10, %c0_11], %17 {strides = array<i32>} : memref<1x32x256xf32, #tpu.memory_space<vmem>>, vector<1x32x256xf32>,
    return
  }
  func.func @transform_0(%arg0: i32) -> (i32, i32, i32) {
    %c0_i32 = arith.constant 0 : i32
    %c0_i32_0 = arith.constant 0 : i32
    %c0_i32_1 = arith.constant 0 : i32
    return %arg0, %c0_i32, %c0_i32_0 : i32, i32, i32
  }
  func.func @transform_1(%arg0: i32) -> (i32, i32, i32) {
    %c0_i32 = arith.constant 0 : i32
    %c0_i32_0 = arith.constant 0 : i32
    %c0_i32_1 = arith.constant 0 : i32
    return %arg0, %c0_i32, %c0_i32_0 : i32, i32, i32
  }
  func.func @transform_2(%arg0: i32) -> (i32, i32) {
    %c0_i32 = arith.constant 0 : i32
    %c0_i32_0 = arith.constant 0 : i32
    %c0_i32_1 = arith.constant 0 : i32
    return %c0_i32, %c0_i32_0 : i32, i32
  }
  func.func @transform_3(%arg0: i32) -> (i32, i32) {
    %c0_i32 = arith.constant 0 : i32
    %c0_i32_0 = arith.constant 0 : i32
    %c0_i32_1 = arith.constant 0 : i32
    return %c0_i32, %c0_i32_0 : i32, i32
  }
  func.func @transform_4(%arg0: i32) -> (i32, i32, i32) {
    %c0_i32 = arith.constant 0 : i32
    %c0_i32_0 = arith.constant 0 : i32
    %c0_i32_1 = arith.constant 0 : i32
    return %arg0, %c0_i32, %c0_i32_0 : i32, i32, i32
  }
}

module attributes {stable_mosaic.version = 11 : i64} {
  func.func @_conv3_kernel(%arg0: i32, %arg1: memref<512x8xbf16, #tpu.memory_space<vmem>>, %arg2: memref<1x8xf32, #tpu.memory_space<vmem>>, %arg3: memref<1x8xf32, #tpu.memory_space<vmem>>, %arg4: memref<8x32xbf16, #tpu.memory_space<vmem>>, %arg5: memref<512x32xbf16, #tpu.memory_space<vmem>>, %arg6: memref<1x2x32xf32, #tpu.memory_space<vmem>>) attributes {dimension_semantics = [#tpu.dimension_semantics<parallel>], iteration_bounds = array<i64: 1>, scalar_prefetch = 0 : i64, scratch_operands = 0 : i64, tpu.core_type = #tpu.core_type<tc>, window_params = [{transform_indices = @transform_0, window_bounds = array<i64: 512, 8>}, {pipeline_mode = #tpu.pipeline_mode<synchronous>, transform_indices = @transform_1, window_bounds = array<i64: 1, 8>}, {pipeline_mode = #tpu.pipeline_mode<synchronous>, transform_indices = @transform_2, window_bounds = array<i64: 1, 8>}, {pipeline_mode = #tpu.pipeline_mode<synchronous>, transform_indices = @transform_3, window_bounds = array<i64: 8, 32>}, {transform_indices = @transform_4, window_bounds = array<i64: 512, 32>}, {transform_indices = @transform_5, window_bounds = array<i64: 1, 2, 32>}]} {
    %c0 = arith.constant 0 : index
    %c0_0 = arith.constant 0 : index
    %0 = vector.load %arg1[%c0, %c0_0] : memref<512x8xbf16, #tpu.memory_space<vmem>>, vector<512x8xbf16>
    %1 = arith.extf %0 : vector<512x8xbf16> to vector<512x8xf32>
    %c0_1 = arith.constant 0 : index
    %c0_2 = arith.constant 0 : index
    %2 = vector.load %arg2[%c0_1, %c0_2] : memref<1x8xf32, #tpu.memory_space<vmem>>, vector<1x8xf32>
    %3 = vector.broadcast %2 : vector<1x8xf32> to vector<512x8xf32>
    %4 = arith.mulf %1, %3 : vector<512x8xf32>
    %c0_3 = arith.constant 0 : index
    %c0_4 = arith.constant 0 : index
    %5 = vector.load %arg3[%c0_3, %c0_4] : memref<1x8xf32, #tpu.memory_space<vmem>>, vector<1x8xf32>
    %6 = vector.broadcast %5 : vector<1x8xf32> to vector<512x8xf32>
    %7 = arith.addf %4, %6 : vector<512x8xf32>
    %cst = arith.constant 0.000000e+00 : f32
    %8 = vector.broadcast %cst : f32 to vector<512x8xf32>
    %9 = arith.maximumf %7, %8 : vector<512x8xf32>
    %10 = arith.truncf %9 : vector<512x8xf32> to vector<512x8xbf16>
    %c0_5 = arith.constant 0 : index
    %c0_6 = arith.constant 0 : index
    %11 = vector.load %arg4[%c0_5, %c0_6] : memref<8x32xbf16, #tpu.memory_space<vmem>>, vector<8x32xbf16>
    %cst_7 = arith.constant dense<0.000000e+00> : vector<512x32xf32>
    %12 = tpu.matmul %10, %11, %cst_7 {dimension_numbers = #tpu.dot_dimension_numbers<[1], [0], [0], [1], [0, 0, 1, 1], [], []>} : vector<512x8xbf16>, vector<8x32xbf16>, vector<512x32xf32> -> vector<512x32xf32>
    %13 = arith.truncf %12 : vector<512x32xf32> to vector<512x32xbf16>
    %c0_8 = arith.constant 0 : index
    %c0_9 = arith.constant 0 : index
    %14 = vector.load %arg5[%c0_8, %c0_9] : memref<512x32xbf16, #tpu.memory_space<vmem>>, vector<512x32xbf16>
    tpu.vector_store %arg5[%c0_8, %c0_9], %13 {strides = array<i32>} : memref<512x32xbf16, #tpu.memory_space<vmem>>, vector<512x32xbf16>,
    %cst_10 = arith.constant dense<0.000000e+00> : vector<32xf32>
    %15 = vector.multi_reduction <add>, %12, %cst_10 [0] : vector<512x32xf32> to vector<32xf32>
    %16 = vector.shape_cast %15 : vector<32xf32> to vector<1x32xf32>
    %17 = arith.mulf %12, %12 : vector<512x32xf32>
    %cst_11 = arith.constant dense<0.000000e+00> : vector<32xf32>
    %18 = vector.multi_reduction <add>, %17, %cst_11 [0] : vector<512x32xf32> to vector<32xf32>
    %19 = vector.shape_cast %18 : vector<32xf32> to vector<1x32xf32>
    %20 = tpu.concatenate %16, %19 in 0 : vector<1x32xf32>, vector<1x32xf32> -> vector<2x32xf32>
    %c0_12 = arith.constant 0 : index
    %c0_13 = arith.constant 0 : index
    %c0_14 = arith.constant 0 : index
    %21 = vector.load %arg6[%c0_12, %c0_13, %c0_14] : memref<1x2x32xf32, #tpu.memory_space<vmem>>, vector<1x2x32xf32>
    %22 = vector.shape_cast %21 : vector<1x2x32xf32> to vector<2x32xf32>
    %23 = vector.shape_cast %20 : vector<2x32xf32> to vector<1x2x32xf32>
    tpu.vector_store %arg6[%c0_12, %c0_13, %c0_14], %23 {strides = array<i32>} : memref<1x2x32xf32, #tpu.memory_space<vmem>>, vector<1x2x32xf32>,
    return
  }
  func.func @transform_0(%arg0: i32) -> (i32, i32) {
    %c0_i32 = arith.constant 0 : i32
    %c0_i32_0 = arith.constant 0 : i32
    return %arg0, %c0_i32 : i32, i32
  }
  func.func @transform_1(%arg0: i32) -> (i32, i32) {
    %c0_i32 = arith.constant 0 : i32
    %c0_i32_0 = arith.constant 0 : i32
    %c0_i32_1 = arith.constant 0 : i32
    return %c0_i32, %c0_i32_0 : i32, i32
  }
  func.func @transform_2(%arg0: i32) -> (i32, i32) {
    %c0_i32 = arith.constant 0 : i32
    %c0_i32_0 = arith.constant 0 : i32
    %c0_i32_1 = arith.constant 0 : i32
    return %c0_i32, %c0_i32_0 : i32, i32
  }
  func.func @transform_3(%arg0: i32) -> (i32, i32) {
    %c0_i32 = arith.constant 0 : i32
    %c0_i32_0 = arith.constant 0 : i32
    %c0_i32_1 = arith.constant 0 : i32
    return %c0_i32, %c0_i32_0 : i32, i32
  }
  func.func @transform_4(%arg0: i32) -> (i32, i32) {
    %c0_i32 = arith.constant 0 : i32
    %c0_i32_0 = arith.constant 0 : i32
    return %arg0, %c0_i32 : i32, i32
  }
  func.func @transform_5(%arg0: i32) -> (i32, i32, i32) {
    %c0_i32 = arith.constant 0 : i32
    %c0_i32_0 = arith.constant 0 : i32
    %c0_i32_1 = arith.constant 0 : i32
    return %arg0, %c0_i32, %c0_i32_0 : i32, i32, i32
  }
}

module attributes {stable_mosaic.version = 11 : i64} {
  func.func @_conv2_kernel(%arg0: i32, %arg1: memref<1x256x8xbf16, #tpu.memory_space<vmem>>, %arg2: memref<1x8xf32, #tpu.memory_space<vmem>>, %arg3: memref<1x8xf32, #tpu.memory_space<vmem>>, %arg4: memref<9x8x8xbf16, #tpu.memory_space<vmem>>, %arg5: memref<1x256x8xbf16, #tpu.memory_space<vmem>>, %arg6: memref<1x2x8xf32, #tpu.memory_space<vmem>>) attributes {dimension_semantics = [#tpu.dimension_semantics<parallel>], iteration_bounds = array<i64: 2>, scalar_prefetch = 0 : i64, scratch_operands = 0 : i64, tpu.core_type = #tpu.core_type<tc>, window_params = [{transform_indices = @transform_0, window_bounds = array<i64: 1, 256, 8>}, {pipeline_mode = #tpu.pipeline_mode<synchronous>, transform_indices = @transform_1, window_bounds = array<i64: 1, 8>}, {pipeline_mode = #tpu.pipeline_mode<synchronous>, transform_indices = @transform_2, window_bounds = array<i64: 1, 8>}, {pipeline_mode = #tpu.pipeline_mode<synchronous>, transform_indices = @transform_3, window_bounds = array<i64: 9, 8, 8>}, {transform_indices = @transform_4, window_bounds = array<i64: 1, 256, 8>}, {transform_indices = @transform_5, window_bounds = array<i64: 1, 2, 8>}]} {
    %c0 = arith.constant 0 : index
    %c0_0 = arith.constant 0 : index
    %c0_1 = arith.constant 0 : index
    %0 = vector.load %arg1[%c0, %c0_0, %c0_1] : memref<1x256x8xbf16, #tpu.memory_space<vmem>>, vector<1x256x8xbf16>
    %1 = vector.shape_cast %0 : vector<1x256x8xbf16> to vector<256x8xbf16>
    %2 = arith.extf %1 : vector<256x8xbf16> to vector<256x8xf32>
    %c0_2 = arith.constant 0 : index
    %c0_3 = arith.constant 0 : index
    %3 = vector.load %arg2[%c0_2, %c0_3] : memref<1x8xf32, #tpu.memory_space<vmem>>, vector<1x8xf32>
    %4 = vector.broadcast %3 : vector<1x8xf32> to vector<256x8xf32>
    %5 = arith.mulf %2, %4 : vector<256x8xf32>
    %c0_4 = arith.constant 0 : index
    %c0_5 = arith.constant 0 : index
    %6 = vector.load %arg3[%c0_4, %c0_5] : memref<1x8xf32, #tpu.memory_space<vmem>>, vector<1x8xf32>
    %7 = vector.broadcast %6 : vector<1x8xf32> to vector<256x8xf32>
    %8 = arith.addf %5, %7 : vector<256x8xf32>
    %cst = arith.constant 0.000000e+00 : f32
    %9 = vector.broadcast %cst : f32 to vector<256x8xf32>
    %10 = arith.maximumf %8, %9 : vector<256x8xf32>
    %11 = vector.shape_cast %10 : vector<256x8xf32> to vector<16x16x8xf32>
    %cst_6 = arith.constant 0.000000e+00 : f32
    %12 = vector.broadcast %cst_6 : f32 to vector<16x1x8xf32>
    %13 = tpu.concatenate %12, %11, %12 in 1 : vector<16x1x8xf32>, vector<16x16x8xf32>, vector<16x1x8xf32> -> vector<16x18x8xf32>
    %cst_7 = arith.constant 0.000000e+00 : f32
    %14 = vector.broadcast %cst_7 : f32 to vector<1x18x8xf32>
    %15 = tpu.concatenate %14, %13, %14 in 0 : vector<1x18x8xf32>, vector<16x18x8xf32>, vector<1x18x8xf32> -> vector<18x18x8xf32>
    %cst_8 = arith.constant 0.000000e+00 : f32
    %16 = vector.broadcast %cst_8 : f32 to vector<256x8xf32>
    %17 = vector.extract_strided_slice %15 {offsets = [0, 0, 0], sizes = [16, 16, 8], strides = [1, 1, 1]} : vector<18x18x8xf32> to vector<16x16x8xf32>
    %18 = vector.shape_cast %17 : vector<16x16x8xf32> to vector<256x8xf32>
    %19 = arith.truncf %18 : vector<256x8xf32> to vector<256x8xbf16>
    %c0_9 = arith.constant 0 : index
    %c0_10 = arith.constant 0 : index
    %c0_11 = arith.constant 0 : index
    %20 = vector.load %arg4[%c0_9, %c0_10, %c0_11] : memref<9x8x8xbf16, #tpu.memory_space<vmem>>, vector<1x8x8xbf16>
    %21 = vector.shape_cast %20 : vector<1x8x8xbf16> to vector<8x8xbf16>
    %cst_12 = arith.constant dense<0.000000e+00> : vector<256x8xf32>
    %22 = tpu.matmul %19, %21, %cst_12 {dimension_numbers = #tpu.dot_dimension_numbers<[1], [0], [0], [1], [0, 0, 1, 1], [], []>} : vector<256x8xbf16>, vector<8x8xbf16>, vector<256x8xf32> -> vector<256x8xf32>
    %23 = arith.addf %16, %22 : vector<256x8xf32>
    %24 = vector.extract_strided_slice %15 {offsets = [0, 1, 0], sizes = [16, 16, 8], strides = [1, 1, 1]} : vector<18x18x8xf32> to vector<16x16x8xf32>
    %25 = vector.shape_cast %24 : vector<16x16x8xf32> to vector<256x8xf32>
    %26 = arith.truncf %25 : vector<256x8xf32> to vector<256x8xbf16>
    %c1 = arith.constant 1 : index
    %c0_13 = arith.constant 0 : index
    %c0_14 = arith.constant 0 : index
    %27 = vector.load %arg4[%c1, %c0_13, %c0_14] : memref<9x8x8xbf16, #tpu.memory_space<vmem>>, vector<1x8x8xbf16>
    %28 = vector.shape_cast %27 : vector<1x8x8xbf16> to vector<8x8xbf16>
    %cst_15 = arith.constant dense<0.000000e+00> : vector<256x8xf32>
    %29 = tpu.matmul %26, %28, %cst_15 {dimension_numbers = #tpu.dot_dimension_numbers<[1], [0], [0], [1], [0, 0, 1, 1], [], []>} : vector<256x8xbf16>, vector<8x8xbf16>, vector<256x8xf32> -> vector<256x8xf32>
    %30 = arith.addf %23, %29 : vector<256x8xf32>
    %31 = vector.extract_strided_slice %15 {offsets = [0, 2, 0], sizes = [16, 16, 8], strides = [1, 1, 1]} : vector<18x18x8xf32> to vector<16x16x8xf32>
    %32 = vector.shape_cast %31 : vector<16x16x8xf32> to vector<256x8xf32>
    %33 = arith.truncf %32 : vector<256x8xf32> to vector<256x8xbf16>
    %c2 = arith.constant 2 : index
    %c0_16 = arith.constant 0 : index
    %c0_17 = arith.constant 0 : index
    %34 = vector.load %arg4[%c2, %c0_16, %c0_17] : memref<9x8x8xbf16, #tpu.memory_space<vmem>>, vector<1x8x8xbf16>
    %35 = vector.shape_cast %34 : vector<1x8x8xbf16> to vector<8x8xbf16>
    %cst_18 = arith.constant dense<0.000000e+00> : vector<256x8xf32>
    %36 = tpu.matmul %33, %35, %cst_18 {dimension_numbers = #tpu.dot_dimension_numbers<[1], [0], [0], [1], [0, 0, 1, 1], [], []>} : vector<256x8xbf16>, vector<8x8xbf16>, vector<256x8xf32> -> vector<256x8xf32>
    %37 = arith.addf %30, %36 : vector<256x8xf32>
    %38 = vector.extract_strided_slice %15 {offsets = [1, 0, 0], sizes = [16, 16, 8], strides = [1, 1, 1]} : vector<18x18x8xf32> to vector<16x16x8xf32>
    %39 = vector.shape_cast %38 : vector<16x16x8xf32> to vector<256x8xf32>
    %40 = arith.truncf %39 : vector<256x8xf32> to vector<256x8xbf16>
    %c3 = arith.constant 3 : index
    %c0_19 = arith.constant 0 : index
    %c0_20 = arith.constant 0 : index
    %41 = vector.load %arg4[%c3, %c0_19, %c0_20] : memref<9x8x8xbf16, #tpu.memory_space<vmem>>, vector<1x8x8xbf16>
    %42 = vector.shape_cast %41 : vector<1x8x8xbf16> to vector<8x8xbf16>
    %cst_21 = arith.constant dense<0.000000e+00> : vector<256x8xf32>
    %43 = tpu.matmul %40, %42, %cst_21 {dimension_numbers = #tpu.dot_dimension_numbers<[1], [0], [0], [1], [0, 0, 1, 1], [], []>} : vector<256x8xbf16>, vector<8x8xbf16>, vector<256x8xf32> -> vector<256x8xf32>
    %44 = arith.addf %37, %43 : vector<256x8xf32>
    %45 = vector.extract_strided_slice %15 {offsets = [1, 1, 0], sizes = [16, 16, 8], strides = [1, 1, 1]} : vector<18x18x8xf32> to vector<16x16x8xf32>
    %46 = vector.shape_cast %45 : vector<16x16x8xf32> to vector<256x8xf32>
    %47 = arith.truncf %46 : vector<256x8xf32> to vector<256x8xbf16>
    %c4 = arith.constant 4 : index
    %c0_22 = arith.constant 0 : index
    %c0_23 = arith.constant 0 : index
    %48 = vector.load %arg4[%c4, %c0_22, %c0_23] : memref<9x8x8xbf16, #tpu.memory_space<vmem>>, vector<1x8x8xbf16>
    %49 = vector.shape_cast %48 : vector<1x8x8xbf16> to vector<8x8xbf16>
    %cst_24 = arith.constant dense<0.000000e+00> : vector<256x8xf32>
    %50 = tpu.matmul %47, %49, %cst_24 {dimension_numbers = #tpu.dot_dimension_numbers<[1], [0], [0], [1], [0, 0, 1, 1], [], []>} : vector<256x8xbf16>, vector<8x8xbf16>, vector<256x8xf32> -> vector<256x8xf32>
    %51 = arith.addf %44, %50 : vector<256x8xf32>
    %52 = vector.extract_strided_slice %15 {offsets = [1, 2, 0], sizes = [16, 16, 8], strides = [1, 1, 1]} : vector<18x18x8xf32> to vector<16x16x8xf32>
    %53 = vector.shape_cast %52 : vector<16x16x8xf32> to vector<256x8xf32>
    %54 = arith.truncf %53 : vector<256x8xf32> to vector<256x8xbf16>
    %c5 = arith.constant 5 : index
    %c0_25 = arith.constant 0 : index
    %c0_26 = arith.constant 0 : index
    %55 = vector.load %arg4[%c5, %c0_25, %c0_26] : memref<9x8x8xbf16, #tpu.memory_space<vmem>>, vector<1x8x8xbf16>
    %56 = vector.shape_cast %55 : vector<1x8x8xbf16> to vector<8x8xbf16>
    %cst_27 = arith.constant dense<0.000000e+00> : vector<256x8xf32>
    %57 = tpu.matmul %54, %56, %cst_27 {dimension_numbers = #tpu.dot_dimension_numbers<[1], [0], [0], [1], [0, 0, 1, 1], [], []>} : vector<256x8xbf16>, vector<8x8xbf16>, vector<256x8xf32> -> vector<256x8xf32>
    %58 = arith.addf %51, %57 : vector<256x8xf32>
    %59 = vector.extract_strided_slice %15 {offsets = [2, 0, 0], sizes = [16, 16, 8], strides = [1, 1, 1]} : vector<18x18x8xf32> to vector<16x16x8xf32>
    %60 = vector.shape_cast %59 : vector<16x16x8xf32> to vector<256x8xf32>
    %61 = arith.truncf %60 : vector<256x8xf32> to vector<256x8xbf16>
    %c6 = arith.constant 6 : index
    %c0_28 = arith.constant 0 : index
    %c0_29 = arith.constant 0 : index
    %62 = vector.load %arg4[%c6, %c0_28, %c0_29] : memref<9x8x8xbf16, #tpu.memory_space<vmem>>, vector<1x8x8xbf16>
    %63 = vector.shape_cast %62 : vector<1x8x8xbf16> to vector<8x8xbf16>
    %cst_30 = arith.constant dense<0.000000e+00> : vector<256x8xf32>
    %64 = tpu.matmul %61, %63, %cst_30 {dimension_numbers = #tpu.dot_dimension_numbers<[1], [0], [0], [1], [0, 0, 1, 1], [], []>} : vector<256x8xbf16>, vector<8x8xbf16>, vector<256x8xf32> -> vector<256x8xf32>
    %65 = arith.addf %58, %64 : vector<256x8xf32>
    %66 = vector.extract_strided_slice %15 {offsets = [2, 1, 0], sizes = [16, 16, 8], strides = [1, 1, 1]} : vector<18x18x8xf32> to vector<16x16x8xf32>
    %67 = vector.shape_cast %66 : vector<16x16x8xf32> to vector<256x8xf32>
    %68 = arith.truncf %67 : vector<256x8xf32> to vector<256x8xbf16>
    %c7 = arith.constant 7 : index
    %c0_31 = arith.constant 0 : index
    %c0_32 = arith.constant 0 : index
    %69 = vector.load %arg4[%c7, %c0_31, %c0_32] : memref<9x8x8xbf16, #tpu.memory_space<vmem>>, vector<1x8x8xbf16>
    %70 = vector.shape_cast %69 : vector<1x8x8xbf16> to vector<8x8xbf16>
    %cst_33 = arith.constant dense<0.000000e+00> : vector<256x8xf32>
    %71 = tpu.matmul %68, %70, %cst_33 {dimension_numbers = #tpu.dot_dimension_numbers<[1], [0], [0], [1], [0, 0, 1, 1], [], []>} : vector<256x8xbf16>, vector<8x8xbf16>, vector<256x8xf32> -> vector<256x8xf32>
    %72 = arith.addf %65, %71 : vector<256x8xf32>
    %73 = vector.extract_strided_slice %15 {offsets = [2, 2, 0], sizes = [16, 16, 8], strides = [1, 1, 1]} : vector<18x18x8xf32> to vector<16x16x8xf32>
    %74 = vector.shape_cast %73 : vector<16x16x8xf32> to vector<256x8xf32>
    %75 = arith.truncf %74 : vector<256x8xf32> to vector<256x8xbf16>
    %c8 = arith.constant 8 : index
    %c0_34 = arith.constant 0 : index
    %c0_35 = arith.constant 0 : index
    %76 = vector.load %arg4[%c8, %c0_34, %c0_35] : memref<9x8x8xbf16, #tpu.memory_space<vmem>>, vector<1x8x8xbf16>
    %77 = vector.shape_cast %76 : vector<1x8x8xbf16> to vector<8x8xbf16>
    %cst_36 = arith.constant dense<0.000000e+00> : vector<256x8xf32>
    %78 = tpu.matmul %75, %77, %cst_36 {dimension_numbers = #tpu.dot_dimension_numbers<[1], [0], [0], [1], [0, 0, 1, 1], [], []>} : vector<256x8xbf16>, vector<8x8xbf16>, vector<256x8xf32> -> vector<256x8xf32>
    %79 = arith.addf %72, %78 : vector<256x8xf32>
    %80 = arith.truncf %79 : vector<256x8xf32> to vector<256x8xbf16>
    %c0_37 = arith.constant 0 : index
    %c0_38 = arith.constant 0 : index
    %c0_39 = arith.constant 0 : index
    %81 = vector.load %arg5[%c0_37, %c0_38, %c0_39] : memref<1x256x8xbf16, #tpu.memory_space<vmem>>, vector<1x256x8xbf16>
    %82 = vector.shape_cast %81 : vector<1x256x8xbf16> to vector<256x8xbf16>
    %83 = vector.shape_cast %80 : vector<256x8xbf16> to vector<1x256x8xbf16>
    tpu.vector_store %arg5[%c0_37, %c0_38, %c0_39], %83 {strides = array<i32>} : memref<1x256x8xbf16, #tpu.memory_space<vmem>>, vector<1x256x8xbf16>,
    %cst_40 = arith.constant dense<0.000000e+00> : vector<8xf32>
    %84 = vector.multi_reduction <add>, %79, %cst_40 [0] : vector<256x8xf32> to vector<8xf32>
    %85 = vector.shape_cast %84 : vector<8xf32> to vector<1x8xf32>
    %86 = arith.mulf %79, %79 : vector<256x8xf32>
    %cst_41 = arith.constant dense<0.000000e+00> : vector<8xf32>
    %87 = vector.multi_reduction <add>, %86, %cst_41 [0] : vector<256x8xf32> to vector<8xf32>
    %88 = vector.shape_cast %87 : vector<8xf32> to vector<1x8xf32>
    %89 = tpu.concatenate %85, %88 in 0 : vector<1x8xf32>, vector<1x8xf32> -> vector<2x8xf32>
    %c0_42 = arith.constant 0 : index
    %c0_43 = arith.constant 0 : index
    %c0_44 = arith.constant 0 : index
    %90 = vector.load %arg6[%c0_42, %c0_43, %c0_44] : memref<1x2x8xf32, #tpu.memory_space<vmem>>, vector<1x2x8xf32>
    %91 = vector.shape_cast %90 : vector<1x2x8xf32> to vector<2x8xf32>
    %92 = vector.shape_cast %89 : vector<2x8xf32> to vector<1x2x8xf32>
    tpu.vector_store %arg6[%c0_42, %c0_43, %c0_44], %92 {strides = array<i32>} : memref<1x2x8xf32, #tpu.memory_space<vmem>>, vector<1x2x8xf32>,
    return
  }
  func.func @transform_0(%arg0: i32) -> (i32, i32, i32) {
    %c0_i32 = arith.constant 0 : i32
    %c0_i32_0 = arith.constant 0 : i32
    %c0_i32_1 = arith.constant 0 : i32
    return %arg0, %c0_i32, %c0_i32_0 : i32, i32, i32
  }
  func.func @transform_1(%arg0: i32) -> (i32, i32) {
    %c0_i32 = arith.constant 0 : i32
    %c0_i32_0 = arith.constant 0 : i32
    %c0_i32_1 = arith.constant 0 : i32
    return %c0_i32, %c0_i32_0 : i32, i32
  }
  func.func @transform_2(%arg0: i32) -> (i32, i32) {
    %c0_i32 = arith.constant 0 : i32
    %c0_i32_0 = arith.constant 0 : i32
    %c0_i32_1 = arith.constant 0 : i32
    return %c0_i32, %c0_i32_0 : i32, i32
  }
  func.func @transform_3(%arg0: i32) -> (i32, i32, i32) {
    %c0_i32 = arith.constant 0 : i32
    %c0_i32_0 = arith.constant 0 : i32
    %c0_i32_1 = arith.constant 0 : i32
    %c0_i32_2 = arith.constant 0 : i32
    return %c0_i32, %c0_i32_0, %c0_i32_1 : i32, i32, i32
  }
  func.func @transform_4(%arg0: i32) -> (i32, i32, i32) {
    %c0_i32 = arith.constant 0 : i32
    %c0_i32_0 = arith.constant 0 : i32
    %c0_i32_1 = arith.constant 0 : i32
    return %arg0, %c0_i32, %c0_i32_0 : i32, i32, i32
  }
  func.func @transform_5(%arg0: i32) -> (i32, i32, i32) {
    %c0_i32 = arith.constant 0 : i32
    %c0_i32_0 = arith.constant 0 : i32
    %c0_i32_1 = arith.constant 0 : i32
    return %arg0, %c0_i32, %c0_i32_0 : i32, i32, i32
  }
}

</mosaic_0001>

<llo_original>
// kernel: bottleneck_forward.4
$region0: #{bottleneck_forward.4}
  #allocation0 [shape = 'u32[]', space=smem, size = 0x4, offset = 0x4, fixed_abs, tag = 'smem constant byte address 0x4 - core index']
  #allocation1 [shape = 'u32[72,128]{1,0:T(1,128)}', space=vmem, size = 0x9000, scoped, tag = 'internal scratch']
  %s0 = inlined_call_operand.vmem [shape: f32[2,32,256], index: 0, kind: input, shape index: {}]
  %s1 = inlined_call_operand.vmem [shape: bf16[32,8], index: 1, kind: input, shape index: {}]
  %s2 = inlined_call_operand.vmem [shape: bf16[2,256,8], index: 2, kind: output, shape index: {0}]
  %s3 = inlined_call_operand.vmem [shape: f32[2,2,8], index: 3, kind: output, shape index: {1}]
  %4 = xla_tuple %s2, %s3
  %s5 = sld [smem:[#allocation0]]
  $region49: #{bottleneck_forward.4} parent=0
    _
  %s7 = ssub.s32 1, %s5
  %s8 = scalar_select 0, %s7, %s5
  loop: start=0, step=1, limit=4
  $region2: #{bottleneck_forward.4} parent=0 // loop_pre_header
    _
  $region3: #{bottleneck_forward.4} parent=0 // loop_header
    %s10 = sphi 0, %s14
    %p11 = scmp.ge.s32.totalorder %s10, 4
    %s20 = sphi 0, %s22
    %s23 = sphi 0, %s20
    %s24 = sphi 0, %s23
    %s40 = sphi 0, %s24
    %s44 = sphi 0, %s44
    %s46 = sphi 0, %s44
    %s47 = sphi 0, %s46
    %s61 = sphi 0, %s47
    %s67 = sphi 0, %s69
    %s70 = sphi 0, %s67
    %s71 = sphi 0, %s70
    %s87 = sphi 0, %s71
    %s93 = sphi 0, %s95
    %s96 = sphi 0, %s93
    %s97 = sphi 0, %s96
    %s113 = sphi 0, %s97
  $region4: #{bottleneck_forward.4} parent=0 // loop_header_branch
    %13 = sbr.rel (%p11) target = $region8
  $region5: #{bottleneck_forward.4} parent=0 // loop_body
    %s15 = ssub.s32 %s10, 1
    %s16 = ssub.s32 %s10, 2
    %s17 = sadd.s32 %s10, 1
    %s18 = ssub.s32 %s10, %s17
    %p19 = scmp.eq.s32.totalorder %s18, 0
    %s21 = sadd.s32 %s20, 1
    %s22 = scalar_select %p19, %s20, %s21
    %p25 = pneg %p19
    %p26 = scmp.eq.s32.totalorder %s10, 1
    %p27 = por %p25, %p26
    %p28 = scmp.ne.s32.totalorder %s20, %s23
    %p29 = scmp.eq.s32.totalorder %s10, 0
    %p30 = por %p28, %p29
    %p31 = scmp.ne.s32.totalorder %s20, %s23
    %p32 = scmp.eq.s32.totalorder %s15, 1
    %p33 = por %p31, %p32
    %p34 = scmp.ne.s32.totalorder %s23, %s24
    %p35 = scmp.eq.s32.totalorder %s15, 0
    %p36 = por %p34, %p35
    %p37 = scmp.ne.s32.totalorder %s23, %s24
    %p38 = scmp.eq.s32.totalorder %s16, 1
    %p39 = por %p37, %p38
    %p41 = scmp.ne.s32.totalorder %s24, %s40
    %p42 = scmp.eq.s32.totalorder %s16, 0
    %p43 = por %p41, %p42
    %s45 = sadd.s32 %s44, 1
    %p48 = scmp.eq.s32.totalorder %s10, 1
    %p49 = scmp.ne.s32.totalorder %s44, %s46
    %p50 = scmp.eq.s32.totalorder %s10, 0
    %p51 = por %p49, %p50
    %p52 = scmp.ne.s32.totalorder %s44, %s46
    %p53 = scmp.eq.s32.totalorder %s15, 1
    %p54 = por %p52, %p53
    %p55 = scmp.ne.s32.totalorder %s46, %s47
    %p56 = scmp.eq.s32.totalorder %s15, 0
    %p57 = por %p55, %p56
    %p58 = scmp.ne.s32.totalorder %s46, %s47
    %p59 = scmp.eq.s32.totalorder %s16, 1
    %p60 = por %p58, %p59
    %p62 = scmp.ne.s32.totalorder %s47, %s61
    %p63 = scmp.eq.s32.totalorder %s16, 0
    %p64 = por %p62, %p63
    %s65 = ssub.s32 %s10, %s17
    %p66 = scmp.eq.s32.totalorder %s65, 0
    %s68 = sadd.s32 %s67, 1
    %s69 = scalar_select %p66, %s67, %s68
    %p72 = pneg %p66
    %p73 = scmp.eq.s32.totalorder %s10, 1
    %p74 = por %p72, %p73
    %p75 = scmp.ne.s32.totalorder %s67, %s70
    %p76 = scmp.eq.s32.totalorder %s10, 0
    %p77 = por %p75, %p76
    %p78 = scmp.ne.s32.totalorder %s67, %s70
    %p79 = scmp.eq.s32.totalorder %s15, 1
    %p80 = por %p78, %p79
    %p81 = scmp.ne.s32.totalorder %s70, %s71
    %p82 = scmp.eq.s32.totalorder %s15, 0
    %p83 = por %p81, %p82
    %p84 = scmp.ne.s32.totalorder %s70, %s71
    %p85 = scmp.eq.s32.totalorder %s16, 1
    %p86 = por %p84, %p85
    %p88 = scmp.ne.s32.totalorder %s71, %s87
    %p89 = scmp.eq.s32.totalorder %s16, 0
    %p90 = por %p88, %p89
    %s91 = ssub.s32 %s10, %s17
    %p92 = scmp.eq.s32.totalorder %s91, 0
    %s94 = sadd.s32 %s93, 1
    %s95 = scalar_select %p92, %s93, %s94
    %p98 = pneg %p92
    %p99 = scmp.eq.s32.totalorder %s10, 1
    %p100 = por %p98, %p99
    %p101 = scmp.ne.s32.totalorder %s93, %s96
    %p102 = scmp.eq.s32.totalorder %s10, 0
    %p103 = por %p101, %p102
    %p104 = scmp.ne.s32.totalorder %s93, %s96
    %p105 = scmp.eq.s32.totalorder %s15, 1
    %p106 = por %p104, %p105
    %p107 = scmp.ne.s32.totalorder %s96, %s97
    %p108 = scmp.eq.s32.totalorder %s15, 0
    %p109 = por %p107, %p108
    %p110 = scmp.ne.s32.totalorder %s96, %s97
    %p111 = scmp.eq.s32.totalorder %s16, 1
    %p112 = por %p110, %p111
    %p114 = scmp.ne.s32.totalorder %s97, %s113
    %p115 = scmp.eq.s32.totalorder %s16, 0
    %p116 = por %p114, %p115
    %p117 = scmp.le.s32.totalorder 1, %s10
    %p118 = scmp.lt.s32.totalorder %s10, 3
    %p119 = pnand %p117, %p118
    %p120 = pneg %p119
    // Predicated region
    $region9: #{bottleneck_forward.4} parent=5 // pred_check
      _
    $region10: #{bottleneck_forward.4} parent=5 // pred_check_branch
      %122 = sbr.rel (%p119) target = $region12
    $region11: #{bottleneck_forward.4} parent=5 // pred_region
      %s123 = ssub.s32 %s10, 1
      // Predicated region
      $region13: #{bottleneck_forward.4} parent=11 // pred_check
        %p124 = pneg %p57
      $region14: #{bottleneck_forward.4} parent=11 // pred_check_branch
        %126 = sbr.rel (%p124) target = $region16
      $region15: #{bottleneck_forward.4} parent=11 // pred_region
        _
      $region16: #{bottleneck_forward.4} parent=11 // pred_fallthru
        _
    $region12: #{bottleneck_forward.4} parent=5 // pred_fallthru
      _
    %p127 = scmp.lt.s32.totalorder %s10, 2
    // Predicated region
    $region17: #{bottleneck_forward.4} parent=5 // pred_check
      %p128 = pneg %p127
    $region18: #{bottleneck_forward.4} parent=5 // pred_check_branch
      %130 = sbr.rel (%p128) target = $region20
    $region19: #{bottleneck_forward.4} parent=5 // pred_region
      // Predicated region
      $region21: #{bottleneck_forward.4} parent=19 // pred_check
        %p131 = pneg %p30
      $region22: #{bottleneck_forward.4} parent=19 // pred_check_branch
        %133 = sbr.rel (%p131) target = $region24
      $region23: #{bottleneck_forward.4} parent=19 // pred_region
        %p134 = scmp.lt.s32.totalorder %s10, 1
        %s135 = scalar_select %p134, %s10, 1
        %s136 = smul.addr %s135, 8
        %s137 = smul.addr %s136, 8
        %s138 = scalar_lea.vmem %s0, %s137
      $region24: #{bottleneck_forward.4} parent=19 // pred_fallthru
        _
    $region20: #{bottleneck_forward.4} parent=5 // pred_fallthru
      _
    %p139 = scmp.le.s32.totalorder 1, %s10
    %p140 = scmp.lt.s32.totalorder %s10, 3
    %p141 = pnand %p139, %p140
    %p142 = pneg %p141
    // Predicated region
    $region25: #{bottleneck_forward.4} parent=5 // pred_check
      _
    $region26: #{bottleneck_forward.4} parent=5 // pred_check_branch
      %144 = sbr.rel (%p141) target = $region28
    $region27: #{bottleneck_forward.4} parent=5 // pred_region
      %s145 = ssub.s32 %s10, 1
      %p146 = scmp.lt.s32.totalorder %s15, 1
      %s147 = scalar_select %p146, %s15, 1
      %s148 = smul.addr %s147, 8
      %s149 = smul.addr %s148, 8
      %s150 = scalar_lea.vmem %s0, %s149
      %p151 = pneg %p36
      %p152 = pneg %p33
      %p153 = pneg %p57
      %p154 = pneg %p54
      %p155 = pneg %p83
      %p156 = pneg %p80
      %p157 = scmp.lt.s32.totalorder %s15, 1
      %s158 = scalar_select %p157, %s15, 1
      %s159 = smul.addr %s158, 32
      %s160 = smul.addr %s159, 4
      %s161 = scalar_lea.vmem %s2, %s160
      %p162 = pneg %p109
      %p163 = pneg %p106
      %p164 = scmp.lt.s32.totalorder %s15, 1
      %s165 = scalar_select %p164, %s15, 1
      %s166 = smul.addr %s165, 2
      %s167 = scalar_lea.vmem %s3, %s166
      %p168 = scmp.lt.s32.totalorder %s15, 1
      %s169 = scalar_select %p168, %s15, 1
      %s170 = smul.addr %s169, 8
      %s171 = smul.addr %s170, 8
      %s172 = scalar_lea.vmem %s0, %s171
      %p173 = scmp.lt.s32.totalorder %s15, 1
      %s174 = scalar_select %p173, %s15, 1
      %s175 = smul.addr %s174, 32
      %s176 = smul.addr %s175, 4
      %s177 = scalar_lea.vmem %s2, %s176
      %p178 = scmp.lt.s32.totalorder %s15, 1
      %s179 = scalar_select %p178, %s15, 1
      %s180 = smul.addr %s179, 2
      %s181 = scalar_lea.vmem %s3, %s180
      %v183 = vld [vmem:[%s172] sm:$0xff]
      %v184 = vld [vmem:[%s172 + $0x8] sm:$0xff]
      %v185 = vld [vmem:[%s172 + $0x10] sm:$0xff]
      %v186 = vld [vmem:[%s172 + $0x18] sm:$0xff]
      %v187 = vld [vmem:[%s172 + $0x20] sm:$0xff]
      %v188 = vld [vmem:[%s172 + $0x28] sm:$0xff]
      %v189 = vld [vmem:[%s172 + $0x30] sm:$0xff]
      %v190 = vld [vmem:[%s172 + $0x38] sm:$0xff]
      %191 = vxpose.xlu0.b32.start [1/16] %v183, 128
      %192 = vxpose.xlu0.b32.cont [2/16] %v185, 128
      %193 = vxpose.xlu0.b32.cont [3/16] %v187, 128
      %194 = vxpose.xlu0.b32.cont [4/16] %v189, 128
      %195 = vxpose.xlu0.b32.cont [5/16] 0.0, 128
      %196 = vxpose.xlu0.b32.cont [6/16] 0.0, 128
      %197 = vxpose.xlu0.b32.cont [7/16] 0.0, 128
      %198 = vxpose.xlu0.b32.cont [8/16] 0.0, 128
      %199 = vxpose.xlu0.b32.cont [9/16] 0.0, 128
      %200 = vxpose.xlu0.b32.cont [10/16] 0.0, 128
      %201 = vxpose.xlu0.b32.cont [11/16] 0.0, 128
      %202 = vxpose.xlu0.b32.cont [12/16] 0.0, 128
      %203 = vxpose.xlu0.b32.cont [13/16] 0.0, 128
      %204 = vxpose.xlu0.b32.cont [14/16] 0.0, 128
      %205 = vxpose.xlu0.b32.cont [15/16] 0.0, 128
      %206 = vxpose.xlu0.b32.end [16/16] 0.0, 128
      %v207 = vpop.trf.xlu0
      %v208 = vpop.trf.xlu0
      %v209 = vpop.trf.xlu0
      %v210 = vpop.trf.xlu0
      %v211 = vpop.trf.xlu0
      %v212 = vpop.trf.xlu0
      %v213 = vpop.trf.xlu0
      %v214 = vpop.trf.xlu0
      %v215 = vpop.trf.xlu0
      %v216 = vpop.trf.xlu0
      %v217 = vpop.trf.xlu0
      %v218 = vpop.trf.xlu0
      %v219 = vpop.trf.xlu0
      %v220 = vpop.trf.xlu0
      %v221 = vpop.trf.xlu0
      %v222 = vpop.trf.xlu0
      %223 = vxpose.xlu0.b32.start [1/16] %v184, 128
      %224 = vxpose.xlu0.b32.cont [2/16] %v186, 128
      %225 = vxpose.xlu0.b32.cont [3/16] %v188, 128
      %226 = vxpose.xlu0.b32.cont [4/16] %v190, 128
      %227 = vxpose.xlu0.b32.cont [5/16] 0.0, 128
      %228 = vxpose.xlu0.b32.cont [6/16] 0.0, 128
      %229 = vxpose.xlu0.b32.cont [7/16] 0.0, 128
      %230 = vxpose.xlu0.b32.cont [8/16] 0.0, 128
      %231 = vxpose.xlu0.b32.cont [9/16] 0.0, 128
      %232 = vxpose.xlu0.b32.cont [10/16] 0.0, 128
      %233 = vxpose.xlu0.b32.cont [11/16] 0.0, 128
      %234 = vxpose.xlu0.b32.cont [12/16] 0.0, 128
      %235 = vxpose.xlu0.b32.cont [13/16] 0.0, 128
      %236 = vxpose.xlu0.b32.cont [14/16] 0.0, 128
      %237 = vxpose.xlu0.b32.cont [15/16] 0.0, 128
      %238 = vxpose.xlu0.b32.end [16/16] 0.0, 128
      %v239 = vpop.trf.xlu0
      %v240 = vpop.trf.xlu0
      %v241 = vpop.trf.xlu0
      %v242 = vpop.trf.xlu0
      %v243 = vpop.trf.xlu0
      %v244 = vpop.trf.xlu0
      %v245 = vpop.trf.xlu0
      %v246 = vpop.trf.xlu0
      %v247 = vpop.trf.xlu0
      %v248 = vpop.trf.xlu0
      %v249 = vpop.trf.xlu0
      %v250 = vpop.trf.xlu0
      %v251 = vpop.trf.xlu0
      %v252 = vpop.trf.xlu0
      %v253 = vpop.trf.xlu0
      %v254 = vpop.trf.xlu0
      %v255 = vpack.c.bf16 %v208, %v207
      %v256 = vpack.c.bf16 %v210, %v209
      %v257 = vpack.c.bf16 %v212, %v211
      %v258 = vpack.c.bf16 %v214, %v213
      %v259 = vpack.c.bf16 %v216, %v215
      %v260 = vpack.c.bf16 %v218, %v217
      %v261 = vpack.c.bf16 %v220, %v219
      %v262 = vpack.c.bf16 %v222, %v221
      %v263 = vpack.c.bf16 %v240, %v239
      %v264 = vpack.c.bf16 %v242, %v241
      %v265 = vpack.c.bf16 %v244, %v243
      %v266 = vpack.c.bf16 %v246, %v245
      %v267 = vpack.c.bf16 %v248, %v247
      %v268 = vpack.c.bf16 %v250, %v249
      %v269 = vpack.c.bf16 %v252, %v251
      %v270 = vpack.c.bf16 %v254, %v253
      %v271 = vld [vmem:[%s1] sm:$0xf]
      %v272 = vld [vmem:[%s1 + $0x4] sm:$0xf]
      %v273 = vld [vmem:[%s1 + $0x8] sm:$0xf]
      %v274 = vld [vmem:[%s1 + $0xc] sm:$0xf]
      %v279 = vunpack.c.l.b16 %v271
      %v280 = vunpack.c.l.b16 %v272
      %v281 = vunpack.c.l.b16 %v273
      %v282 = vunpack.c.l.b16 %v274
      %v283 = vpack.c.b16 %v280, %v279
      %v284 = vpack.c.b16 %v282, %v281
      %vm287 = vcmask 261120
      %v289 = vsel %vm287, %v255, 0
      %v292 = vsel %vm287, %v256, 0
      %v295 = vsel %vm287, %v257, 0
      %v298 = vsel %vm287, %v258, 0
      %v301 = vsel %vm287, %v259, 0
      %v304 = vsel %vm287, %v260, 0
      %v307 = vsel %vm287, %v261, 0
      %v310 = vsel %vm287, %v262, 0
      %v313 = vsel %vm287, %v263, 0
      %v316 = vsel %vm287, %v264, 0
      %v319 = vsel %vm287, %v265, 0
      %v322 = vsel %vm287, %v266, 0
      %v325 = vsel %vm287, %v267, 0
      %v328 = vsel %vm287, %v268, 0
      %v331 = vsel %vm287, %v269, 0
      %v334 = vsel %vm287, %v270, 0
      %336 = vmatpush.bf16.msra.mxu0 0
      %337 = vmatpush.bf16.msra.mxu0 0
      %338 = vmatpush.bf16.msra.mxu0 0
      %339 = vmatpush.bf16.msra.mxu0 0
      %340 = vmatpush.bf16.msra.mxu0 0
      %341 = vmatpush.bf16.msra.mxu0 0
      %342 = vmatpush.bf16.msra.mxu0 %v284
      %343 = vmatpush.bf16.msra.mxu0 %v283
      %344 = vmatmul.bf16.gmra.mxu0 %v289
      %v345 = vpop.f32.mrf.mxu0
      %v346 = vadd.f32 0.0, %v345
      %v347 = vpop.f32.mrf.mxu0
      %v348 = vadd.f32 0.0, %v347
      %349 = vmatmul.bf16.gmra.mxu0 %v292
      %v350 = vpop.f32.mrf.mxu0
      %v351 = vadd.f32 0.0, %v350
      %v352 = vpop.f32.mrf.mxu0
      %v353 = vadd.f32 0.0, %v352
      %354 = vmatmul.bf16.gmra.mxu0 %v295
      %v355 = vpop.f32.mrf.mxu0
      %v356 = vadd.f32 0.0, %v355
      %v357 = vpop.f32.mrf.mxu0
      %v358 = vadd.f32 0.0, %v357
      %359 = vmatmul.bf16.gmra.mxu0 %v298
      %v360 = vpop.f32.mrf.mxu0
      %v361 = vadd.f32 0.0, %v360
      %v362 = vpop.f32.mrf.mxu0
      %v363 = vadd.f32 0.0, %v362
      %364 = vmatmul.bf16.gmra.mxu0 %v301
      %v365 = vpop.f32.mrf.mxu0
      %v366 = vadd.f32 0.0, %v365
      %v367 = vpop.f32.mrf.mxu0
      %v368 = vadd.f32 0.0, %v367
      %369 = vmatmul.bf16.gmra.mxu0 %v304
      %v370 = vpop.f32.mrf.mxu0
      %v371 = vadd.f32 0.0, %v370
      %v372 = vpop.f32.mrf.mxu0
      %v373 = vadd.f32 0.0, %v372
      %374 = vmatmul.bf16.gmra.mxu0 %v307
      %v375 = vpop.f32.mrf.mxu0
      %v376 = vadd.f32 0.0, %v375
      %v377 = vpop.f32.mrf.mxu0
      %v378 = vadd.f32 0.0, %v377
      %379 = vmatmul.bf16.gmra.mxu0 %v310
      %v380 = vpop.f32.mrf.mxu0
      %v381 = vadd.f32 0.0, %v380
      %v382 = vpop.f32.mrf.mxu0
      %v383 = vadd.f32 0.0, %v382
      %384 = vmatmul.bf16.gmra.mxu0 %v313
      %v385 = vpop.f32.mrf.mxu0
      %v386 = vadd.f32 0.0, %v385
      %v387 = vpop.f32.mrf.mxu0
      %v388 = vadd.f32 0.0, %v387
      %389 = vmatmul.bf16.gmra.mxu0 %v316
      %v390 = vpop.f32.mrf.mxu0
      %v391 = vadd.f32 0.0, %v390
      %v392 = vpop.f32.mrf.mxu0
      %v393 = vadd.f32 0.0, %v392
      %394 = vmatmul.bf16.gmra.mxu0 %v319
      %v395 = vpop.f32.mrf.mxu0
      %v396 = vadd.f32 0.0, %v395
      %v397 = vpop.f32.mrf.mxu0
      %v398 = vadd.f32 0.0, %v397
      %399 = vmatmul.bf16.gmra.mxu0 %v322
      %v400 = vpop.f32.mrf.mxu0
      %v401 = vadd.f32 0.0, %v400
      %v402 = vpop.f32.mrf.mxu0
      %v403 = vadd.f32 0.0, %v402
      %404 = vmatmul.bf16.gmra.mxu0 %v325
      %v405 = vpop.f32.mrf.mxu0
      %v406 = vadd.f32 0.0, %v405
      %v407 = vpop.f32.mrf.mxu0
      %v408 = vadd.f32 0.0, %v407
      %409 = vmatmul.bf16.gmra.mxu0 %v328
      %v410 = vpop.f32.mrf.mxu0
      %v411 = vadd.f32 0.0, %v410
      %v412 = vpop.f32.mrf.mxu0
      %v413 = vadd.f32 0.0, %v412
      %414 = vmatmul.bf16.gmra.mxu0 %v331
      %v415 = vpop.f32.mrf.mxu0
      %v416 = vadd.f32 0.0, %v415
      %v417 = vpop.f32.mrf.mxu0
      %v418 = vadd.f32 0.0, %v417
      %419 = vmatmul.bf16.gmra.mxu0 %v334
      %v420 = vpop.f32.mrf.mxu0
      %v421 = vadd.f32 0.0, %v420
      %v422 = vpop.f32.mrf.mxu0
      %v423 = vadd.f32 0.0, %v422
      %424 = vdwg.mxu0
      %v425 = vpack.c.bf16 %v346, %v346
      %v426 = vpack.c.bf16 %v348, %v348
      %v427 = vpack.c.bf16 %v351, %v351
      %v428 = vpack.c.bf16 %v353, %v353
      %v429 = vpack.c.bf16 %v356, %v356
      %v430 = vpack.c.bf16 %v358, %v358
      %v431 = vpack.c.bf16 %v361, %v361
      %v432 = vpack.c.bf16 %v363, %v363
      %v433 = vpack.c.bf16 %v366, %v366
      %v434 = vpack.c.bf16 %v368, %v368
      %v435 = vpack.c.bf16 %v371, %v371
      %v436 = vpack.c.bf16 %v373, %v373
      %v437 = vpack.c.bf16 %v376, %v376
      %v438 = vpack.c.bf16 %v378, %v378
      %v439 = vpack.c.bf16 %v381, %v381
      %v440 = vpack.c.bf16 %v383, %v383
      %v441 = vpack.c.bf16 %v386, %v386
      %v442 = vpack.c.bf16 %v388, %v388
      %v443 = vpack.c.bf16 %v391, %v391
      %v444 = vpack.c.bf16 %v393, %v393
      %v445 = vpack.c.bf16 %v396, %v396
      %v446 = vpack.c.bf16 %v398, %v398
      %v447 = vpack.c.bf16 %v401, %v401
      %v448 = vpack.c.bf16 %v403, %v403
      %v449 = vpack.c.bf16 %v406, %v406
      %v450 = vpack.c.bf16 %v408, %v408
      %v451 = vpack.c.bf16 %v411, %v411
      %v452 = vpack.c.bf16 %v413, %v413
      %v453 = vpack.c.bf16 %v416, %v416
      %v454 = vpack.c.bf16 %v418, %v418
      %v455 = vpack.c.bf16 %v421, %v421
      %v456 = vpack.c.bf16 %v423, %v423
      %vm457 = vcmask 60416
      %458 = vst.msk [vmem:[%s177] sm:$0xf] %vm457, %v425
      %459 = vst.msk [vmem:[%s177 + $0x4] sm:$0xf] %vm457, %v426
      %460 = vst.msk [vmem:[%s177 + $0x8] sm:$0xf] %vm457, %v427
      %461 = vst.msk [vmem:[%s177 + $0xc] sm:$0xf] %vm457, %v428
      %462 = vst.msk [vmem:[%s177 + $0x10] sm:$0xf] %vm457, %v429
      %463 = vst.msk [vmem:[%s177 + $0x14] sm:$0xf] %vm457, %v430
      %464 = vst.msk [vmem:[%s177 + $0x18] sm:$0xf] %vm457, %v431
      %465 = vst.msk [vmem:[%s177 + $0x1c] sm:$0xf] %vm457, %v432
      %466 = vst.msk [vmem:[%s177 + $0x20] sm:$0xf] %vm457, %v433
      %467 = vst.msk [vmem:[%s177 + $0x24] sm:$0xf] %vm457, %v434
      %468 = vst.msk [vmem:[%s177 + $0x28] sm:$0xf] %vm457, %v435
      %469 = vst.msk [vmem:[%s177 + $0x2c] sm:$0xf] %vm457, %v436
      %470 = vst.msk [vmem:[%s177 + $0x30] sm:$0xf] %vm457, %v437
      %471 = vst.msk [vmem:[%s177 + $0x34] sm:$0xf] %vm457, %v438
      %472 = vst.msk [vmem:[%s177 + $0x38] sm:$0xf] %vm457, %v439
      %473 = vst.msk [vmem:[%s177 + $0x3c] sm:$0xf] %vm457, %v440
      %474 = vst.msk [vmem:[%s177 + $0x40] sm:$0xf] %vm457, %v441
      %475 = vst.msk [vmem:[%s177 + $0x44] sm:$0xf] %vm457, %v442
      %476 = vst.msk [vmem:[%s177 + $0x48] sm:$0xf] %vm457, %v443
      %477 = vst.msk [vmem:[%s177 + $0x4c] sm:$0xf] %vm457, %v444
      %478 = vst.msk [vmem:[%s177 + $0x50] sm:$0xf] %vm457, %v445
      %479 = vst.msk [vmem:[%s177 + $0x54] sm:$0xf] %vm457, %v446
      %480 = vst.msk [vmem:[%s177 + $0x58] sm:$0xf] %vm457, %v447
      %481 = vst.msk [vmem:[%s177 + $0x5c] sm:$0xf] %vm457, %v448
      %482 = vst.msk [vmem:[%s177 + $0x60] sm:$0xf] %vm457, %v449
      %483 = vst.msk [vmem:[%s177 + $0x64] sm:$0xf] %vm457, %v450
      %484 = vst.msk [vmem:[%s177 + $0x68] sm:$0xf] %vm457, %v451
      %485 = vst.msk [vmem:[%s177 + $0x6c] sm:$0xf] %vm457, %v452
      %486 = vst.msk [vmem:[%s177 + $0x70] sm:$0xf] %vm457, %v453
      %487 = vst.msk [vmem:[%s177 + $0x74] sm:$0xf] %vm457, %v454
      %488 = vst.msk [vmem:[%s177 + $0x78] sm:$0xf] %vm457, %v455
      %489 = vst.msk [vmem:[%s177 + $0x7c] sm:$0xf] %vm457, %v456
      %vm490 = vcmask 64512
      %v491 = vsel %vm490, %v346, 0.0
      %v492 = vsel %vm490, %v348, 0.0
      %v493 = vadd.f32 %v491, %v492
      %v494 = vsel %vm490, %v351, 0.0
      %v495 = vadd.f32 %v493, %v494
      %v496 = vsel %vm490, %v353, 0.0
      %v497 = vadd.f32 %v495, %v496
      %v498 = vsel %vm490, %v356, 0.0
      %v499 = vadd.f32 %v497, %v498
      %v500 = vsel %vm490, %v358, 0.0
      %v501 = vadd.f32 %v499, %v500
      %v502 = vsel %vm490, %v361, 0.0
      %v503 = vadd.f32 %v501, %v502
      %v504 = vsel %vm490, %v363, 0.0
      %v505 = vadd.f32 %v503, %v504
      %v506 = vsel %vm490, %v366, 0.0
      %v507 = vadd.f32 %v505, %v506
      %v508 = vsel %vm490, %v368, 0.0
      %v509 = vadd.f32 %v507, %v508
      %v510 = vsel %vm490, %v371, 0.0
      %v511 = vadd.f32 %v509, %v510
      %v512 = vsel %vm490, %v373, 0.0
      %v513 = vadd.f32 %v511, %v512
      %v514 = vsel %vm490, %v376, 0.0
      %v515 = vadd.f32 %v513, %v514
      %v516 = vsel %vm490, %v378, 0.0
      %v517 = vadd.f32 %v515, %v516
      %v518 = vsel %vm490, %v381, 0.0
      %v519 = vadd.f32 %v517, %v518
      %v520 = vsel %vm490, %v383, 0.0
      %v521 = vadd.f32 %v519, %v520
      %v522 = vsel %vm490, %v386, 0.0
      %v523 = vadd.f32 %v521, %v522
      %v524 = vsel %vm490, %v388, 0.0
      %v525 = vadd.f32 %v523, %v524
      %v526 = vsel %vm490, %v391, 0.0
      %v527 = vadd.f32 %v525, %v526
      %v528 = vsel %vm490, %v393, 0.0
      %v529 = vadd.f32 %v527, %v528
      %v530 = vsel %vm490, %v396, 0.0
      %v531 = vadd.f32 %v529, %v530
      %v532 = vsel %vm490, %v398, 0.0
      %v533 = vadd.f32 %v531, %v532
      %v534 = vsel %vm490, %v401, 0.0
      %v535 = vadd.f32 %v533, %v534
      %v536 = vsel %vm490, %v403, 0.0
      %v537 = vadd.f32 %v535, %v536
      %v538 = vsel %vm490, %v406, 0.0
      %v539 = vadd.f32 %v537, %v538
      %v540 = vsel %vm490, %v408, 0.0
      %v541 = vadd.f32 %v539, %v540
      %v542 = vsel %vm490, %v411, 0.0
      %v543 = vadd.f32 %v541, %v542
      %v544 = vsel %vm490, %v413, 0.0
      %v545 = vadd.f32 %v543, %v544
      %v546 = vsel %vm490, %v416, 0.0
      %v547 = vadd.f32 %v545, %v546
      %v548 = vsel %vm490, %v418, 0.0
      %v549 = vadd.f32 %v547, %v548
      %v550 = vsel %vm490, %v421, 0.0
      %v551 = vadd.f32 %v549, %v550
      %v552 = vsel %vm490, %v423, 0.0
      %v553 = vadd.f32 %v551, %v552
      %v554 = vrot.slane %v553, 4
      %v555 = vadd.f32 %v553, %v554
      %v556 = vrot.slane %v555, 2
      %v557 = vadd.f32 %v555, %v556
      %v558 = vrot.slane %v557, 1
      %v559 = vadd.f32 %v557, %v558
      %v560 = vmul.f32 %v346, %v346
      %v561 = vmul.f32 %v348, %v348
      %v562 = vmul.f32 %v351, %v351
      %v563 = vmul.f32 %v353, %v353
      %v564 = vmul.f32 %v356, %v356
      %v565 = vmul.f32 %v358, %v358
      %v566 = vmul.f32 %v361, %v361
      %v567 = vmul.f32 %v363, %v363
      %v568 = vmul.f32 %v366, %v366
      %v569 = vmul.f32 %v368, %v368
      %v570 = vmul.f32 %v371, %v371
      %v571 = vmul.f32 %v373, %v373
      %v572 = vmul.f32 %v376, %v376
      %v573 = vmul.f32 %v378, %v378
      %v574 = vmul.f32 %v381, %v381
      %v575 = vmul.f32 %v383, %v383
      %v576 = vmul.f32 %v386, %v386
      %v577 = vmul.f32 %v388, %v388
      %v578 = vmul.f32 %v391, %v391
      %v579 = vmul.f32 %v393, %v393
      %v580 = vmul.f32 %v396, %v396
      %v581 = vmul.f32 %v398, %v398
      %v582 = vmul.f32 %v401, %v401
      %v583 = vmul.f32 %v403, %v403
      %v584 = vmul.f32 %v406, %v406
      %v585 = vmul.f32 %v408, %v408
      %v586 = vmul.f32 %v411, %v411
      %v587 = vmul.f32 %v413, %v413
      %v588 = vmul.f32 %v416, %v416
      %v589 = vmul.f32 %v418, %v418
      %v590 = vmul.f32 %v421, %v421
      %v591 = vmul.f32 %v423, %v423
      %v592 = vsel %vm490, %v560, 0.0
      %v593 = vsel %vm490, %v561, 0.0
      %v594 = vadd.f32 %v592, %v593
      %v595 = vsel %vm490, %v562, 0.0
      %v596 = vadd.f32 %v594, %v595
      %v597 = vsel %vm490, %v563, 0.0
      %v598 = vadd.f32 %v596, %v597
      %v599 = vsel %vm490, %v564, 0.0
      %v600 = vadd.f32 %v598, %v599
      %v601 = vsel %vm490, %v565, 0.0
      %v602 = vadd.f32 %v600, %v601
      %v603 = vsel %vm490, %v566, 0.0
      %v604 = vadd.f32 %v602, %v603
      %v605 = vsel %vm490, %v567, 0.0
      %v606 = vadd.f32 %v604, %v605
      %v607 = vsel %vm490, %v568, 0.0
      %v608 = vadd.f32 %v606, %v607
      %v609 = vsel %vm490, %v569, 0.0
      %v610 = vadd.f32 %v608, %v609
      %v611 = vsel %vm490, %v570, 0.0
      %v612 = vadd.f32 %v610, %v611
      %v613 = vsel %vm490, %v571, 0.0
      %v614 = vadd.f32 %v612, %v613
      %v615 = vsel %vm490, %v572, 0.0
      %v616 = vadd.f32 %v614, %v615
      %v617 = vsel %vm490, %v573, 0.0
      %v618 = vadd.f32 %v616, %v617
      %v619 = vsel %vm490, %v574, 0.0
      %v620 = vadd.f32 %v618, %v619
      %v621 = vsel %vm490, %v575, 0.0
      %v622 = vadd.f32 %v620, %v621
      %v623 = vsel %vm490, %v576, 0.0
      %v624 = vadd.f32 %v622, %v623
      %v625 = vsel %vm490, %v577, 0.0
      %v626 = vadd.f32 %v624, %v625
      %v627 = vsel %vm490, %v578, 0.0
      %v628 = vadd.f32 %v626, %v627
      %v629 = vsel %vm490, %v579, 0.0
      %v630 = vadd.f32 %v628, %v629
      %v631 = vsel %vm490, %v580, 0.0
      %v632 = vadd.f32 %v630, %v631
      %v633 = vsel %vm490, %v581, 0.0
      %v634 = vadd.f32 %v632, %v633
      %v635 = vsel %vm490, %v582, 0.0
      %v636 = vadd.f32 %v634, %v635
      %v637 = vsel %vm490, %v583, 0.0
      %v638 = vadd.f32 %v636, %v637
      %v639 = vsel %vm490, %v584, 0.0
      %v640 = vadd.f32 %v638, %v639
      %v641 = vsel %vm490, %v585, 0.0
      %v642 = vadd.f32 %v640, %v641
      %v643 = vsel %vm490, %v586, 0.0
      %v644 = vadd.f32 %v642, %v643
      %v645 = vsel %vm490, %v587, 0.0
      %v646 = vadd.f32 %v644, %v645
      %v647 = vsel %vm490, %v588, 0.0
      %v648 = vadd.f32 %v646, %v647
      %v649 = vsel %vm490, %v589, 0.0
      %v650 = vadd.f32 %v648, %v649
      %v651 = vsel %vm490, %v590, 0.0
      %v652 = vadd.f32 %v650, %v651
      %v653 = vsel %vm490, %v591, 0.0
      %v654 = vadd.f32 %v652, %v653
      %v655 = vrot.slane %v654, 4
      %v656 = vadd.f32 %v654, %v655
      %v657 = vrot.slane %v656, 2
      %v658 = vadd.f32 %v656, %v657
      %v659 = vrot.slane %v658, 1
      %v660 = vadd.f32 %v658, %v659
      %vm661 = vcmask 1040384
      %v662 = vsel %vm661, %v559, %v660
      %vm663 = vcmask 58368
      %664 = vst.msk [vmem:[%s181] sm:$0x3] %vm663, %v662
      %p665 = scmp.lt.s32.totalorder %s15, 1
      %s666 = scalar_select %p665, %s15, 1
      %s667 = smul.addr %s666, 32
      %s668 = smul.addr %s667, 4
      %s669 = scalar_lea.vmem %s2, %s668
      %p670 = scmp.lt.s32.totalorder %s15, 1
      %s671 = scalar_select %p670, %s15, 1
      %s672 = smul.addr %s671, 2
      %s673 = scalar_lea.vmem %s3, %s672
      // Predicated region
      $region29: #{bottleneck_forward.4} parent=27 // pred_check
        %p674 = pneg %p80
      $region30: #{bottleneck_forward.4} parent=27 // pred_check_branch
        %676 = sbr.rel (%p674) target = $region32
      $region31: #{bottleneck_forward.4} parent=27 // pred_region
        _
      $region32: #{bottleneck_forward.4} parent=27 // pred_fallthru
        _
      // Predicated region
      $region33: #{bottleneck_forward.4} parent=27 // pred_check
        %p677 = pneg %p106
      $region34: #{bottleneck_forward.4} parent=27 // pred_check_branch
        %679 = sbr.rel (%p677) target = $region36
      $region35: #{bottleneck_forward.4} parent=27 // pred_region
        _
      $region36: #{bottleneck_forward.4} parent=27 // pred_fallthru
        _
    $region28: #{bottleneck_forward.4} parent=5 // pred_fallthru
      _
    %p680 = scmp.le.s32.totalorder 2, %s10
    // Predicated region
    $region37: #{bottleneck_forward.4} parent=5 // pred_check
      %p681 = pneg %p680
    $region38: #{bottleneck_forward.4} parent=5 // pred_check_branch
      %683 = sbr.rel (%p681) target = $region40
    $region39: #{bottleneck_forward.4} parent=5 // pred_region
      %s684 = ssub.s32 %s10, 2
      // Predicated region
      $region41: #{bottleneck_forward.4} parent=39 // pred_check
        %p685 = pneg %p86
      $region42: #{bottleneck_forward.4} parent=39 // pred_check_branch
        %687 = sbr.rel (%p685) target = $region44
      $region43: #{bottleneck_forward.4} parent=39 // pred_region
        %p688 = scmp.lt.s32.totalorder %s16, 1
        %s689 = scalar_select %p688, %s16, 1
        %s690 = smul.addr %s689, 32
        %s691 = smul.addr %s690, 4
        %s692 = scalar_lea.vmem %s2, %s691
      $region44: #{bottleneck_forward.4} parent=39 // pred_fallthru
        _
      // Predicated region
      $region45: #{bottleneck_forward.4} parent=39 // pred_check
        %p693 = pneg %p112
      $region46: #{bottleneck_forward.4} parent=39 // pred_check_branch
        %695 = sbr.rel (%p693) target = $region48
      $region47: #{bottleneck_forward.4} parent=39 // pred_region
        %p696 = scmp.lt.s32.totalorder %s16, 1
        %s697 = scalar_select %p696, %s16, 1
        %s698 = smul.addr %s697, 2
        %s699 = scalar_lea.vmem %s3, %s698
      $region48: #{bottleneck_forward.4} parent=39 // pred_fallthru
        _
    $region40: #{bottleneck_forward.4} parent=5 // pred_fallthru
      _
  $region6: #{bottleneck_forward.4} parent=0 // loop_footer
    %s14 = sadd.s32 1, %s10
  $region7: #{bottleneck_forward.4} parent=0 // loop_footer_branch
    %9 = sbr.rel target = $region3
  $region8: #{bottleneck_forward.4} parent=0 // loop_exit
    _

// kernel: bottleneck_forward.7
$region0: #{bottleneck_forward.7}
  #allocation0 [shape = 'u32[]', space=smem, size = 0x4, offset = 0x4, fixed_abs, tag = 'smem constant byte address 0x4 - core index']
  #allocation1 [shape = 'u32[72,128]{1,0:T(1,128)}', space=vmem, size = 0x9000, scoped, tag = 'internal scratch']
  %s0 = inlined_call_operand.vmem [shape: bf16[2,256,32], index: 0, kind: input, shape index: {}]
  %s1 = inlined_call_operand.vmem [shape: f32[2,32,256], index: 1, kind: input, shape index: {}]
  %s2 = inlined_call_operand.vmem [shape: f32[1,32], index: 2, kind: input, shape index: {}]
  %s3 = inlined_call_operand.vmem [shape: f32[1,32], index: 3, kind: input, shape index: {}]
  %s4 = inlined_call_operand.vmem [shape: f32[2,32,256], index: 4, kind: output, shape index: {}]
  %s5 = sld [smem:[#allocation0]]
  $region49: #{bottleneck_forward.7} parent=0
    _
  %s7 = ssub.s32 1, %s5
  %s8 = scalar_select 0, %s7, %s5
  loop: start=0, step=1, limit=4
  $region2: #{bottleneck_forward.7} parent=0 // loop_pre_header
    _
  $region3: #{bottleneck_forward.7} parent=0 // loop_header
    %s10 = sphi 0, %s14
    %p11 = scmp.ge.s32.totalorder %s10, 4
    %s20 = sphi 0, %s22
    %s23 = sphi 0, %s20
    %s24 = sphi 0, %s23
    %s40 = sphi 0, %s24
    %s46 = sphi 0, %s48
    %s49 = sphi 0, %s46
    %s50 = sphi 0, %s49
    %s66 = sphi 0, %s50
    %s70 = sphi 0, %s70
    %s72 = sphi 0, %s70
    %s73 = sphi 0, %s72
    %s87 = sphi 0, %s73
    %s91 = sphi 0, %s91
    %s93 = sphi 0, %s91
    %s94 = sphi 0, %s93
    %s108 = sphi 0, %s94
    %s114 = sphi 0, %s116
    %s117 = sphi 0, %s114
    %s118 = sphi 0, %s117
    %s134 = sphi 0, %s118
  $region4: #{bottleneck_forward.7} parent=0 // loop_header_branch
    %13 = sbr.rel (%p11) target = $region8
  $region5: #{bottleneck_forward.7} parent=0 // loop_body
    %s15 = ssub.s32 %s10, 1
    %s16 = ssub.s32 %s10, 2
    %s17 = sadd.s32 %s10, 1
    %s18 = ssub.s32 %s10, %s17
    %p19 = scmp.eq.s32.totalorder %s18, 0
    %s21 = sadd.s32 %s20, 1
    %s22 = scalar_select %p19, %s20, %s21
    %p25 = pneg %p19
    %p26 = scmp.eq.s32.totalorder %s10, 1
    %p27 = por %p25, %p26
    %p28 = scmp.ne.s32.totalorder %s20, %s23
    %p29 = scmp.eq.s32.totalorder %s10, 0
    %p30 = por %p28, %p29
    %p31 = scmp.ne.s32.totalorder %s20, %s23
    %p32 = scmp.eq.s32.totalorder %s15, 1
    %p33 = por %p31, %p32
    %p34 = scmp.ne.s32.totalorder %s23, %s24
    %p35 = scmp.eq.s32.totalorder %s15, 0
    %p36 = por %p34, %p35
    %p37 = scmp.ne.s32.totalorder %s23, %s24
    %p38 = scmp.eq.s32.totalorder %s16, 1
    %p39 = por %p37, %p38
    %p41 = scmp.ne.s32.totalorder %s24, %s40
    %p42 = scmp.eq.s32.totalorder %s16, 0
    %p43 = por %p41, %p42
    %s44 = ssub.s32 %s10, %s17
    %p45 = scmp.eq.s32.totalorder %s44, 0
    %s47 = sadd.s32 %s46, 1
    %s48 = scalar_select %p45, %s46, %s47
    %p51 = pneg %p45
    %p52 = scmp.eq.s32.totalorder %s10, 1
    %p53 = por %p51, %p52
    %p54 = scmp.ne.s32.totalorder %s46, %s49
    %p55 = scmp.eq.s32.totalorder %s10, 0
    %p56 = por %p54, %p55
    %p57 = scmp.ne.s32.totalorder %s46, %s49
    %p58 = scmp.eq.s32.totalorder %s15, 1
    %p59 = por %p57, %p58
    %p60 = scmp.ne.s32.totalorder %s49, %s50
    %p61 = scmp.eq.s32.totalorder %s15, 0
    %p62 = por %p60, %p61
    %p63 = scmp.ne.s32.totalorder %s49, %s50
    %p64 = scmp.eq.s32.totalorder %s16, 1
    %p65 = por %p63, %p64
    %p67 = scmp.ne.s32.totalorder %s50, %s66
    %p68 = scmp.eq.s32.totalorder %s16, 0
    %p69 = por %p67, %p68
    %s71 = sadd.s32 %s70, 1
    %p74 = scmp.eq.s32.totalorder %s10, 1
    %p75 = scmp.ne.s32.totalorder %s70, %s72
    %p76 = scmp.eq.s32.totalorder %s10, 0
    %p77 = por %p75, %p76
    %p78 = scmp.ne.s32.totalorder %s70, %s72
    %p79 = scmp.eq.s32.totalorder %s15, 1
    %p80 = por %p78, %p79
    %p81 = scmp.ne.s32.totalorder %s72, %s73
    %p82 = scmp.eq.s32.totalorder %s15, 0
    %p83 = por %p81, %p82
    %p84 = scmp.ne.s32.totalorder %s72, %s73
    %p85 = scmp.eq.s32.totalorder %s16, 1
    %p86 = por %p84, %p85
    %p88 = scmp.ne.s32.totalorder %s73, %s87
    %p89 = scmp.eq.s32.totalorder %s16, 0
    %p90 = por %p88, %p89
    %s92 = sadd.s32 %s91, 1
    %p95 = scmp.eq.s32.totalorder %s10, 1
    %p96 = scmp.ne.s32.totalorder %s91, %s93
    %p97 = scmp.eq.s32.totalorder %s10, 0
    %p98 = por %p96, %p97
    %p99 = scmp.ne.s32.totalorder %s91, %s93
    %p100 = scmp.eq.s32.totalorder %s15, 1
    %p101 = por %p99, %p100
    %p102 = scmp.ne.s32.totalorder %s93, %s94
    %p103 = scmp.eq.s32.totalorder %s15, 0
    %p104 = por %p102, %p103
    %p105 = scmp.ne.s32.totalorder %s93, %s94
    %p106 = scmp.eq.s32.totalorder %s16, 1
    %p107 = por %p105, %p106
    %p109 = scmp.ne.s32.totalorder %s94, %s108
    %p110 = scmp.eq.s32.totalorder %s16, 0
    %p111 = por %p109, %p110
    %s112 = ssub.s32 %s10, %s17
    %p113 = scmp.eq.s32.totalorder %s112, 0
    %s115 = sadd.s32 %s114, 1
    %s116 = scalar_select %p113, %s114, %s115
    %p119 = pneg %p113
    %p120 = scmp.eq.s32.totalorder %s10, 1
    %p121 = por %p119, %p120
    %p122 = scmp.ne.s32.totalorder %s114, %s117
    %p123 = scmp.eq.s32.totalorder %s10, 0
    %p124 = por %p122, %p123
    %p125 = scmp.ne.s32.totalorder %s114, %s117
    %p126 = scmp.eq.s32.totalorder %s15, 1
    %p127 = por %p125, %p126
    %p128 = scmp.ne.s32.totalorder %s117, %s118
    %p129 = scmp.eq.s32.totalorder %s15, 0
    %p130 = por %p128, %p129
    %p131 = scmp.ne.s32.totalorder %s117, %s118
    %p132 = scmp.eq.s32.totalorder %s16, 1
    %p133 = por %p131, %p132
    %p135 = scmp.ne.s32.totalorder %s118, %s134
    %p136 = scmp.eq.s32.totalorder %s16, 0
    %p137 = por %p135, %p136
    %p138 = scmp.le.s32.totalorder 1, %s10
    %p139 = scmp.lt.s32.totalorder %s10, 3
    %p140 = pnand %p138, %p139
    %p141 = pneg %p140
    // Predicated region
    $region9: #{bottleneck_forward.7} parent=5 // pred_check
      _
    $region10: #{bottleneck_forward.7} parent=5 // pred_check_branch
      %143 = sbr.rel (%p140) target = $region12
    $region11: #{bottleneck_forward.7} parent=5 // pred_region
      %s144 = ssub.s32 %s10, 1
      // Predicated region
      $region13: #{bottleneck_forward.7} parent=11 // pred_check
        %p145 = pneg %p83
      $region14: #{bottleneck_forward.7} parent=11 // pred_check_branch
        %147 = sbr.rel (%p145) target = $region16
      $region15: #{bottleneck_forward.7} parent=11 // pred_region
        _
      $region16: #{bottleneck_forward.7} parent=11 // pred_fallthru
        _
      // Predicated region
      $region17: #{bottleneck_forward.7} parent=11 // pred_check
        %p148 = pneg %p104
      $region18: #{bottleneck_forward.7} parent=11 // pred_check_branch
        %150 = sbr.rel (%p148) target = $region20
      $region19: #{bottleneck_forward.7} parent=11 // pred_region
        _
      $region20: #{bottleneck_forward.7} parent=11 // pred_fallthru
        _
    $region12: #{bottleneck_forward.7} parent=5 // pred_fallthru
      _
    %p151 = scmp.lt.s32.totalorder %s10, 2
    // Predicated region
    $region21: #{bottleneck_forward.7} parent=5 // pred_check
      %p152 = pneg %p151
    $region22: #{bottleneck_forward.7} parent=5 // pred_check_branch
      %154 = sbr.rel (%p152) target = $region24
    $region23: #{bottleneck_forward.7} parent=5 // pred_region
      // Predicated region
      $region25: #{bottleneck_forward.7} parent=23 // pred_check
        %p155 = pneg %p30
      $region26: #{bottleneck_forward.7} parent=23 // pred_check_branch
        %157 = sbr.rel (%p155) target = $region28
      $region27: #{bottleneck_forward.7} parent=23 // pred_region
        %p158 = scmp.lt.s32.totalorder %s10, 1
        %s159 = scalar_select %p158, %s10, 1
        %s160 = smul.addr %s159, 32
        %s161 = smul.addr %s160, 4
        %s162 = scalar_lea.vmem %s0, %s161
      $region28: #{bottleneck_forward.7} parent=23 // pred_fallthru
        _
      // Predicated region
      $region29: #{bottleneck_forward.7} parent=23 // pred_check
        %p163 = pneg %p56
      $region30: #{bottleneck_forward.7} parent=23 // pred_check_branch
        %165 = sbr.rel (%p163) target = $region32
      $region31: #{bottleneck_forward.7} parent=23 // pred_region
        %p166 = scmp.lt.s32.totalorder %s10, 1
        %s167 = scalar_select %p166, %s10, 1
        %s168 = smul.addr %s167, 8
        %s169 = smul.addr %s168, 8
        %s170 = scalar_lea.vmem %s1, %s169
      $region32: #{bottleneck_forward.7} parent=23 // pred_fallthru
        _
    $region24: #{bottleneck_forward.7} parent=5 // pred_fallthru
      _
    %p171 = scmp.le.s32.totalorder 1, %s10
    %p172 = scmp.lt.s32.totalorder %s10, 3
    %p173 = pnand %p171, %p172
    %p174 = pneg %p173
    // Predicated region
    $region33: #{bottleneck_forward.7} parent=5 // pred_check
      _
    $region34: #{bottleneck_forward.7} parent=5 // pred_check_branch
      %176 = sbr.rel (%p173) target = $region36
    $region35: #{bottleneck_forward.7} parent=5 // pred_region
      %s177 = ssub.s32 %s10, 1
      %p178 = scmp.lt.s32.totalorder %s15, 1
      %s179 = scalar_select %p178, %s15, 1
      %s180 = smul.addr %s179, 32
      %s181 = smul.addr %s180, 4
      %s182 = scalar_lea.vmem %s0, %s181
      %p183 = pneg %p36
      %p184 = pneg %p33
      %p185 = scmp.lt.s32.totalorder %s15, 1
      %s186 = scalar_select %p185, %s15, 1
      %s187 = smul.addr %s186, 8
      %s188 = smul.addr %s187, 8
      %s189 = scalar_lea.vmem %s1, %s188
      %p190 = pneg %p62
      %p191 = pneg %p59
      %p192 = pneg %p83
      %p193 = pneg %p80
      %p194 = pneg %p104
      %p195 = pneg %p101
      %p196 = pneg %p130
      %p197 = pneg %p127
      %p198 = scmp.lt.s32.totalorder %s15, 1
      %s199 = scalar_select %p198, %s15, 1
      %s200 = smul.addr %s199, 8
      %s201 = smul.addr %s200, 8
      %s202 = scalar_lea.vmem %s4, %s201
      %p203 = scmp.lt.s32.totalorder %s15, 1
      %s204 = scalar_select %p203, %s15, 1
      %s205 = smul.addr %s204, 32
      %s206 = smul.addr %s205, 4
      %s207 = scalar_lea.vmem %s0, %s206
      %p208 = scmp.lt.s32.totalorder %s15, 1
      %s209 = scalar_select %p208, %s15, 1
      %s210 = smul.addr %s209, 8
      %s211 = smul.addr %s210, 8
      %s212 = scalar_lea.vmem %s1, %s211
      %p213 = scmp.lt.s32.totalorder %s15, 1
      %s214 = scalar_select %p213, %s15, 1
      %s215 = smul.addr %s214, 8
      %s216 = smul.addr %s215, 8
      %s217 = scalar_lea.vmem %s4, %s216
      %v218 = vld [vmem:[%s207] sm:$0xf]
      %v219 = vld [vmem:[%s207 + $0x4] sm:$0xf]
      %v220 = vld [vmem:[%s207 + $0x8] sm:$0xf]
      %v221 = vld [vmem:[%s207 + $0xc] sm:$0xf]
      %v222 = vld [vmem:[%s207 + $0x10] sm:$0xf]
      %v223 = vld [vmem:[%s207 + $0x14] sm:$0xf]
      %v224 = vld [vmem:[%s207 + $0x18] sm:$0xf]
      %v225 = vld [vmem:[%s207 + $0x1c] sm:$0xf]
      %v226 = vld [vmem:[%s207 + $0x20] sm:$0xf]
      %v227 = vld [vmem:[%s207 + $0x24] sm:$0xf]
      %v228 = vld [vmem:[%s207 + $0x28] sm:$0xf]
      %v229 = vld [vmem:[%s207 + $0x2c] sm:$0xf]
      %v230 = vld [vmem:[%s207 + $0x30] sm:$0xf]
      %v231 = vld [vmem:[%s207 + $0x34] sm:$0xf]
      %v232 = vld [vmem:[%s207 + $0x38] sm:$0xf]
      %v233 = vld [vmem:[%s207 + $0x3c] sm:$0xf]
      %v234 = vld [vmem:[%s207 + $0x40] sm:$0xf]
      %v235 = vld [vmem:[%s207 + $0x44] sm:$0xf]
      %v236 = vld [vmem:[%s207 + $0x48] sm:$0xf]
      %v237 = vld [vmem:[%s207 + $0x4c] sm:$0xf]
      %v238 = vld [vmem:[%s207 + $0x50] sm:$0xf]
      %v239 = vld [vmem:[%s207 + $0x54] sm:$0xf]
      %v240 = vld [vmem:[%s207 + $0x58] sm:$0xf]
      %v241 = vld [vmem:[%s207 + $0x5c] sm:$0xf]
      %v242 = vld [vmem:[%s207 + $0x60] sm:$0xf]
      %v243 = vld [vmem:[%s207 + $0x64] sm:$0xf]
      %v244 = vld [vmem:[%s207 + $0x68] sm:$0xf]
      %v245 = vld [vmem:[%s207 + $0x6c] sm:$0xf]
      %v246 = vld [vmem:[%s207 + $0x70] sm:$0xf]
      %v247 = vld [vmem:[%s207 + $0x74] sm:$0xf]
      %v248 = vld [vmem:[%s207 + $0x78] sm:$0xf]
      %v249 = vld [vmem:[%s207 + $0x7c] sm:$0xf]
      %v250 = vunpack.c.l.bf16 %v218
      %v251 = vunpack.c.l.bf16 %v219
      %v252 = vunpack.c.l.bf16 %v220
      %v253 = vunpack.c.l.bf16 %v221
      %v254 = vunpack.c.l.bf16 %v222
      %v255 = vunpack.c.l.bf16 %v223
      %v256 = vunpack.c.l.bf16 %v224
      %v257 = vunpack.c.l.bf16 %v225
      %v258 = vunpack.c.l.bf16 %v226
      %v259 = vunpack.c.l.bf16 %v227
      %v260 = vunpack.c.l.bf16 %v228
      %v261 = vunpack.c.l.bf16 %v229
      %v262 = vunpack.c.l.bf16 %v230
      %v263 = vunpack.c.l.bf16 %v231
      %v264 = vunpack.c.l.bf16 %v232
      %v265 = vunpack.c.l.bf16 %v233
      %v266 = vunpack.c.l.bf16 %v234
      %v267 = vunpack.c.l.bf16 %v235
      %v268 = vunpack.c.l.bf16 %v236
      %v269 = vunpack.c.l.bf16 %v237
      %v270 = vunpack.c.l.bf16 %v238
      %v271 = vunpack.c.l.bf16 %v239
      %v272 = vunpack.c.l.bf16 %v240
      %v273 = vunpack.c.l.bf16 %v241
      %v274 = vunpack.c.l.bf16 %v242
      %v275 = vunpack.c.l.bf16 %v243
      %v276 = vunpack.c.l.bf16 %v244
      %v277 = vunpack.c.l.bf16 %v245
      %v278 = vunpack.c.l.bf16 %v246
      %v279 = vunpack.c.l.bf16 %v247
      %v280 = vunpack.c.l.bf16 %v248
      %v281 = vunpack.c.l.bf16 %v249
      %v282 = vld [vmem:[%s2] sm:$0x1]
      %v284 = vperm.slane %v282, 0
      %v286 = vmul.f32 %v250, %v284
      %v287 = vmul.f32 %v251, %v284
      %v288 = vmul.f32 %v252, %v284
      %v289 = vmul.f32 %v253, %v284
      %v290 = vmul.f32 %v254, %v284
      %v291 = vmul.f32 %v255, %v284
      %v292 = vmul.f32 %v256, %v284
      %v293 = vmul.f32 %v257, %v284
      %v294 = vmul.f32 %v258, %v284
      %v295 = vmul.f32 %v259, %v284
      %v296 = vmul.f32 %v260, %v284
      %v297 = vmul.f32 %v261, %v284
      %v298 = vmul.f32 %v262, %v284
      %v299 = vmul.f32 %v263, %v284
      %v300 = vmul.f32 %v264, %v284
      %v301 = vmul.f32 %v265, %v284
      %v302 = vmul.f32 %v266, %v284
      %v303 = vmul.f32 %v267, %v284
      %v304 = vmul.f32 %v268, %v284
      %v305 = vmul.f32 %v269, %v284
      %v306 = vmul.f32 %v270, %v284
      %v307 = vmul.f32 %v271, %v284
      %v308 = vmul.f32 %v272, %v284
      %v309 = vmul.f32 %v273, %v284
      %v310 = vmul.f32 %v274, %v284
      %v311 = vmul.f32 %v275, %v284
      %v312 = vmul.f32 %v276, %v284
      %v313 = vmul.f32 %v277, %v284
      %v314 = vmul.f32 %v278, %v284
      %v315 = vmul.f32 %v279, %v284
      %v316 = vmul.f32 %v280, %v284
      %v317 = vmul.f32 %v281, %v284
      %v318 = vld [vmem:[%s3] sm:$0x1]
      %v320 = vperm.slane %v318, 0
      %v322 = vadd.f32 %v286, %v320
      %v323 = vadd.f32 %v287, %v320
      %v324 = vadd.f32 %v288, %v320
      %v325 = vadd.f32 %v289, %v320
      %v326 = vadd.f32 %v290, %v320
      %v327 = vadd.f32 %v291, %v320
      %v328 = vadd.f32 %v292, %v320
      %v329 = vadd.f32 %v293, %v320
      %v330 = vadd.f32 %v294, %v320
      %v331 = vadd.f32 %v295, %v320
      %v332 = vadd.f32 %v296, %v320
      %v333 = vadd.f32 %v297, %v320
      %v334 = vadd.f32 %v298, %v320
      %v335 = vadd.f32 %v299, %v320
      %v336 = vadd.f32 %v300, %v320
      %v337 = vadd.f32 %v301, %v320
      %v338 = vadd.f32 %v302, %v320
      %v339 = vadd.f32 %v303, %v320
      %v340 = vadd.f32 %v304, %v320
      %v341 = vadd.f32 %v305, %v320
      %v342 = vadd.f32 %v306, %v320
      %v343 = vadd.f32 %v307, %v320
      %v344 = vadd.f32 %v308, %v320
      %v345 = vadd.f32 %v309, %v320
      %v346 = vadd.f32 %v310, %v320
      %v347 = vadd.f32 %v311, %v320
      %v348 = vadd.f32 %v312, %v320
      %v349 = vadd.f32 %v313, %v320
      %v350 = vadd.f32 %v314, %v320
      %v351 = vadd.f32 %v315, %v320
      %v352 = vadd.f32 %v316, %v320
      %v353 = vadd.f32 %v317, %v320
      %354 = vxpose.xlu0.b32.start [1/16] %v322, 128
      %355 = vxpose.xlu0.b32.cont [2/16] %v323, 128
      %356 = vxpose.xlu0.b32.cont [3/16] %v324, 128
      %357 = vxpose.xlu0.b32.cont [4/16] %v325, 128
      %358 = vxpose.xlu0.b32.cont [5/16] %v326, 128
      %359 = vxpose.xlu0.b32.cont [6/16] %v327, 128
      %360 = vxpose.xlu0.b32.cont [7/16] %v328, 128
      %361 = vxpose.xlu0.b32.cont [8/16] %v329, 128
      %362 = vxpose.xlu0.b32.cont [9/16] %v330, 128
      %363 = vxpose.xlu0.b32.cont [10/16] %v331, 128
      %364 = vxpose.xlu0.b32.cont [11/16] %v332, 128
      %365 = vxpose.xlu0.b32.cont [12/16] %v333, 128
      %366 = vxpose.xlu0.b32.cont [13/16] %v334, 128
      %367 = vxpose.xlu0.b32.cont [14/16] %v335, 128
      %368 = vxpose.xlu0.b32.cont [15/16] %v336, 128
      %369 = vxpose.xlu0.b32.end [16/16] %v337, 128
      %v370 = vpop.trf.xlu0
      %v371 = vpop.trf.xlu0
      %v372 = vpop.trf.xlu0
      %v373 = vpop.trf.xlu0
      %v374 = vpop.trf.xlu0
      %v375 = vpop.trf.xlu0
      %v376 = vpop.trf.xlu0
      %v377 = vpop.trf.xlu0
      %v378 = vpop.trf.xlu0
      %v379 = vpop.trf.xlu0
      %v380 = vpop.trf.xlu0
      %v381 = vpop.trf.xlu0
      %v382 = vpop.trf.xlu0
      %v383 = vpop.trf.xlu0
      %v384 = vpop.trf.xlu0
      %v385 = vpop.trf.xlu0
      %386 = vxpose.xlu0.b32.start [1/16] %v338, 128
      %387 = vxpose.xlu0.b32.cont [2/16] %v339, 128
      %388 = vxpose.xlu0.b32.cont [3/16] %v340, 128
      %389 = vxpose.xlu0.b32.cont [4/16] %v341, 128
      %390 = vxpose.xlu0.b32.cont [5/16] %v342, 128
      %391 = vxpose.xlu0.b32.cont [6/16] %v343, 128
      %392 = vxpose.xlu0.b32.cont [7/16] %v344, 128
      %393 = vxpose.xlu0.b32.cont [8/16] %v345, 128
      %394 = vxpose.xlu0.b32.cont [9/16] %v346, 128
      %395 = vxpose.xlu0.b32.cont [10/16] %v347, 128
      %396 = vxpose.xlu0.b32.cont [11/16] %v348, 128
      %397 = vxpose.xlu0.b32.cont [12/16] %v349, 128
      %398 = vxpose.xlu0.b32.cont [13/16] %v350, 128
      %399 = vxpose.xlu0.b32.cont [14/16] %v351, 128
      %400 = vxpose.xlu0.b32.cont [15/16] %v352, 128
      %401 = vxpose.xlu0.b32.end [16/16] %v353, 128
      %v402 = vpop.trf.xlu0
      %v403 = vpop.trf.xlu0
      %v404 = vpop.trf.xlu0
      %v405 = vpop.trf.xlu0
      %v406 = vpop.trf.xlu0
      %v407 = vpop.trf.xlu0
      %v408 = vpop.trf.xlu0
      %v409 = vpop.trf.xlu0
      %v410 = vpop.trf.xlu0
      %v411 = vpop.trf.xlu0
      %v412 = vpop.trf.xlu0
      %v413 = vpop.trf.xlu0
      %v414 = vpop.trf.xlu0
      %v415 = vpop.trf.xlu0
      %v416 = vpop.trf.xlu0
      %v417 = vpop.trf.xlu0
      %v418 = vld [vmem:[%s212] sm:$0xff]
      %v419 = vld [vmem:[%s212 + $0x8] sm:$0xff]
      %v420 = vld [vmem:[%s212 + $0x10] sm:$0xff]
      %v421 = vld [vmem:[%s212 + $0x18] sm:$0xff]
      %v422 = vld [vmem:[%s212 + $0x20] sm:$0xff]
      %v423 = vld [vmem:[%s212 + $0x28] sm:$0xff]
      %v424 = vld [vmem:[%s212 + $0x30] sm:$0xff]
      %v425 = vld [vmem:[%s212 + $0x38] sm:$0xff]
      %v426 = vadd.f32 %v370, %v418
      %v427 = vadd.f32 %v402, %v419
      %v428 = vadd.f32 %v371, %v420
      %v429 = vadd.f32 %v403, %v421
      %v430 = vadd.f32 %v372, %v422
      %v431 = vadd.f32 %v404, %v423
      %v432 = vadd.f32 %v373, %v424
      %v433 = vadd.f32 %v405, %v425
      %v434 = vmax.f32 %v426, 0.0
      %v435 = vmax.f32 %v427, 0.0
      %v436 = vmax.f32 %v428, 0.0
      %v437 = vmax.f32 %v429, 0.0
      %v438 = vmax.f32 %v430, 0.0
      %v439 = vmax.f32 %v431, 0.0
      %v440 = vmax.f32 %v432, 0.0
      %v441 = vmax.f32 %v433, 0.0
      %442 = vst [vmem:[%s217] sm:$0xff] %v434
      %443 = vst [vmem:[%s217 + $0x8] sm:$0xff] %v435
      %444 = vst [vmem:[%s217 + $0x10] sm:$0xff] %v436
      %445 = vst [vmem:[%s217 + $0x18] sm:$0xff] %v437
      %446 = vst [vmem:[%s217 + $0x20] sm:$0xff] %v438
      %447 = vst [vmem:[%s217 + $0x28] sm:$0xff] %v439
      %448 = vst [vmem:[%s217 + $0x30] sm:$0xff] %v440
      %449 = vst [vmem:[%s217 + $0x38] sm:$0xff] %v441
      %p450 = scmp.lt.s32.totalorder %s15, 1
      %s451 = scalar_select %p450, %s15, 1
      %s452 = smul.addr %s451, 8
      %s453 = smul.addr %s452, 8
      %s454 = scalar_lea.vmem %s4, %s453
      // Predicated region
      $region37: #{bottleneck_forward.7} parent=35 // pred_check
        %p455 = pneg %p127
      $region38: #{bottleneck_forward.7} parent=35 // pred_check_branch
        %457 = sbr.rel (%p455) target = $region40
      $region39: #{bottleneck_forward.7} parent=35 // pred_region
        _
      $region40: #{bottleneck_forward.7} parent=35 // pred_fallthru
        _
    $region36: #{bottleneck_forward.7} parent=5 // pred_fallthru
      _
    %p458 = scmp.le.s32.totalorder 2, %s10
    // Predicated region
    $region41: #{bottleneck_forward.7} parent=5 // pred_check
      %p459 = pneg %p458
    $region42: #{bottleneck_forward.7} parent=5 // pred_check_branch
      %461 = sbr.rel (%p459) target = $region44
    $region43: #{bottleneck_forward.7} parent=5 // pred_region
      %s462 = ssub.s32 %s10, 2
      // Predicated region
      $region45: #{bottleneck_forward.7} parent=43 // pred_check
        %p463 = pneg %p133
      $region46: #{bottleneck_forward.7} parent=43 // pred_check_branch
        %465 = sbr.rel (%p463) target = $region48
      $region47: #{bottleneck_forward.7} parent=43 // pred_region
        %p466 = scmp.lt.s32.totalorder %s16, 1
        %s467 = scalar_select %p466, %s16, 1
        %s468 = smul.addr %s467, 8
        %s469 = smul.addr %s468, 8
        %s470 = scalar_lea.vmem %s4, %s469
      $region48: #{bottleneck_forward.7} parent=43 // pred_fallthru
        _
    $region44: #{bottleneck_forward.7} parent=5 // pred_fallthru
      _
  $region6: #{bottleneck_forward.7} parent=0 // loop_footer
    %s14 = sadd.s32 1, %s10
  $region7: #{bottleneck_forward.7} parent=0 // loop_footer_branch
    %9 = sbr.rel target = $region3
  $region8: #{bottleneck_forward.7} parent=0 // loop_exit
    _

// kernel: bottleneck_forward.6
$region0: #{bottleneck_forward.6}
  #allocation0 [shape = 'u32[]', space=smem, size = 0x4, offset = 0x4, fixed_abs, tag = 'smem constant byte address 0x4 - core index']
  #allocation1 [shape = 'u32[72,128]{1,0:T(1,128)}', space=vmem, size = 0x9000, scoped, tag = 'internal scratch']
  %s0 = inlined_call_operand.vmem [shape: bf16[512,8], index: 0, kind: input, shape index: {}]
  %s1 = inlined_call_operand.vmem [shape: f32[1,8], index: 1, kind: input, shape index: {}]
  %s2 = inlined_call_operand.vmem [shape: f32[1,8], index: 2, kind: input, shape index: {}]
  %s3 = inlined_call_operand.vmem [shape: bf16[8,32], index: 3, kind: input, shape index: {}]
  %s4 = inlined_call_operand.vmem [shape: bf16[512,32], index: 4, kind: output, shape index: {0}]
  %s5 = inlined_call_operand.vmem [shape: f32[1,2,32], index: 5, kind: output, shape index: {1}]
  %6 = xla_tuple %s4, %s5
  %s7 = sld [smem:[#allocation0]]
  $region34: #{bottleneck_forward.6} parent=0
    _
  %s9 = ssub.s32 1, %s7
  %s10 = scalar_select 0, %s9, %s7
  // Predicated region
  $region2: #{bottleneck_forward.6} parent=0 // pred_check
    _
  $region3: #{bottleneck_forward.6} parent=0 // pred_check_branch
    %12 = sbr.rel (0) target = $region5
  $region4: #{bottleneck_forward.6} parent=0 // pred_region
    _
  $region5: #{bottleneck_forward.6} parent=0 // pred_fallthru
    _
  // Predicated region
  $region6: #{bottleneck_forward.6} parent=0 // pred_check
    _
  $region7: #{bottleneck_forward.6} parent=0 // pred_check_branch
    %14 = sbr.rel (0) target = $region9
  $region8: #{bottleneck_forward.6} parent=0 // pred_region
    _
  $region9: #{bottleneck_forward.6} parent=0 // pred_fallthru
    _
  // Predicated region
  $region10: #{bottleneck_forward.6} parent=0 // pred_check
    _
  $region11: #{bottleneck_forward.6} parent=0 // pred_check_branch
    %16 = sbr.rel (0) target = $region13
  $region12: #{bottleneck_forward.6} parent=0 // pred_region
    _
  $region13: #{bottleneck_forward.6} parent=0 // pred_fallthru
    _
  // Predicated region
  $region14: #{bottleneck_forward.6} parent=0 // pred_check
    _
  $region15: #{bottleneck_forward.6} parent=0 // pred_check_branch
    %18 = sbr.rel (0) target = $region17
  $region16: #{bottleneck_forward.6} parent=0 // pred_region
    _
  $region17: #{bottleneck_forward.6} parent=0 // pred_fallthru
    _
  %v20 = vld [vmem:[%s0] sm:$0xf]
  %v21 = vld [vmem:[%s0 + $0x4] sm:$0xf]
  %v22 = vld [vmem:[%s0 + $0x8] sm:$0xf]
  %v23 = vld [vmem:[%s0 + $0xc] sm:$0xf]
  %v24 = vld [vmem:[%s0 + $0x10] sm:$0xf]
  %v25 = vld [vmem:[%s0 + $0x14] sm:$0xf]
  %v26 = vld [vmem:[%s0 + $0x18] sm:$0xf]
  %v27 = vld [vmem:[%s0 + $0x1c] sm:$0xf]
  %v28 = vld [vmem:[%s0 + $0x20] sm:$0xf]
  %v29 = vld [vmem:[%s0 + $0x24] sm:$0xf]
  %v30 = vld [vmem:[%s0 + $0x28] sm:$0xf]
  %v31 = vld [vmem:[%s0 + $0x2c] sm:$0xf]
  %v32 = vld [vmem:[%s0 + $0x30] sm:$0xf]
  %v33 = vld [vmem:[%s0 + $0x34] sm:$0xf]
  %v34 = vld [vmem:[%s0 + $0x38] sm:$0xf]
  %v35 = vld [vmem:[%s0 + $0x3c] sm:$0xf]
  %v36 = vld [vmem:[%s0 + $0x40] sm:$0xf]
  %v37 = vld [vmem:[%s0 + $0x44] sm:$0xf]
  %v38 = vld [vmem:[%s0 + $0x48] sm:$0xf]
  %v39 = vld [vmem:[%s0 + $0x4c] sm:$0xf]
  %v40 = vld [vmem:[%s0 + $0x50] sm:$0xf]
  %v41 = vld [vmem:[%s0 + $0x54] sm:$0xf]
  %v42 = vld [vmem:[%s0 + $0x58] sm:$0xf]
  %v43 = vld [vmem:[%s0 + $0x5c] sm:$0xf]
  %v44 = vld [vmem:[%s0 + $0x60] sm:$0xf]
  %v45 = vld [vmem:[%s0 + $0x64] sm:$0xf]
  %v46 = vld [vmem:[%s0 + $0x68] sm:$0xf]
  %v47 = vld [vmem:[%s0 + $0x6c] sm:$0xf]
  %v48 = vld [vmem:[%s0 + $0x70] sm:$0xf]
  %v49 = vld [vmem:[%s0 + $0x74] sm:$0xf]
  %v50 = vld [vmem:[%s0 + $0x78] sm:$0xf]
  %v51 = vld [vmem:[%s0 + $0x7c] sm:$0xf]
  %v52 = vld [vmem:[%s0 + $0x80] sm:$0xf]
  %v53 = vld [vmem:[%s0 + $0x84] sm:$0xf]
  %v54 = vld [vmem:[%s0 + $0x88] sm:$0xf]
  %v55 = vld [vmem:[%s0 + $0x8c] sm:$0xf]
  %v56 = vld [vmem:[%s0 + $0x90] sm:$0xf]
  %v57 = vld [vmem:[%s0 + $0x94] sm:$0xf]
  %v58 = vld [vmem:[%s0 + $0x98] sm:$0xf]
  %v59 = vld [vmem:[%s0 + $0x9c] sm:$0xf]
  %v60 = vld [vmem:[%s0 + $0xa0] sm:$0xf]
  %v61 = vld [vmem:[%s0 + $0xa4] sm:$0xf]
  %v62 = vld [vmem:[%s0 + $0xa8] sm:$0xf]
  %v63 = vld [vmem:[%s0 + $0xac] sm:$0xf]
  %v64 = vld [vmem:[%s0 + $0xb0] sm:$0xf]
  %v65 = vld [vmem:[%s0 + $0xb4] sm:$0xf]
  %v66 = vld [vmem:[%s0 + $0xb8] sm:$0xf]
  %v67 = vld [vmem:[%s0 + $0xbc] sm:$0xf]
  %v68 = vld [vmem:[%s0 + $0xc0] sm:$0xf]
  %v69 = vld [vmem:[%s0 + $0xc4] sm:$0xf]
  %v70 = vld [vmem:[%s0 + $0xc8] sm:$0xf]
  %v71 = vld [vmem:[%s0 + $0xcc] sm:$0xf]
  %v72 = vld [vmem:[%s0 + $0xd0] sm:$0xf]
  %v73 = vld [vmem:[%s0 + $0xd4] sm:$0xf]
  %v74 = vld [vmem:[%s0 + $0xd8] sm:$0xf]
  %v75 = vld [vmem:[%s0 + $0xdc] sm:$0xf]
  %v76 = vld [vmem:[%s0 + $0xe0] sm:$0xf]
  %v77 = vld [vmem:[%s0 + $0xe4] sm:$0xf]
  %v78 = vld [vmem:[%s0 + $0xe8] sm:$0xf]
  %v79 = vld [vmem:[%s0 + $0xec] sm:$0xf]
  %v80 = vld [vmem:[%s0 + $0xf0] sm:$0xf]
  %v81 = vld [vmem:[%s0 + $0xf4] sm:$0xf]
  %v82 = vld [vmem:[%s0 + $0xf8] sm:$0xf]
  %v83 = vld [vmem:[%s0 + $0xfc] sm:$0xf]
  %v84 = vunpack.c.l.bf16 %v20
  %v85 = vunpack.c.l.bf16 %v21
  %v86 = vunpack.c.l.bf16 %v22
  %v87 = vunpack.c.l.bf16 %v23
  %v88 = vunpack.c.l.bf16 %v24
  %v89 = vunpack.c.l.bf16 %v25
  %v90 = vunpack.c.l.bf16 %v26
  %v91 = vunpack.c.l.bf16 %v27
  %v92 = vunpack.c.l.bf16 %v28
  %v93 = vunpack.c.l.bf16 %v29
  %v94 = vunpack.c.l.bf16 %v30
  %v95 = vunpack.c.l.bf16 %v31
  %v96 = vunpack.c.l.bf16 %v32
  %v97 = vunpack.c.l.bf16 %v33
  %v98 = vunpack.c.l.bf16 %v34
  %v99 = vunpack.c.l.bf16 %v35
  %v100 = vunpack.c.l.bf16 %v36
  %v101 = vunpack.c.l.bf16 %v37
  %v102 = vunpack.c.l.bf16 %v38
  %v103 = vunpack.c.l.bf16 %v39
  %v104 = vunpack.c.l.bf16 %v40
  %v105 = vunpack.c.l.bf16 %v41
  %v106 = vunpack.c.l.bf16 %v42
  %v107 = vunpack.c.l.bf16 %v43
  %v108 = vunpack.c.l.bf16 %v44
  %v109 = vunpack.c.l.bf16 %v45
  %v110 = vunpack.c.l.bf16 %v46
  %v111 = vunpack.c.l.bf16 %v47
  %v112 = vunpack.c.l.bf16 %v48
  %v113 = vunpack.c.l.bf16 %v49
  %v114 = vunpack.c.l.bf16 %v50
  %v115 = vunpack.c.l.bf16 %v51
  %v116 = vunpack.c.l.bf16 %v52
  %v117 = vunpack.c.l.bf16 %v53
  %v118 = vunpack.c.l.bf16 %v54
  %v119 = vunpack.c.l.bf16 %v55
  %v120 = vunpack.c.l.bf16 %v56
  %v121 = vunpack.c.l.bf16 %v57
  %v122 = vunpack.c.l.bf16 %v58
  %v123 = vunpack.c.l.bf16 %v59
  %v124 = vunpack.c.l.bf16 %v60
  %v125 = vunpack.c.l.bf16 %v61
  %v126 = vunpack.c.l.bf16 %v62
  %v127 = vunpack.c.l.bf16 %v63
  %v128 = vunpack.c.l.bf16 %v64
  %v129 = vunpack.c.l.bf16 %v65
  %v130 = vunpack.c.l.bf16 %v66
  %v131 = vunpack.c.l.bf16 %v67
  %v132 = vunpack.c.l.bf16 %v68
  %v133 = vunpack.c.l.bf16 %v69
  %v134 = vunpack.c.l.bf16 %v70
  %v135 = vunpack.c.l.bf16 %v71
  %v136 = vunpack.c.l.bf16 %v72
  %v137 = vunpack.c.l.bf16 %v73
  %v138 = vunpack.c.l.bf16 %v74
  %v139 = vunpack.c.l.bf16 %v75
  %v140 = vunpack.c.l.bf16 %v76
  %v141 = vunpack.c.l.bf16 %v77
  %v142 = vunpack.c.l.bf16 %v78
  %v143 = vunpack.c.l.bf16 %v79
  %v144 = vunpack.c.l.bf16 %v80
  %v145 = vunpack.c.l.bf16 %v81
  %v146 = vunpack.c.l.bf16 %v82
  %v147 = vunpack.c.l.bf16 %v83
  %v148 = vld [vmem:[%s1] sm:$0x1]
  %v150 = vperm.slane %v148, 0
  %v152 = vmul.f32 %v84, %v150
  %v153 = vmul.f32 %v85, %v150
  %v154 = vmul.f32 %v86, %v150
  %v155 = vmul.f32 %v87, %v150
  %v156 = vmul.f32 %v88, %v150
  %v157 = vmul.f32 %v89, %v150
  %v158 = vmul.f32 %v90, %v150
  %v159 = vmul.f32 %v91, %v150
  %v160 = vmul.f32 %v92, %v150
  %v161 = vmul.f32 %v93, %v150
  %v162 = vmul.f32 %v94, %v150
  %v163 = vmul.f32 %v95, %v150
  %v164 = vmul.f32 %v96, %v150
  %v165 = vmul.f32 %v97, %v150
  %v166 = vmul.f32 %v98, %v150
  %v167 = vmul.f32 %v99, %v150
  %v168 = vmul.f32 %v100, %v150
  %v169 = vmul.f32 %v101, %v150
  %v170 = vmul.f32 %v102, %v150
  %v171 = vmul.f32 %v103, %v150
  %v172 = vmul.f32 %v104, %v150
  %v173 = vmul.f32 %v105, %v150
  %v174 = vmul.f32 %v106, %v150
  %v175 = vmul.f32 %v107, %v150
  %v176 = vmul.f32 %v108, %v150
  %v177 = vmul.f32 %v109, %v150
  %v178 = vmul.f32 %v110, %v150
  %v179 = vmul.f32 %v111, %v150
  %v180 = vmul.f32 %v112, %v150
  %v181 = vmul.f32 %v113, %v150
  %v182 = vmul.f32 %v114, %v150
  %v183 = vmul.f32 %v115, %v150
  %v184 = vmul.f32 %v116, %v150
  %v185 = vmul.f32 %v117, %v150
  %v186 = vmul.f32 %v118, %v150
  %v187 = vmul.f32 %v119, %v150
  %v188 = vmul.f32 %v120, %v150
  %v189 = vmul.f32 %v121, %v150
  %v190 = vmul.f32 %v122, %v150
  %v191 = vmul.f32 %v123, %v150
  %v192 = vmul.f32 %v124, %v150
  %v193 = vmul.f32 %v125, %v150
  %v194 = vmul.f32 %v126, %v150
  %v195 = vmul.f32 %v127, %v150
  %v196 = vmul.f32 %v128, %v150
  %v197 = vmul.f32 %v129, %v150
  %v198 = vmul.f32 %v130, %v150
  %v199 = vmul.f32 %v131, %v150
  %v200 = vmul.f32 %v132, %v150
  %v201 = vmul.f32 %v133, %v150
  %v202 = vmul.f32 %v134, %v150
  %v203 = vmul.f32 %v135, %v150
  %v204 = vmul.f32 %v136, %v150
  %v205 = vmul.f32 %v137, %v150
  %v206 = vmul.f32 %v138, %v150
  %v207 = vmul.f32 %v139, %v150
  %v208 = vmul.f32 %v140, %v150
  %v209 = vmul.f32 %v141, %v150
  %v210 = vmul.f32 %v142, %v150
  %v211 = vmul.f32 %v143, %v150
  %v212 = vmul.f32 %v144, %v150
  %v213 = vmul.f32 %v145, %v150
  %v214 = vmul.f32 %v146, %v150
  %v215 = vmul.f32 %v147, %v150
  %v216 = vld [vmem:[%s2] sm:$0x1]
  %v218 = vperm.slane %v216, 0
  %v220 = vadd.f32 %v152, %v218
  %v221 = vadd.f32 %v153, %v218
  %v222 = vadd.f32 %v154, %v218
  %v223 = vadd.f32 %v155, %v218
  %v224 = vadd.f32 %v156, %v218
  %v225 = vadd.f32 %v157, %v218
  %v226 = vadd.f32 %v158, %v218
  %v227 = vadd.f32 %v159, %v218
  %v228 = vadd.f32 %v160, %v218
  %v229 = vadd.f32 %v161, %v218
  %v230 = vadd.f32 %v162, %v218
  %v231 = vadd.f32 %v163, %v218
  %v232 = vadd.f32 %v164, %v218
  %v233 = vadd.f32 %v165, %v218
  %v234 = vadd.f32 %v166, %v218
  %v235 = vadd.f32 %v167, %v218
  %v236 = vadd.f32 %v168, %v218
  %v237 = vadd.f32 %v169, %v218
  %v238 = vadd.f32 %v170, %v218
  %v239 = vadd.f32 %v171, %v218
  %v240 = vadd.f32 %v172, %v218
  %v241 = vadd.f32 %v173, %v218
  %v242 = vadd.f32 %v174, %v218
  %v243 = vadd.f32 %v175, %v218
  %v244 = vadd.f32 %v176, %v218
  %v245 = vadd.f32 %v177, %v218
  %v246 = vadd.f32 %v178, %v218
  %v247 = vadd.f32 %v179, %v218
  %v248 = vadd.f32 %v180, %v218
  %v249 = vadd.f32 %v181, %v218
  %v250 = vadd.f32 %v182, %v218
  %v251 = vadd.f32 %v183, %v218
  %v252 = vadd.f32 %v184, %v218
  %v253 = vadd.f32 %v185, %v218
  %v254 = vadd.f32 %v186, %v218
  %v255 = vadd.f32 %v187, %v218
  %v256 = vadd.f32 %v188, %v218
  %v257 = vadd.f32 %v189, %v218
  %v258 = vadd.f32 %v190, %v218
  %v259 = vadd.f32 %v191, %v218
  %v260 = vadd.f32 %v192, %v218
  %v261 = vadd.f32 %v193, %v218
  %v262 = vadd.f32 %v194, %v218
  %v263 = vadd.f32 %v195, %v218
  %v264 = vadd.f32 %v196, %v218
  %v265 = vadd.f32 %v197, %v218
  %v266 = vadd.f32 %v198, %v218
  %v267 = vadd.f32 %v199, %v218
  %v268 = vadd.f32 %v200, %v218
  %v269 = vadd.f32 %v201, %v218
  %v270 = vadd.f32 %v202, %v218
  %v271 = vadd.f32 %v203, %v218
  %v272 = vadd.f32 %v204, %v218
  %v273 = vadd.f32 %v205, %v218
  %v274 = vadd.f32 %v206, %v218
  %v275 = vadd.f32 %v207, %v218
  %v276 = vadd.f32 %v208, %v218
  %v277 = vadd.f32 %v209, %v218
  %v278 = vadd.f32 %v210, %v218
  %v279 = vadd.f32 %v211, %v218
  %v280 = vadd.f32 %v212, %v218
  %v281 = vadd.f32 %v213, %v218
  %v282 = vadd.f32 %v214, %v218
  %v283 = vadd.f32 %v215, %v218
  %v284 = vmax.f32 %v220, 0.0
  %v285 = vmax.f32 %v221, 0.0
  %v286 = vmax.f32 %v222, 0.0
  %v287 = vmax.f32 %v223, 0.0
  %v288 = vmax.f32 %v224, 0.0
  %v289 = vmax.f32 %v225, 0.0
  %v290 = vmax.f32 %v226, 0.0
  %v291 = vmax.f32 %v227, 0.0
  %v292 = vmax.f32 %v228, 0.0
  %v293 = vmax.f32 %v229, 0.0
  %v294 = vmax.f32 %v230, 0.0
  %v295 = vmax.f32 %v231, 0.0
  %v296 = vmax.f32 %v232, 0.0
  %v297 = vmax.f32 %v233, 0.0
  %v298 = vmax.f32 %v234, 0.0
  %v299 = vmax.f32 %v235, 0.0
  %v300 = vmax.f32 %v236, 0.0
  %v301 = vmax.f32 %v237, 0.0
  %v302 = vmax.f32 %v238, 0.0
  %v303 = vmax.f32 %v239, 0.0
  %v304 = vmax.f32 %v240, 0.0
  %v305 = vmax.f32 %v241, 0.0
  %v306 = vmax.f32 %v242, 0.0
  %v307 = vmax.f32 %v243, 0.0
  %v308 = vmax.f32 %v244, 0.0
  %v309 = vmax.f32 %v245, 0.0
  %v310 = vmax.f32 %v246, 0.0
  %v311 = vmax.f32 %v247, 0.0
  %v312 = vmax.f32 %v248, 0.0
  %v313 = vmax.f32 %v249, 0.0
  %v314 = vmax.f32 %v250, 0.0
  %v315 = vmax.f32 %v251, 0.0
  %v316 = vmax.f32 %v252, 0.0
  %v317 = vmax.f32 %v253, 0.0
  %v318 = vmax.f32 %v254, 0.0
  %v319 = vmax.f32 %v255, 0.0
  %v320 = vmax.f32 %v256, 0.0
  %v321 = vmax.f32 %v257, 0.0
  %v322 = vmax.f32 %v258, 0.0
  %v323 = vmax.f32 %v259, 0.0
  %v324 = vmax.f32 %v260, 0.0
  %v325 = vmax.f32 %v261, 0.0
  %v326 = vmax.f32 %v262, 0.0
  %v327 = vmax.f32 %v263, 0.0
  %v328 = vmax.f32 %v264, 0.0
  %v329 = vmax.f32 %v265, 0.0
  %v330 = vmax.f32 %v266, 0.0
  %v331 = vmax.f32 %v267, 0.0
  %v332 = vmax.f32 %v268, 0.0
  %v333 = vmax.f32 %v269, 0.0
  %v334 = vmax.f32 %v270, 0.0
  %v335 = vmax.f32 %v271, 0.0
  %v336 = vmax.f32 %v272, 0.0
  %v337 = vmax.f32 %v273, 0.0
  %v338 = vmax.f32 %v274, 0.0
  %v339 = vmax.f32 %v275, 0.0
  %v340 = vmax.f32 %v276, 0.0
  %v341 = vmax.f32 %v277, 0.0
  %v342 = vmax.f32 %v278, 0.0
  %v343 = vmax.f32 %v279, 0.0
  %v344 = vmax.f32 %v280, 0.0
  %v345 = vmax.f32 %v281, 0.0
  %v346 = vmax.f32 %v282, 0.0
  %v347 = vmax.f32 %v283, 0.0
  %v348 = vpack.c.bf16 %v285, %v284
  %v349 = vpack.c.bf16 %v287, %v286
  %v350 = vpack.c.bf16 %v289, %v288
  %v351 = vpack.c.bf16 %v291, %v290
  %v352 = vpack.c.bf16 %v293, %v292
  %v353 = vpack.c.bf16 %v295, %v294
  %v354 = vpack.c.bf16 %v297, %v296
  %v355 = vpack.c.bf16 %v299, %v298
  %v356 = vpack.c.bf16 %v301, %v300
  %v357 = vpack.c.bf16 %v303, %v302
  %v358 = vpack.c.bf16 %v305, %v304
  %v359 = vpack.c.bf16 %v307, %v306
  %v360 = vpack.c.bf16 %v309, %v308
  %v361 = vpack.c.bf16 %v311, %v310
  %v362 = vpack.c.bf16 %v313, %v312
  %v363 = vpack.c.bf16 %v315, %v314
  %v364 = vpack.c.bf16 %v317, %v316
  %v365 = vpack.c.bf16 %v319, %v318
  %v366 = vpack.c.bf16 %v321, %v320
  %v367 = vpack.c.bf16 %v323, %v322
  %v368 = vpack.c.bf16 %v325, %v324
  %v369 = vpack.c.bf16 %v327, %v326
  %v370 = vpack.c.bf16 %v329, %v328
  %v371 = vpack.c.bf16 %v331, %v330
  %v372 = vpack.c.bf16 %v333, %v332
  %v373 = vpack.c.bf16 %v335, %v334
  %v374 = vpack.c.bf16 %v337, %v336
  %v375 = vpack.c.bf16 %v339, %v338
  %v376 = vpack.c.bf16 %v341, %v340
  %v377 = vpack.c.bf16 %v343, %v342
  %v378 = vpack.c.bf16 %v345, %v344
  %v379 = vpack.c.bf16 %v347, %v346
  %v380 = vld [vmem:[%s3] sm:$0xf]
  %vm381 = vcmask 64512
  %v383 = vsel %vm381, %v348, 0
  %v386 = vsel %vm381, %v349, 0
  %v389 = vsel %vm381, %v350, 0
  %v392 = vsel %vm381, %v351, 0
  %v395 = vsel %vm381, %v352, 0
  %v398 = vsel %vm381, %v353, 0
  %v401 = vsel %vm381, %v354, 0
  %v404 = vsel %vm381, %v355, 0
  %v407 = vsel %vm381, %v356, 0
  %v410 = vsel %vm381, %v357, 0
  %v413 = vsel %vm381, %v358, 0
  %v416 = vsel %vm381, %v359, 0
  %v419 = vsel %vm381, %v360, 0
  %v422 = vsel %vm381, %v361, 0
  %v425 = vsel %vm381, %v362, 0
  %v428 = vsel %vm381, %v363, 0
  %v431 = vsel %vm381, %v364, 0
  %v434 = vsel %vm381, %v365, 0
  %v437 = vsel %vm381, %v366, 0
  %v440 = vsel %vm381, %v367, 0
  %v443 = vsel %vm381, %v368, 0
  %v446 = vsel %vm381, %v369, 0
  %v449 = vsel %vm381, %v370, 0
  %v452 = vsel %vm381, %v371, 0
  %v455 = vsel %vm381, %v372, 0
  %v458 = vsel %vm381, %v373, 0
  %v461 = vsel %vm381, %v374, 0
  %v464 = vsel %vm381, %v375, 0
  %v467 = vsel %vm381, %v376, 0
  %v470 = vsel %vm381, %v377, 0
  %v473 = vsel %vm381, %v378, 0
  %v476 = vsel %vm381, %v379, 0
  %vm478 = vcmask 1043456
  %v480 = vsel %vm478, %v380, 0
  %482 = vmatpush.bf16.msra.mxu0 0
  %483 = vmatpush.bf16.msra.mxu0 0
  %484 = vmatpush.bf16.msra.mxu0 0
  %485 = vmatpush.bf16.msra.mxu0 0
  %486 = vmatpush.bf16.msra.mxu0 0
  %487 = vmatpush.bf16.msra.mxu0 0
  %488 = vmatpush.bf16.msra.mxu0 0
  %489 = vmatpush.bf16.msra.mxu0 %v480
  %490 = vmatmul.bf16.gmra.mxu0 %v383
  %v491 = vpop.f32.mrf.mxu0
  %v492 = vadd.f32 0.0, %v491
  %v493 = vpop.f32.mrf.mxu0
  %v494 = vadd.f32 0.0, %v493
  %495 = vmatmul.bf16.gmra.mxu0 %v386
  %v496 = vpop.f32.mrf.mxu0
  %v497 = vadd.f32 0.0, %v496
  %v498 = vpop.f32.mrf.mxu0
  %v499 = vadd.f32 0.0, %v498
  %500 = vmatmul.bf16.gmra.mxu0 %v389
  %v501 = vpop.f32.mrf.mxu0
  %v502 = vadd.f32 0.0, %v501
  %v503 = vpop.f32.mrf.mxu0
  %v504 = vadd.f32 0.0, %v503
  %505 = vmatmul.bf16.gmra.mxu0 %v392
  %v506 = vpop.f32.mrf.mxu0
  %v507 = vadd.f32 0.0, %v506
  %v508 = vpop.f32.mrf.mxu0
  %v509 = vadd.f32 0.0, %v508
  %510 = vmatmul.bf16.gmra.mxu0 %v395
  %v511 = vpop.f32.mrf.mxu0
  %v512 = vadd.f32 0.0, %v511
  %v513 = vpop.f32.mrf.mxu0
  %v514 = vadd.f32 0.0, %v513
  %515 = vmatmul.bf16.gmra.mxu0 %v398
  %v516 = vpop.f32.mrf.mxu0
  %v517 = vadd.f32 0.0, %v516
  %v518 = vpop.f32.mrf.mxu0
  %v519 = vadd.f32 0.0, %v518
  %520 = vmatmul.bf16.gmra.mxu0 %v401
  %v521 = vpop.f32.mrf.mxu0
  %v522 = vadd.f32 0.0, %v521
  %v523 = vpop.f32.mrf.mxu0
  %v524 = vadd.f32 0.0, %v523
  %525 = vmatmul.bf16.gmra.mxu0 %v404
  %v526 = vpop.f32.mrf.mxu0
  %v527 = vadd.f32 0.0, %v526
  %v528 = vpop.f32.mrf.mxu0
  %v529 = vadd.f32 0.0, %v528
  %530 = vmatmul.bf16.gmra.mxu0 %v407
  %v531 = vpop.f32.mrf.mxu0
  %v532 = vadd.f32 0.0, %v531
  %v533 = vpop.f32.mrf.mxu0
  %v534 = vadd.f32 0.0, %v533
  %535 = vmatmul.bf16.gmra.mxu0 %v410
  %v536 = vpop.f32.mrf.mxu0
  %v537 = vadd.f32 0.0, %v536
  %v538 = vpop.f32.mrf.mxu0
  %v539 = vadd.f32 0.0, %v538
  %540 = vmatmul.bf16.gmra.mxu0 %v413
  %v541 = vpop.f32.mrf.mxu0
  %v542 = vadd.f32 0.0, %v541
  %v543 = vpop.f32.mrf.mxu0
  %v544 = vadd.f32 0.0, %v543
  %545 = vmatmul.bf16.gmra.mxu0 %v416
  %v546 = vpop.f32.mrf.mxu0
  %v547 = vadd.f32 0.0, %v546
  %v548 = vpop.f32.mrf.mxu0
  %v549 = vadd.f32 0.0, %v548
  %550 = vmatmul.bf16.gmra.mxu0 %v419
  %v551 = vpop.f32.mrf.mxu0
  %v552 = vadd.f32 0.0, %v551
  %v553 = vpop.f32.mrf.mxu0
  %v554 = vadd.f32 0.0, %v553
  %555 = vmatmul.bf16.gmra.mxu0 %v422
  %v556 = vpop.f32.mrf.mxu0
  %v557 = vadd.f32 0.0, %v556
  %v558 = vpop.f32.mrf.mxu0
  %v559 = vadd.f32 0.0, %v558
  %560 = vmatmul.bf16.gmra.mxu0 %v425
  %v561 = vpop.f32.mrf.mxu0
  %v562 = vadd.f32 0.0, %v561
  %v563 = vpop.f32.mrf.mxu0
  %v564 = vadd.f32 0.0, %v563
  %565 = vmatmul.bf16.gmra.mxu0 %v428
  %v566 = vpop.f32.mrf.mxu0
  %v567 = vadd.f32 0.0, %v566
  %v568 = vpop.f32.mrf.mxu0
  %v569 = vadd.f32 0.0, %v568
  %570 = vmatmul.bf16.gmra.mxu0 %v431
  %v571 = vpop.f32.mrf.mxu0
  %v572 = vadd.f32 0.0, %v571
  %v573 = vpop.f32.mrf.mxu0
  %v574 = vadd.f32 0.0, %v573
  %575 = vmatmul.bf16.gmra.mxu0 %v434
  %v576 = vpop.f32.mrf.mxu0
  %v577 = vadd.f32 0.0, %v576
  %v578 = vpop.f32.mrf.mxu0
  %v579 = vadd.f32 0.0, %v578
  %580 = vmatmul.bf16.gmra.mxu0 %v437
  %v581 = vpop.f32.mrf.mxu0
  %v582 = vadd.f32 0.0, %v581
  %v583 = vpop.f32.mrf.mxu0
  %v584 = vadd.f32 0.0, %v583
  %585 = vmatmul.bf16.gmra.mxu0 %v440
  %v586 = vpop.f32.mrf.mxu0
  %v587 = vadd.f32 0.0, %v586
  %v588 = vpop.f32.mrf.mxu0
  %v589 = vadd.f32 0.0, %v588
  %590 = vmatmul.bf16.gmra.mxu0 %v443
  %v591 = vpop.f32.mrf.mxu0
  %v592 = vadd.f32 0.0, %v591
  %v593 = vpop.f32.mrf.mxu0
  %v594 = vadd.f32 0.0, %v593
  %595 = vmatmul.bf16.gmra.mxu0 %v446
  %v596 = vpop.f32.mrf.mxu0
  %v597 = vadd.f32 0.0, %v596
  %v598 = vpop.f32.mrf.mxu0
  %v599 = vadd.f32 0.0, %v598
  %600 = vmatmul.bf16.gmra.mxu0 %v449
  %v601 = vpop.f32.mrf.mxu0
  %v602 = vadd.f32 0.0, %v601
  %v603 = vpop.f32.mrf.mxu0
  %v604 = vadd.f32 0.0, %v603
  %605 = vmatmul.bf16.gmra.mxu0 %v452
  %v606 = vpop.f32.mrf.mxu0
  %v607 = vadd.f32 0.0, %v606
  %v608 = vpop.f32.mrf.mxu0
  %v609 = vadd.f32 0.0, %v608
  %610 = vmatmul.bf16.gmra.mxu0 %v455
  %v611 = vpop.f32.mrf.mxu0
  %v612 = vadd.f32 0.0, %v611
  %v613 = vpop.f32.mrf.mxu0
  %v614 = vadd.f32 0.0, %v613
  %615 = vmatmul.bf16.gmra.mxu0 %v458
  %v616 = vpop.f32.mrf.mxu0
  %v617 = vadd.f32 0.0, %v616
  %v618 = vpop.f32.mrf.mxu0
  %v619 = vadd.f32 0.0, %v618
  %620 = vmatmul.bf16.gmra.mxu0 %v461
  %v621 = vpop.f32.mrf.mxu0
  %v622 = vadd.f32 0.0, %v621
  %v623 = vpop.f32.mrf.mxu0
  %v624 = vadd.f32 0.0, %v623
  %625 = vmatmul.bf16.gmra.mxu0 %v464
  %v626 = vpop.f32.mrf.mxu0
  %v627 = vadd.f32 0.0, %v626
  %v628 = vpop.f32.mrf.mxu0
  %v629 = vadd.f32 0.0, %v628
  %630 = vmatmul.bf16.gmra.mxu0 %v467
  %v631 = vpop.f32.mrf.mxu0
  %v632 = vadd.f32 0.0, %v631
  %v633 = vpop.f32.mrf.mxu0
  %v634 = vadd.f32 0.0, %v633
  %635 = vmatmul.bf16.gmra.mxu0 %v470
  %v636 = vpop.f32.mrf.mxu0
  %v637 = vadd.f32 0.0, %v636
  %v638 = vpop.f32.mrf.mxu0
  %v639 = vadd.f32 0.0, %v638
  %640 = vmatmul.bf16.gmra.mxu0 %v473
  %v641 = vpop.f32.mrf.mxu0
  %v642 = vadd.f32 0.0, %v641
  %v643 = vpop.f32.mrf.mxu0
  %v644 = vadd.f32 0.0, %v643
  %645 = vmatmul.bf16.gmra.mxu0 %v476
  %v646 = vpop.f32.mrf.mxu0
  %v647 = vadd.f32 0.0, %v646
  %v648 = vpop.f32.mrf.mxu0
  %v649 = vadd.f32 0.0, %v648
  %650 = vdwg.mxu0
  %v651 = vpack.c.bf16 %v492, %v492
  %v652 = vpack.c.bf16 %v494, %v494
  %v653 = vpack.c.bf16 %v497, %v497
  %v654 = vpack.c.bf16 %v499, %v499
  %v655 = vpack.c.bf16 %v502, %v502
  %v656 = vpack.c.bf16 %v504, %v504
  %v657 = vpack.c.bf16 %v507, %v507
  %v658 = vpack.c.bf16 %v509, %v509
  %v659 = vpack.c.bf16 %v512, %v512
  %v660 = vpack.c.bf16 %v514, %v514
  %v661 = vpack.c.bf16 %v517, %v517
  %v662 = vpack.c.bf16 %v519, %v519
  %v663 = vpack.c.bf16 %v522, %v522
  %v664 = vpack.c.bf16 %v524, %v524
  %v665 = vpack.c.bf16 %v527, %v527
  %v666 = vpack.c.bf16 %v529, %v529
  %v667 = vpack.c.bf16 %v532, %v532
  %v668 = vpack.c.bf16 %v534, %v534
  %v669 = vpack.c.bf16 %v537, %v537
  %v670 = vpack.c.bf16 %v539, %v539
  %v671 = vpack.c.bf16 %v542, %v542
  %v672 = vpack.c.bf16 %v544, %v544
  %v673 = vpack.c.bf16 %v547, %v547
  %v674 = vpack.c.bf16 %v549, %v549
  %v675 = vpack.c.bf16 %v552, %v552
  %v676 = vpack.c.bf16 %v554, %v554
  %v677 = vpack.c.bf16 %v557, %v557
  %v678 = vpack.c.bf16 %v559, %v559
  %v679 = vpack.c.bf16 %v562, %v562
  %v680 = vpack.c.bf16 %v564, %v564
  %v681 = vpack.c.bf16 %v567, %v567
  %v682 = vpack.c.bf16 %v569, %v569
  %v683 = vpack.c.bf16 %v572, %v572
  %v684 = vpack.c.bf16 %v574, %v574
  %v685 = vpack.c.bf16 %v577, %v577
  %v686 = vpack.c.bf16 %v579, %v579
  %v687 = vpack.c.bf16 %v582, %v582
  %v688 = vpack.c.bf16 %v584, %v584
  %v689 = vpack.c.bf16 %v587, %v587
  %v690 = vpack.c.bf16 %v589, %v589
  %v691 = vpack.c.bf16 %v592, %v592
  %v692 = vpack.c.bf16 %v594, %v594
  %v693 = vpack.c.bf16 %v597, %v597
  %v694 = vpack.c.bf16 %v599, %v599
  %v695 = vpack.c.bf16 %v602, %v602
  %v696 = vpack.c.bf16 %v604, %v604
  %v697 = vpack.c.bf16 %v607, %v607
  %v698 = vpack.c.bf16 %v609, %v609
  %v699 = vpack.c.bf16 %v612, %v612
  %v700 = vpack.c.bf16 %v614, %v614
  %v701 = vpack.c.bf16 %v617, %v617
  %v702 = vpack.c.bf16 %v619, %v619
  %v703 = vpack.c.bf16 %v622, %v622
  %v704 = vpack.c.bf16 %v624, %v624
  %v705 = vpack.c.bf16 %v627, %v627
  %v706 = vpack.c.bf16 %v629, %v629
  %v707 = vpack.c.bf16 %v632, %v632
  %v708 = vpack.c.bf16 %v634, %v634
  %v709 = vpack.c.bf16 %v637, %v637
  %v710 = vpack.c.bf16 %v639, %v639
  %v711 = vpack.c.bf16 %v642, %v642
  %v712 = vpack.c.bf16 %v644, %v644
  %v713 = vpack.c.bf16 %v647, %v647
  %v714 = vpack.c.bf16 %v649, %v649
  %vm715 = vcmask 257024
  %716 = vst.msk [vmem:[%s4] sm:$0xf] %vm715, %v651
  %717 = vst.msk [vmem:[%s4 + $0x4] sm:$0xf] %vm715, %v652
  %718 = vst.msk [vmem:[%s4 + $0x8] sm:$0xf] %vm715, %v653
  %719 = vst.msk [vmem:[%s4 + $0xc] sm:$0xf] %vm715, %v654
  %720 = vst.msk [vmem:[%s4 + $0x10] sm:$0xf] %vm715, %v655
  %721 = vst.msk [vmem:[%s4 + $0x14] sm:$0xf] %vm715, %v656
  %722 = vst.msk [vmem:[%s4 + $0x18] sm:$0xf] %vm715, %v657
  %723 = vst.msk [vmem:[%s4 + $0x1c] sm:$0xf] %vm715, %v658
  %724 = vst.msk [vmem:[%s4 + $0x20] sm:$0xf] %vm715, %v659
  %725 = vst.msk [vmem:[%s4 + $0x24] sm:$0xf] %vm715, %v660
  %726 = vst.msk [vmem:[%s4 + $0x28] sm:$0xf] %vm715, %v661
  %727 = vst.msk [vmem:[%s4 + $0x2c] sm:$0xf] %vm715, %v662
  %728 = vst.msk [vmem:[%s4 + $0x30] sm:$0xf] %vm715, %v663
  %729 = vst.msk [vmem:[%s4 + $0x34] sm:$0xf] %vm715, %v664
  %730 = vst.msk [vmem:[%s4 + $0x38] sm:$0xf] %vm715, %v665
  %731 = vst.msk [vmem:[%s4 + $0x3c] sm:$0xf] %vm715, %v666
  %732 = vst.msk [vmem:[%s4 + $0x40] sm:$0xf] %vm715, %v667
  %733 = vst.msk [vmem:[%s4 + $0x44] sm:$0xf] %vm715, %v668
  %734 = vst.msk [vmem:[%s4 + $0x48] sm:$0xf] %vm715, %v669
  %735 = vst.msk [vmem:[%s4 + $0x4c] sm:$0xf] %vm715, %v670
  %736 = vst.msk [vmem:[%s4 + $0x50] sm:$0xf] %vm715, %v671
  %737 = vst.msk [vmem:[%s4 + $0x54] sm:$0xf] %vm715, %v672
  %738 = vst.msk [vmem:[%s4 + $0x58] sm:$0xf] %vm715, %v673
  %739 = vst.msk [vmem:[%s4 + $0x5c] sm:$0xf] %vm715, %v674
  %740 = vst.msk [vmem:[%s4 + $0x60] sm:$0xf] %vm715, %v675
  %741 = vst.msk [vmem:[%s4 + $0x64] sm:$0xf] %vm715, %v676
  %742 = vst.msk [vmem:[%s4 + $0x68] sm:$0xf] %vm715, %v677
  %743 = vst.msk [vmem:[%s4 + $0x6c] sm:$0xf] %vm715, %v678
  %744 = vst.msk [vmem:[%s4 + $0x70] sm:$0xf] %vm715, %v679
  %745 = vst.msk [vmem:[%s4 + $0x74] sm:$0xf] %vm715, %v680
  %746 = vst.msk [vmem:[%s4 + $0x78] sm:$0xf] %vm715, %v681
  %747 = vst.msk [vmem:[%s4 + $0x7c] sm:$0xf] %vm715, %v682
  %748 = vst.msk [vmem:[%s4 + $0x80] sm:$0xf] %vm715, %v683
  %749 = vst.msk [vmem:[%s4 + $0x84] sm:$0xf] %vm715, %v684
  %750 = vst.msk [vmem:[%s4 + $0x88] sm:$0xf] %vm715, %v685
  %751 = vst.msk [vmem:[%s4 + $0x8c] sm:$0xf] %vm715, %v686
  %752 = vst.msk [vmem:[%s4 + $0x90] sm:$0xf] %vm715, %v687
  %753 = vst.msk [vmem:[%s4 + $0x94] sm:$0xf] %vm715, %v688
  %754 = vst.msk [vmem:[%s4 + $0x98] sm:$0xf] %vm715, %v689
  %755 = vst.msk [vmem:[%s4 + $0x9c] sm:$0xf] %vm715, %v690
  %756 = vst.msk [vmem:[%s4 + $0xa0] sm:$0xf] %vm715, %v691
  %757 = vst.msk [vmem:[%s4 + $0xa4] sm:$0xf] %vm715, %v692
  %758 = vst.msk [vmem:[%s4 + $0xa8] sm:$0xf] %vm715, %v693
  %759 = vst.msk [vmem:[%s4 + $0xac] sm:$0xf] %vm715, %v694
  %760 = vst.msk [vmem:[%s4 + $0xb0] sm:$0xf] %vm715, %v695
  %761 = vst.msk [vmem:[%s4 + $0xb4] sm:$0xf] %vm715, %v696
  %762 = vst.msk [vmem:[%s4 + $0xb8] sm:$0xf] %vm715, %v697
  %763 = vst.msk [vmem:[%s4 + $0xbc] sm:$0xf] %vm715, %v698
  %764 = vst.msk [vmem:[%s4 + $0xc0] sm:$0xf] %vm715, %v699
  %765 = vst.msk [vmem:[%s4 + $0xc4] sm:$0xf] %vm715, %v700
  %766 = vst.msk [vmem:[%s4 + $0xc8] sm:$0xf] %vm715, %v701
  %767 = vst.msk [vmem:[%s4 + $0xcc] sm:$0xf] %vm715, %v702
  %768 = vst.msk [vmem:[%s4 + $0xd0] sm:$0xf] %vm715, %v703
  %769 = vst.msk [vmem:[%s4 + $0xd4] sm:$0xf] %vm715, %v704
  %770 = vst.msk [vmem:[%s4 + $0xd8] sm:$0xf] %vm715, %v705
  %771 = vst.msk [vmem:[%s4 + $0xdc] sm:$0xf] %vm715, %v706
  %772 = vst.msk [vmem:[%s4 + $0xe0] sm:$0xf] %vm715, %v707
  %773 = vst.msk [vmem:[%s4 + $0xe4] sm:$0xf] %vm715, %v708
  %774 = vst.msk [vmem:[%s4 + $0xe8] sm:$0xf] %vm715, %v709
  %775 = vst.msk [vmem:[%s4 + $0xec] sm:$0xf] %vm715, %v710
  %776 = vst.msk [vmem:[%s4 + $0xf0] sm:$0xf] %vm715, %v711
  %777 = vst.msk [vmem:[%s4 + $0xf4] sm:$0xf] %vm715, %v712
  %778 = vst.msk [vmem:[%s4 + $0xf8] sm:$0xf] %vm715, %v713
  %779 = vst.msk [vmem:[%s4 + $0xfc] sm:$0xf] %vm715, %v714
  %vm780 = vcmask 261120
  %v781 = vsel %vm780, %v492, 0.0
  %v782 = vsel %vm780, %v494, 0.0
  %v783 = vadd.f32 %v781, %v782
  %v784 = vsel %vm780, %v497, 0.0
  %v785 = vadd.f32 %v783, %v784
  %v786 = vsel %vm780, %v499, 0.0
  %v787 = vadd.f32 %v785, %v786
  %v788 = vsel %vm780, %v502, 0.0
  %v789 = vadd.f32 %v787, %v788
  %v790 = vsel %vm780, %v504, 0.0
  %v791 = vadd.f32 %v789, %v790
  %v792 = vsel %vm780, %v507, 0.0
  %v793 = vadd.f32 %v791, %v792
  %v794 = vsel %vm780, %v509, 0.0
  %v795 = vadd.f32 %v793, %v794
  %v796 = vsel %vm780, %v512, 0.0
  %v797 = vadd.f32 %v795, %v796
  %v798 = vsel %vm780, %v514, 0.0
  %v799 = vadd.f32 %v797, %v798
  %v800 = vsel %vm780, %v517, 0.0
  %v801 = vadd.f32 %v799, %v800
  %v802 = vsel %vm780, %v519, 0.0
  %v803 = vadd.f32 %v801, %v802
  %v804 = vsel %vm780, %v522, 0.0
  %v805 = vadd.f32 %v803, %v804
  %v806 = vsel %vm780, %v524, 0.0
  %v807 = vadd.f32 %v805, %v806
  %v808 = vsel %vm780, %v527, 0.0
  %v809 = vadd.f32 %v807, %v808
  %v810 = vsel %vm780, %v529, 0.0
  %v811 = vadd.f32 %v809, %v810
  %v812 = vsel %vm780, %v532, 0.0
  %v813 = vadd.f32 %v811, %v812
  %v814 = vsel %vm780, %v534, 0.0
  %v815 = vadd.f32 %v813, %v814
  %v816 = vsel %vm780, %v537, 0.0
  %v817 = vadd.f32 %v815, %v816
  %v818 = vsel %vm780, %v539, 0.0
  %v819 = vadd.f32 %v817, %v818
  %v820 = vsel %vm780, %v542, 0.0
  %v821 = vadd.f32 %v819, %v820
  %v822 = vsel %vm780, %v544, 0.0
  %v823 = vadd.f32 %v821, %v822
  %v824 = vsel %vm780, %v547, 0.0
  %v825 = vadd.f32 %v823, %v824
  %v826 = vsel %vm780, %v549, 0.0
  %v827 = vadd.f32 %v825, %v826
  %v828 = vsel %vm780, %v552, 0.0
  %v829 = vadd.f32 %v827, %v828
  %v830 = vsel %vm780, %v554, 0.0
  %v831 = vadd.f32 %v829, %v830
  %v832 = vsel %vm780, %v557, 0.0
  %v833 = vadd.f32 %v831, %v832
  %v834 = vsel %vm780, %v559, 0.0
  %v835 = vadd.f32 %v833, %v834
  %v836 = vsel %vm780, %v562, 0.0
  %v837 = vadd.f32 %v835, %v836
  %v838 = vsel %vm780, %v564, 0.0
  %v839 = vadd.f32 %v837, %v838
  %v840 = vsel %vm780, %v567, 0.0
  %v841 = vadd.f32 %v839, %v840
  %v842 = vsel %vm780, %v569, 0.0
  %v843 = vadd.f32 %v841, %v842
  %v844 = vsel %vm780, %v572, 0.0
  %v845 = vadd.f32 %v843, %v844
  %v846 = vsel %vm780, %v574, 0.0
  %v847 = vadd.f32 %v845, %v846
  %v848 = vsel %vm780, %v577, 0.0
  %v849 = vadd.f32 %v847, %v848
  %v850 = vsel %vm780, %v579, 0.0
  %v851 = vadd.f32 %v849, %v850
  %v852 = vsel %vm780, %v582, 0.0
  %v853 = vadd.f32 %v851, %v852
  %v854 = vsel %vm780, %v584, 0.0
  %v855 = vadd.f32 %v853, %v854
  %v856 = vsel %vm780, %v587, 0.0
  %v857 = vadd.f32 %v855, %v856
  %v858 = vsel %vm780, %v589, 0.0
  %v859 = vadd.f32 %v857, %v858
  %v860 = vsel %vm780, %v592, 0.0
  %v861 = vadd.f32 %v859, %v860
  %v862 = vsel %vm780, %v594, 0.0
  %v863 = vadd.f32 %v861, %v862
  %v864 = vsel %vm780, %v597, 0.0
  %v865 = vadd.f32 %v863, %v864
  %v866 = vsel %vm780, %v599, 0.0
  %v867 = vadd.f32 %v865, %v866
  %v868 = vsel %vm780, %v602, 0.0
  %v869 = vadd.f32 %v867, %v868
  %v870 = vsel %vm780, %v604, 0.0
  %v871 = vadd.f32 %v869, %v870
  %v872 = vsel %vm780, %v607, 0.0
  %v873 = vadd.f32 %v871, %v872
  %v874 = vsel %vm780, %v609, 0.0
  %v875 = vadd.f32 %v873, %v874
  %v876 = vsel %vm780, %v612, 0.0
  %v877 = vadd.f32 %v875, %v876
  %v878 = vsel %vm780, %v614, 0.0
  %v879 = vadd.f32 %v877, %v878
  %v880 = vsel %vm780, %v617, 0.0
  %v881 = vadd.f32 %v879, %v880
  %v882 = vsel %vm780, %v619, 0.0
  %v883 = vadd.f32 %v881, %v882
  %v884 = vsel %vm780, %v622, 0.0
  %v885 = vadd.f32 %v883, %v884
  %v886 = vsel %vm780, %v624, 0.0
  %v887 = vadd.f32 %v885, %v886
  %v888 = vsel %vm780, %v627, 0.0
  %v889 = vadd.f32 %v887, %v888
  %v890 = vsel %vm780, %v629, 0.0
  %v891 = vadd.f32 %v889, %v890
  %v892 = vsel %vm780, %v632, 0.0
  %v893 = vadd.f32 %v891, %v892
  %v894 = vsel %vm780, %v634, 0.0
  %v895 = vadd.f32 %v893, %v894
  %v896 = vsel %vm780, %v637, 0.0
  %v897 = vadd.f32 %v895, %v896
  %v898 = vsel %vm780, %v639, 0.0
  %v899 = vadd.f32 %v897, %v898
  %v900 = vsel %vm780, %v642, 0.0
  %v901 = vadd.f32 %v899, %v900
  %v902 = vsel %vm780, %v644, 0.0
  %v903 = vadd.f32 %v901, %v902
  %v904 = vsel %vm780, %v647, 0.0
  %v905 = vadd.f32 %v903, %v904
  %v906 = vsel %vm780, %v649, 0.0
  %v907 = vadd.f32 %v905, %v906
  %v908 = vrot.slane %v907, 4
  %v909 = vadd.f32 %v907, %v908
  %v910 = vrot.slane %v909, 2
  %v911 = vadd.f32 %v909, %v910
  %v912 = vrot.slane %v911, 1
  %v913 = vadd.f32 %v911, %v912
  %v914 = vmul.f32 %v492, %v492
  %v915 = vmul.f32 %v494, %v494
  %v916 = vmul.f32 %v497, %v497
  %v917 = vmul.f32 %v499, %v499
  %v918 = vmul.f32 %v502, %v502
  %v919 = vmul.f32 %v504, %v504
  %v920 = vmul.f32 %v507, %v507
  %v921 = vmul.f32 %v509, %v509
  %v922 = vmul.f32 %v512, %v512
  %v923 = vmul.f32 %v514, %v514
  %v924 = vmul.f32 %v517, %v517
  %v925 = vmul.f32 %v519, %v519
  %v926 = vmul.f32 %v522, %v522
  %v927 = vmul.f32 %v524, %v524
  %v928 = vmul.f32 %v527, %v527
  %v929 = vmul.f32 %v529, %v529
  %v930 = vmul.f32 %v532, %v532
  %v931 = vmul.f32 %v534, %v534
  %v932 = vmul.f32 %v537, %v537
  %v933 = vmul.f32 %v539, %v539
  %v934 = vmul.f32 %v542, %v542
  %v935 = vmul.f32 %v544, %v544
  %v936 = vmul.f32 %v547, %v547
  %v937 = vmul.f32 %v549, %v549
  %v938 = vmul.f32 %v552, %v552
  %v939 = vmul.f32 %v554, %v554
  %v940 = vmul.f32 %v557, %v557
  %v941 = vmul.f32 %v559, %v559
  %v942 = vmul.f32 %v562, %v562
  %v943 = vmul.f32 %v564, %v564
  %v944 = vmul.f32 %v567, %v567
  %v945 = vmul.f32 %v569, %v569
  %v946 = vmul.f32 %v572, %v572
  %v947 = vmul.f32 %v574, %v574
  %v948 = vmul.f32 %v577, %v577
  %v949 = vmul.f32 %v579, %v579
  %v950 = vmul.f32 %v582, %v582
  %v951 = vmul.f32 %v584, %v584
  %v952 = vmul.f32 %v587, %v587
  %v953 = vmul.f32 %v589, %v589
  %v954 = vmul.f32 %v592, %v592
  %v955 = vmul.f32 %v594, %v594
  %v956 = vmul.f32 %v597, %v597
  %v957 = vmul.f32 %v599, %v599
  %v958 = vmul.f32 %v602, %v602
  %v959 = vmul.f32 %v604, %v604
  %v960 = vmul.f32 %v607, %v607
  %v961 = vmul.f32 %v609, %v609
  %v962 = vmul.f32 %v612, %v612
  %v963 = vmul.f32 %v614, %v614
  %v964 = vmul.f32 %v617, %v617
  %v965 = vmul.f32 %v619, %v619
  %v966 = vmul.f32 %v622, %v622
  %v967 = vmul.f32 %v624, %v624
  %v968 = vmul.f32 %v627, %v627
  %v969 = vmul.f32 %v629, %v629
  %v970 = vmul.f32 %v632, %v632
  %v971 = vmul.f32 %v634, %v634
  %v972 = vmul.f32 %v637, %v637
  %v973 = vmul.f32 %v639, %v639
  %v974 = vmul.f32 %v642, %v642
  %v975 = vmul.f32 %v644, %v644
  %v976 = vmul.f32 %v647, %v647
  %v977 = vmul.f32 %v649, %v649
  %v978 = vsel %vm780, %v914, 0.0
  %v979 = vsel %vm780, %v915, 0.0
  %v980 = vadd.f32 %v978, %v979
  %v981 = vsel %vm780, %v916, 0.0
  %v982 = vadd.f32 %v980, %v981
  %v983 = vsel %vm780, %v917, 0.0
  %v984 = vadd.f32 %v982, %v983
  %v985 = vsel %vm780, %v918, 0.0
  %v986 = vadd.f32 %v984, %v985
  %v987 = vsel %vm780, %v919, 0.0
  %v988 = vadd.f32 %v986, %v987
  %v989 = vsel %vm780, %v920, 0.0
  %v990 = vadd.f32 %v988, %v989
  %v991 = vsel %vm780, %v921, 0.0
  %v992 = vadd.f32 %v990, %v991
  %v993 = vsel %vm780, %v922, 0.0
  %v994 = vadd.f32 %v992, %v993
  %v995 = vsel %vm780, %v923, 0.0
  %v996 = vadd.f32 %v994, %v995
  %v997 = vsel %vm780, %v924, 0.0
  %v998 = vadd.f32 %v996, %v997
  %v999 = vsel %vm780, %v925, 0.0
  %v1000 = vadd.f32 %v998, %v999
  %v1001 = vsel %vm780, %v926, 0.0
  %v1002 = vadd.f32 %v1000, %v1001
  %v1003 = vsel %vm780, %v927, 0.0
  %v1004 = vadd.f32 %v1002, %v1003
  %v1005 = vsel %vm780, %v928, 0.0
  %v1006 = vadd.f32 %v1004, %v1005
  %v1007 = vsel %vm780, %v929, 0.0
  %v1008 = vadd.f32 %v1006, %v1007
  %v1009 = vsel %vm780, %v930, 0.0
  %v1010 = vadd.f32 %v1008, %v1009
  %v1011 = vsel %vm780, %v931, 0.0
  %v1012 = vadd.f32 %v1010, %v1011
  %v1013 = vsel %vm780, %v932, 0.0
  %v1014 = vadd.f32 %v1012, %v1013
  %v1015 = vsel %vm780, %v933, 0.0
  %v1016 = vadd.f32 %v1014, %v1015
  %v1017 = vsel %vm780, %v934, 0.0
  %v1018 = vadd.f32 %v1016, %v1017
  %v1019 = vsel %vm780, %v935, 0.0
  %v1020 = vadd.f32 %v1018, %v1019
  %v1021 = vsel %vm780, %v936, 0.0
  %v1022 = vadd.f32 %v1020, %v1021
  %v1023 = vsel %vm780, %v937, 0.0
  %v1024 = vadd.f32 %v1022, %v1023
  %v1025 = vsel %vm780, %v938, 0.0
  %v1026 = vadd.f32 %v1024, %v1025
  %v1027 = vsel %vm780, %v939, 0.0
  %v1028 = vadd.f32 %v1026, %v1027
  %v1029 = vsel %vm780, %v940, 0.0
  %v1030 = vadd.f32 %v1028, %v1029
  %v1031 = vsel %vm780, %v941, 0.0
  %v1032 = vadd.f32 %v1030, %v1031
  %v1033 = vsel %vm780, %v942, 0.0
  %v1034 = vadd.f32 %v1032, %v1033
  %v1035 = vsel %vm780, %v943, 0.0
  %v1036 = vadd.f32 %v1034, %v1035
  %v1037 = vsel %vm780, %v944, 0.0
  %v1038 = vadd.f32 %v1036, %v1037
  %v1039 = vsel %vm780, %v945, 0.0
  %v1040 = vadd.f32 %v1038, %v1039
  %v1041 = vsel %vm780, %v946, 0.0
  %v1042 = vadd.f32 %v1040, %v1041
  %v1043 = vsel %vm780, %v947, 0.0
  %v1044 = vadd.f32 %v1042, %v1043
  %v1045 = vsel %vm780, %v948, 0.0
  %v1046 = vadd.f32 %v1044, %v1045
  %v1047 = vsel %vm780, %v949, 0.0
  %v1048 = vadd.f32 %v1046, %v1047
  %v1049 = vsel %vm780, %v950, 0.0
  %v1050 = vadd.f32 %v1048, %v1049
  %v1051 = vsel %vm780, %v951, 0.0
  %v1052 = vadd.f32 %v1050, %v1051
  %v1053 = vsel %vm780, %v952, 0.0
  %v1054 = vadd.f32 %v1052, %v1053
  %v1055 = vsel %vm780, %v953, 0.0
  %v1056 = vadd.f32 %v1054, %v1055
  %v1057 = vsel %vm780, %v954, 0.0
  %v1058 = vadd.f32 %v1056, %v1057
  %v1059 = vsel %vm780, %v955, 0.0
  %v1060 = vadd.f32 %v1058, %v1059
  %v1061 = vsel %vm780, %v956, 0.0
  %v1062 = vadd.f32 %v1060, %v1061
  %v1063 = vsel %vm780, %v957, 0.0
  %v1064 = vadd.f32 %v1062, %v1063
  %v1065 = vsel %vm780, %v958, 0.0
  %v1066 = vadd.f32 %v1064, %v1065
  %v1067 = vsel %vm780, %v959, 0.0
  %v1068 = vadd.f32 %v1066, %v1067
  %v1069 = vsel %vm780, %v960, 0.0
  %v1070 = vadd.f32 %v1068, %v1069
  %v1071 = vsel %vm780, %v961, 0.0
  %v1072 = vadd.f32 %v1070, %v1071
  %v1073 = vsel %vm780, %v962, 0.0
  %v1074 = vadd.f32 %v1072, %v1073
  %v1075 = vsel %vm780, %v963, 0.0
  %v1076 = vadd.f32 %v1074, %v1075
  %v1077 = vsel %vm780, %v964, 0.0
  %v1078 = vadd.f32 %v1076, %v1077
  %v1079 = vsel %vm780, %v965, 0.0
  %v1080 = vadd.f32 %v1078, %v1079
  %v1081 = vsel %vm780, %v966, 0.0
  %v1082 = vadd.f32 %v1080, %v1081
  %v1083 = vsel %vm780, %v967, 0.0
  %v1084 = vadd.f32 %v1082, %v1083
  %v1085 = vsel %vm780, %v968, 0.0
  %v1086 = vadd.f32 %v1084, %v1085
  %v1087 = vsel %vm780, %v969, 0.0
  %v1088 = vadd.f32 %v1086, %v1087
  %v1089 = vsel %vm780, %v970, 0.0
  %v1090 = vadd.f32 %v1088, %v1089
  %v1091 = vsel %vm780, %v971, 0.0
  %v1092 = vadd.f32 %v1090, %v1091
  %v1093 = vsel %vm780, %v972, 0.0
  %v1094 = vadd.f32 %v1092, %v1093
  %v1095 = vsel %vm780, %v973, 0.0
  %v1096 = vadd.f32 %v1094, %v1095
  %v1097 = vsel %vm780, %v974, 0.0
  %v1098 = vadd.f32 %v1096, %v1097
  %v1099 = vsel %vm780, %v975, 0.0
  %v1100 = vadd.f32 %v1098, %v1099
  %v1101 = vsel %vm780, %v976, 0.0
  %v1102 = vadd.f32 %v1100, %v1101
  %v1103 = vsel %vm780, %v977, 0.0
  %v1104 = vadd.f32 %v1102, %v1103
  %v1105 = vrot.slane %v1104, 4
  %v1106 = vadd.f32 %v1104, %v1105
  %v1107 = vrot.slane %v1106, 2
  %v1108 = vadd.f32 %v1106, %v1107
  %v1109 = vrot.slane %v1108, 1
  %v1110 = vadd.f32 %v1108, %v1109
  %vm1111 = vcmask 1040384
  %v1112 = vsel %vm1111, %v913, %v1110
  %vm1113 = vcmask 254976
  %1114 = vst.msk [vmem:[%s5] sm:$0x3] %vm1113, %v1112
  // Predicated region
  $region18: #{bottleneck_forward.6} parent=0 // pred_check
    _
  $region19: #{bottleneck_forward.6} parent=0 // pred_check_branch
    %1116 = sbr.rel (0) target = $region21
  $region20: #{bottleneck_forward.6} parent=0 // pred_region
    _
  $region21: #{bottleneck_forward.6} parent=0 // pred_fallthru
    _
  // Predicated region
  $region22: #{bottleneck_forward.6} parent=0 // pred_check
    _
  $region23: #{bottleneck_forward.6} parent=0 // pred_check_branch
    %1118 = sbr.rel (0) target = $region25
  $region24: #{bottleneck_forward.6} parent=0 // pred_region
    _
  $region25: #{bottleneck_forward.6} parent=0 // pred_fallthru
    _
  // Predicated region
  $region26: #{bottleneck_forward.6} parent=0 // pred_check
    _
  $region27: #{bottleneck_forward.6} parent=0 // pred_check_branch
    %1120 = sbr.rel (0) target = $region29
  $region28: #{bottleneck_forward.6} parent=0 // pred_region
    _
  $region29: #{bottleneck_forward.6} parent=0 // pred_fallthru
    _
  // Predicated region
  $region30: #{bottleneck_forward.6} parent=0 // pred_check
    _
  $region31: #{bottleneck_forward.6} parent=0 // pred_check_branch
    %1122 = sbr.rel (0) target = $region33
  $region32: #{bottleneck_forward.6} parent=0 // pred_region
    _
  $region33: #{bottleneck_forward.6} parent=0 // pred_fallthru
    _

// kernel: bottleneck_forward.5
$region0: #{bottleneck_forward.5}
  #allocation0 [shape = 'u32[]', space=smem, size = 0x4, offset = 0x4, fixed_abs, tag = 'smem constant byte address 0x4 - core index']
  #allocation1 [shape = 'u32[72,128]{1,0:T(1,128)}', space=vmem, size = 0x9000, scoped, tag = 'internal scratch']
  %s0 = inlined_call_operand.vmem [shape: bf16[2,256,8], index: 0, kind: input, shape index: {}]
  %s1 = inlined_call_operand.vmem [shape: f32[1,8], index: 1, kind: input, shape index: {}]
  %s2 = inlined_call_operand.vmem [shape: f32[1,8], index: 2, kind: input, shape index: {}]
  %s3 = inlined_call_operand.vmem [shape: bf16[9,8,8], index: 3, kind: input, shape index: {}]
  %s4 = inlined_call_operand.vmem [shape: bf16[2,256,8], index: 4, kind: output, shape index: {0}]
  %s5 = inlined_call_operand.vmem [shape: f32[2,2,8], index: 5, kind: output, shape index: {1}]
  %6 = xla_tuple %s4, %s5
  %s7 = sld [smem:[#allocation0]]
  $region57: #{bottleneck_forward.5} parent=0
    _
  %s9 = ssub.s32 1, %s7
  %s10 = scalar_select 0, %s9, %s7
  loop: start=0, step=1, limit=4
  $region2: #{bottleneck_forward.5} parent=0 // loop_pre_header
    _
  $region3: #{bottleneck_forward.5} parent=0 // loop_header
    %s12 = sphi 0, %s16
    %p13 = scmp.ge.s32.totalorder %s12, 4
    %s22 = sphi 0, %s24
    %s25 = sphi 0, %s22
    %s26 = sphi 0, %s25
    %s42 = sphi 0, %s26
    %s46 = sphi 0, %s46
    %s48 = sphi 0, %s46
    %s49 = sphi 0, %s48
    %s63 = sphi 0, %s49
    %s67 = sphi 0, %s67
    %s69 = sphi 0, %s67
    %s70 = sphi 0, %s69
    %s84 = sphi 0, %s70
    %s88 = sphi 0, %s88
    %s90 = sphi 0, %s88
    %s91 = sphi 0, %s90
    %s105 = sphi 0, %s91
    %s111 = sphi 0, %s113
    %s114 = sphi 0, %s111
    %s115 = sphi 0, %s114
    %s131 = sphi 0, %s115
    %s137 = sphi 0, %s139
    %s140 = sphi 0, %s137
    %s141 = sphi 0, %s140
    %s157 = sphi 0, %s141
  $region4: #{bottleneck_forward.5} parent=0 // loop_header_branch
    %15 = sbr.rel (%p13) target = $region8
  $region5: #{bottleneck_forward.5} parent=0 // loop_body
    %s17 = ssub.s32 %s12, 1
    %s18 = ssub.s32 %s12, 2
    %s19 = sadd.s32 %s12, 1
    %s20 = ssub.s32 %s12, %s19
    %p21 = scmp.eq.s32.totalorder %s20, 0
    %s23 = sadd.s32 %s22, 1
    %s24 = scalar_select %p21, %s22, %s23
    %p27 = pneg %p21
    %p28 = scmp.eq.s32.totalorder %s12, 1
    %p29 = por %p27, %p28
    %p30 = scmp.ne.s32.totalorder %s22, %s25
    %p31 = scmp.eq.s32.totalorder %s12, 0
    %p32 = por %p30, %p31
    %p33 = scmp.ne.s32.totalorder %s22, %s25
    %p34 = scmp.eq.s32.totalorder %s17, 1
    %p35 = por %p33, %p34
    %p36 = scmp.ne.s32.totalorder %s25, %s26
    %p37 = scmp.eq.s32.totalorder %s17, 0
    %p38 = por %p36, %p37
    %p39 = scmp.ne.s32.totalorder %s25, %s26
    %p40 = scmp.eq.s32.totalorder %s18, 1
    %p41 = por %p39, %p40
    %p43 = scmp.ne.s32.totalorder %s26, %s42
    %p44 = scmp.eq.s32.totalorder %s18, 0
    %p45 = por %p43, %p44
    %s47 = sadd.s32 %s46, 1
    %p50 = scmp.eq.s32.totalorder %s12, 1
    %p51 = scmp.ne.s32.totalorder %s46, %s48
    %p52 = scmp.eq.s32.totalorder %s12, 0
    %p53 = por %p51, %p52
    %p54 = scmp.ne.s32.totalorder %s46, %s48
    %p55 = scmp.eq.s32.totalorder %s17, 1
    %p56 = por %p54, %p55
    %p57 = scmp.ne.s32.totalorder %s48, %s49
    %p58 = scmp.eq.s32.totalorder %s17, 0
    %p59 = por %p57, %p58
    %p60 = scmp.ne.s32.totalorder %s48, %s49
    %p61 = scmp.eq.s32.totalorder %s18, 1
    %p62 = por %p60, %p61
    %p64 = scmp.ne.s32.totalorder %s49, %s63
    %p65 = scmp.eq.s32.totalorder %s18, 0
    %p66 = por %p64, %p65
    %s68 = sadd.s32 %s67, 1
    %p71 = scmp.eq.s32.totalorder %s12, 1
    %p72 = scmp.ne.s32.totalorder %s67, %s69
    %p73 = scmp.eq.s32.totalorder %s12, 0
    %p74 = por %p72, %p73
    %p75 = scmp.ne.s32.totalorder %s67, %s69
    %p76 = scmp.eq.s32.totalorder %s17, 1
    %p77 = por %p75, %p76
    %p78 = scmp.ne.s32.totalorder %s69, %s70
    %p79 = scmp.eq.s32.totalorder %s17, 0
    %p80 = por %p78, %p79
    %p81 = scmp.ne.s32.totalorder %s69, %s70
    %p82 = scmp.eq.s32.totalorder %s18, 1
    %p83 = por %p81, %p82
    %p85 = scmp.ne.s32.totalorder %s70, %s84
    %p86 = scmp.eq.s32.totalorder %s18, 0
    %p87 = por %p85, %p86
    %s89 = sadd.s32 %s88, 1
    %p92 = scmp.eq.s32.totalorder %s12, 1
    %p93 = scmp.ne.s32.totalorder %s88, %s90
    %p94 = scmp.eq.s32.totalorder %s12, 0
    %p95 = por %p93, %p94
    %p96 = scmp.ne.s32.totalorder %s88, %s90
    %p97 = scmp.eq.s32.totalorder %s17, 1
    %p98 = por %p96, %p97
    %p99 = scmp.ne.s32.totalorder %s90, %s91
    %p100 = scmp.eq.s32.totalorder %s17, 0
    %p101 = por %p99, %p100
    %p102 = scmp.ne.s32.totalorder %s90, %s91
    %p103 = scmp.eq.s32.totalorder %s18, 1
    %p104 = por %p102, %p103
    %p106 = scmp.ne.s32.totalorder %s91, %s105
    %p107 = scmp.eq.s32.totalorder %s18, 0
    %p108 = por %p106, %p107
    %s109 = ssub.s32 %s12, %s19
    %p110 = scmp.eq.s32.totalorder %s109, 0
    %s112 = sadd.s32 %s111, 1
    %s113 = scalar_select %p110, %s111, %s112
    %p116 = pneg %p110
    %p117 = scmp.eq.s32.totalorder %s12, 1
    %p118 = por %p116, %p117
    %p119 = scmp.ne.s32.totalorder %s111, %s114
    %p120 = scmp.eq.s32.totalorder %s12, 0
    %p121 = por %p119, %p120
    %p122 = scmp.ne.s32.totalorder %s111, %s114
    %p123 = scmp.eq.s32.totalorder %s17, 1
    %p124 = por %p122, %p123
    %p125 = scmp.ne.s32.totalorder %s114, %s115
    %p126 = scmp.eq.s32.totalorder %s17, 0
    %p127 = por %p125, %p126
    %p128 = scmp.ne.s32.totalorder %s114, %s115
    %p129 = scmp.eq.s32.totalorder %s18, 1
    %p130 = por %p128, %p129
    %p132 = scmp.ne.s32.totalorder %s115, %s131
    %p133 = scmp.eq.s32.totalorder %s18, 0
    %p134 = por %p132, %p133
    %s135 = ssub.s32 %s12, %s19
    %p136 = scmp.eq.s32.totalorder %s135, 0
    %s138 = sadd.s32 %s137, 1
    %s139 = scalar_select %p136, %s137, %s138
    %p142 = pneg %p136
    %p143 = scmp.eq.s32.totalorder %s12, 1
    %p144 = por %p142, %p143
    %p145 = scmp.ne.s32.totalorder %s137, %s140
    %p146 = scmp.eq.s32.totalorder %s12, 0
    %p147 = por %p145, %p146
    %p148 = scmp.ne.s32.totalorder %s137, %s140
    %p149 = scmp.eq.s32.totalorder %s17, 1
    %p150 = por %p148, %p149
    %p151 = scmp.ne.s32.totalorder %s140, %s141
    %p152 = scmp.eq.s32.totalorder %s17, 0
    %p153 = por %p151, %p152
    %p154 = scmp.ne.s32.totalorder %s140, %s141
    %p155 = scmp.eq.s32.totalorder %s18, 1
    %p156 = por %p154, %p155
    %p158 = scmp.ne.s32.totalorder %s141, %s157
    %p159 = scmp.eq.s32.totalorder %s18, 0
    %p160 = por %p158, %p159
    %p161 = scmp.le.s32.totalorder 1, %s12
    %p162 = scmp.lt.s32.totalorder %s12, 3
    %p163 = pnand %p161, %p162
    %p164 = pneg %p163
    // Predicated region
    $region9: #{bottleneck_forward.5} parent=5 // pred_check
      _
    $region10: #{bottleneck_forward.5} parent=5 // pred_check_branch
      %166 = sbr.rel (%p163) target = $region12
    $region11: #{bottleneck_forward.5} parent=5 // pred_region
      %s167 = ssub.s32 %s12, 1
      // Predicated region
      $region13: #{bottleneck_forward.5} parent=11 // pred_check
        %p168 = pneg %p59
      $region14: #{bottleneck_forward.5} parent=11 // pred_check_branch
        %170 = sbr.rel (%p168) target = $region16
      $region15: #{bottleneck_forward.5} parent=11 // pred_region
        _
      $region16: #{bottleneck_forward.5} parent=11 // pred_fallthru
        _
      // Predicated region
      $region17: #{bottleneck_forward.5} parent=11 // pred_check
        %p171 = pneg %p80
      $region18: #{bottleneck_forward.5} parent=11 // pred_check_branch
        %173 = sbr.rel (%p171) target = $region20
      $region19: #{bottleneck_forward.5} parent=11 // pred_region
        _
      $region20: #{bottleneck_forward.5} parent=11 // pred_fallthru
        _
      // Predicated region
      $region21: #{bottleneck_forward.5} parent=11 // pred_check
        %p174 = pneg %p101
      $region22: #{bottleneck_forward.5} parent=11 // pred_check_branch
        %176 = sbr.rel (%p174) target = $region24
      $region23: #{bottleneck_forward.5} parent=11 // pred_region
        _
      $region24: #{bottleneck_forward.5} parent=11 // pred_fallthru
        _
    $region12: #{bottleneck_forward.5} parent=5 // pred_fallthru
      _
    %p177 = scmp.lt.s32.totalorder %s12, 2
    // Predicated region
    $region25: #{bottleneck_forward.5} parent=5 // pred_check
      %p178 = pneg %p177
    $region26: #{bottleneck_forward.5} parent=5 // pred_check_branch
      %180 = sbr.rel (%p178) target = $region28
    $region27: #{bottleneck_forward.5} parent=5 // pred_region
      // Predicated region
      $region29: #{bottleneck_forward.5} parent=27 // pred_check
        %p181 = pneg %p32
      $region30: #{bottleneck_forward.5} parent=27 // pred_check_branch
        %183 = sbr.rel (%p181) target = $region32
      $region31: #{bottleneck_forward.5} parent=27 // pred_region
        %p184 = scmp.lt.s32.totalorder %s12, 1
        %s185 = scalar_select %p184, %s12, 1
        %s186 = smul.addr %s185, 32
        %s187 = smul.addr %s186, 4
        %s188 = scalar_lea.vmem %s0, %s187
      $region32: #{bottleneck_forward.5} parent=27 // pred_fallthru
        _
    $region28: #{bottleneck_forward.5} parent=5 // pred_fallthru
      _
    %p189 = scmp.le.s32.totalorder 1, %s12
    %p190 = scmp.lt.s32.totalorder %s12, 3
    %p191 = pnand %p189, %p190
    %p192 = pneg %p191
    // Predicated region
    $region33: #{bottleneck_forward.5} parent=5 // pred_check
      _
    $region34: #{bottleneck_forward.5} parent=5 // pred_check_branch
      %194 = sbr.rel (%p191) target = $region36
    $region35: #{bottleneck_forward.5} parent=5 // pred_region
      %s195 = ssub.s32 %s12, 1
      %p196 = scmp.lt.s32.totalorder %s17, 1
      %s197 = scalar_select %p196, %s17, 1
      %s198 = smul.addr %s197, 32
      %s199 = smul.addr %s198, 4
      %s200 = scalar_lea.vmem %s0, %s199
      %p201 = pneg %p38
      %p202 = pneg %p35
      %p203 = pneg %p59
      %p204 = pneg %p56
      %p205 = pneg %p80
      %p206 = pneg %p77
      %p207 = pneg %p101
      %p208 = pneg %p98
      %p209 = pneg %p127
      %p210 = pneg %p124
      %p211 = scmp.lt.s32.totalorder %s17, 1
      %s212 = scalar_select %p211, %s17, 1
      %s213 = smul.addr %s212, 32
      %s214 = smul.addr %s213, 4
      %s215 = scalar_lea.vmem %s4, %s214
      %p216 = pneg %p153
      %p217 = pneg %p150
      %p218 = scmp.lt.s32.totalorder %s17, 1
      %s219 = scalar_select %p218, %s17, 1
      %s220 = smul.addr %s219, 2
      %s221 = scalar_lea.vmem %s5, %s220
      %p222 = scmp.lt.s32.totalorder %s17, 1
      %s223 = scalar_select %p222, %s17, 1
      %s224 = smul.addr %s223, 32
      %s225 = smul.addr %s224, 4
      %s226 = scalar_lea.vmem %s0, %s225
      %p227 = scmp.lt.s32.totalorder %s17, 1
      %s228 = scalar_select %p227, %s17, 1
      %s229 = smul.addr %s228, 32
      %s230 = smul.addr %s229, 4
      %s231 = scalar_lea.vmem %s4, %s230
      %p232 = scmp.lt.s32.totalorder %s17, 1
      %s233 = scalar_select %p232, %s17, 1
      %s234 = smul.addr %s233, 2
      %s235 = scalar_lea.vmem %s5, %s234
      %v237 = vld [vmem:[%s226] sm:$0xf]
      %v238 = vld [vmem:[%s226 + $0x4] sm:$0xf]
      %v239 = vld [vmem:[%s226 + $0x8] sm:$0xf]
      %v240 = vld [vmem:[%s226 + $0xc] sm:$0xf]
      %v241 = vld [vmem:[%s226 + $0x10] sm:$0xf]
      %v242 = vld [vmem:[%s226 + $0x14] sm:$0xf]
      %v243 = vld [vmem:[%s226 + $0x18] sm:$0xf]
      %v244 = vld [vmem:[%s226 + $0x1c] sm:$0xf]
      %v245 = vld [vmem:[%s226 + $0x20] sm:$0xf]
      %v246 = vld [vmem:[%s226 + $0x24] sm:$0xf]
      %v247 = vld [vmem:[%s226 + $0x28] sm:$0xf]
      %v248 = vld [vmem:[%s226 + $0x2c] sm:$0xf]
      %v249 = vld [vmem:[%s226 + $0x30] sm:$0xf]
      %v250 = vld [vmem:[%s226 + $0x34] sm:$0xf]
      %v251 = vld [vmem:[%s226 + $0x38] sm:$0xf]
      %v252 = vld [vmem:[%s226 + $0x3c] sm:$0xf]
      %v253 = vld [vmem:[%s226 + $0x40] sm:$0xf]
      %v254 = vld [vmem:[%s226 + $0x44] sm:$0xf]
      %v255 = vld [vmem:[%s226 + $0x48] sm:$0xf]
      %v256 = vld [vmem:[%s226 + $0x4c] sm:$0xf]
      %v257 = vld [vmem:[%s226 + $0x50] sm:$0xf]
      %v258 = vld [vmem:[%s226 + $0x54] sm:$0xf]
      %v259 = vld [vmem:[%s226 + $0x58] sm:$0xf]
      %v260 = vld [vmem:[%s226 + $0x5c] sm:$0xf]
      %v261 = vld [vmem:[%s226 + $0x60] sm:$0xf]
      %v262 = vld [vmem:[%s226 + $0x64] sm:$0xf]
      %v263 = vld [vmem:[%s226 + $0x68] sm:$0xf]
      %v264 = vld [vmem:[%s226 + $0x6c] sm:$0xf]
      %v265 = vld [vmem:[%s226 + $0x70] sm:$0xf]
      %v266 = vld [vmem:[%s226 + $0x74] sm:$0xf]
      %v267 = vld [vmem:[%s226 + $0x78] sm:$0xf]
      %v268 = vld [vmem:[%s226 + $0x7c] sm:$0xf]
      %v269 = vunpack.c.l.bf16 %v237
      %v270 = vunpack.c.l.bf16 %v238
      %v271 = vunpack.c.l.bf16 %v239
      %v272 = vunpack.c.l.bf16 %v240
      %v273 = vunpack.c.l.bf16 %v241
      %v274 = vunpack.c.l.bf16 %v242
      %v275 = vunpack.c.l.bf16 %v243
      %v276 = vunpack.c.l.bf16 %v244
      %v277 = vunpack.c.l.bf16 %v245
      %v278 = vunpack.c.l.bf16 %v246
      %v279 = vunpack.c.l.bf16 %v247
      %v280 = vunpack.c.l.bf16 %v248
      %v281 = vunpack.c.l.bf16 %v249
      %v282 = vunpack.c.l.bf16 %v250
      %v283 = vunpack.c.l.bf16 %v251
      %v284 = vunpack.c.l.bf16 %v252
      %v285 = vunpack.c.l.bf16 %v253
      %v286 = vunpack.c.l.bf16 %v254
      %v287 = vunpack.c.l.bf16 %v255
      %v288 = vunpack.c.l.bf16 %v256
      %v289 = vunpack.c.l.bf16 %v257
      %v290 = vunpack.c.l.bf16 %v258
      %v291 = vunpack.c.l.bf16 %v259
      %v292 = vunpack.c.l.bf16 %v260
      %v293 = vunpack.c.l.bf16 %v261
      %v294 = vunpack.c.l.bf16 %v262
      %v295 = vunpack.c.l.bf16 %v263
      %v296 = vunpack.c.l.bf16 %v264
      %v297 = vunpack.c.l.bf16 %v265
      %v298 = vunpack.c.l.bf16 %v266
      %v299 = vunpack.c.l.bf16 %v267
      %v300 = vunpack.c.l.bf16 %v268
      %v301 = vld [vmem:[%s1] sm:$0x1]
      %v303 = vperm.slane %v301, 0
      %v305 = vmul.f32 %v269, %v303
      %v306 = vmul.f32 %v270, %v303
      %v307 = vmul.f32 %v271, %v303
      %v308 = vmul.f32 %v272, %v303
      %v309 = vmul.f32 %v273, %v303
      %v310 = vmul.f32 %v274, %v303
      %v311 = vmul.f32 %v275, %v303
      %v312 = vmul.f32 %v276, %v303
      %v313 = vmul.f32 %v277, %v303
      %v314 = vmul.f32 %v278, %v303
      %v315 = vmul.f32 %v279, %v303
      %v316 = vmul.f32 %v280, %v303
      %v317 = vmul.f32 %v281, %v303
      %v318 = vmul.f32 %v282, %v303
      %v319 = vmul.f32 %v283, %v303
      %v320 = vmul.f32 %v284, %v303
      %v321 = vmul.f32 %v285, %v303
      %v322 = vmul.f32 %v286, %v303
      %v323 = vmul.f32 %v287, %v303
      %v324 = vmul.f32 %v288, %v303
      %v325 = vmul.f32 %v289, %v303
      %v326 = vmul.f32 %v290, %v303
      %v327 = vmul.f32 %v291, %v303
      %v328 = vmul.f32 %v292, %v303
      %v329 = vmul.f32 %v293, %v303
      %v330 = vmul.f32 %v294, %v303
      %v331 = vmul.f32 %v295, %v303
      %v332 = vmul.f32 %v296, %v303
      %v333 = vmul.f32 %v297, %v303
      %v334 = vmul.f32 %v298, %v303
      %v335 = vmul.f32 %v299, %v303
      %v336 = vmul.f32 %v300, %v303
      %v337 = vld [vmem:[%s2] sm:$0x1]
      %v339 = vperm.slane %v337, 0
      %v341 = vadd.f32 %v305, %v339
      %v342 = vadd.f32 %v306, %v339
      %v343 = vadd.f32 %v307, %v339
      %v344 = vadd.f32 %v308, %v339
      %v345 = vadd.f32 %v309, %v339
      %v346 = vadd.f32 %v310, %v339
      %v347 = vadd.f32 %v311, %v339
      %v348 = vadd.f32 %v312, %v339
      %v349 = vadd.f32 %v313, %v339
      %v350 = vadd.f32 %v314, %v339
      %v351 = vadd.f32 %v315, %v339
      %v352 = vadd.f32 %v316, %v339
      %v353 = vadd.f32 %v317, %v339
      %v354 = vadd.f32 %v318, %v339
      %v355 = vadd.f32 %v319, %v339
      %v356 = vadd.f32 %v320, %v339
      %v357 = vadd.f32 %v321, %v339
      %v358 = vadd.f32 %v322, %v339
      %v359 = vadd.f32 %v323, %v339
      %v360 = vadd.f32 %v324, %v339
      %v361 = vadd.f32 %v325, %v339
      %v362 = vadd.f32 %v326, %v339
      %v363 = vadd.f32 %v327, %v339
      %v364 = vadd.f32 %v328, %v339
      %v365 = vadd.f32 %v329, %v339
      %v366 = vadd.f32 %v330, %v339
      %v367 = vadd.f32 %v331, %v339
      %v368 = vadd.f32 %v332, %v339
      %v369 = vadd.f32 %v333, %v339
      %v370 = vadd.f32 %v334, %v339
      %v371 = vadd.f32 %v335, %v339
      %v372 = vadd.f32 %v336, %v339
      %v373 = vmax.f32 %v341, 0.0
      %v374 = vmax.f32 %v342, 0.0
      %v375 = vmax.f32 %v343, 0.0
      %v376 = vmax.f32 %v344, 0.0
      %v377 = vmax.f32 %v345, 0.0
      %v378 = vmax.f32 %v346, 0.0
      %v379 = vmax.f32 %v347, 0.0
      %v380 = vmax.f32 %v348, 0.0
      %v381 = vmax.f32 %v349, 0.0
      %v382 = vmax.f32 %v350, 0.0
      %v383 = vmax.f32 %v351, 0.0
      %v384 = vmax.f32 %v352, 0.0
      %v385 = vmax.f32 %v353, 0.0
      %v386 = vmax.f32 %v354, 0.0
      %v387 = vmax.f32 %v355, 0.0
      %v388 = vmax.f32 %v356, 0.0
      %v389 = vmax.f32 %v357, 0.0
      %v390 = vmax.f32 %v358, 0.0
      %v391 = vmax.f32 %v359, 0.0
      %v392 = vmax.f32 %v360, 0.0
      %v393 = vmax.f32 %v361, 0.0
      %v394 = vmax.f32 %v362, 0.0
      %v395 = vmax.f32 %v363, 0.0
      %v396 = vmax.f32 %v364, 0.0
      %v397 = vmax.f32 %v365, 0.0
      %v398 = vmax.f32 %v366, 0.0
      %v399 = vmax.f32 %v367, 0.0
      %v400 = vmax.f32 %v368, 0.0
      %v401 = vmax.f32 %v369, 0.0
      %v402 = vmax.f32 %v370, 0.0
      %v403 = vmax.f32 %v371, 0.0
      %v404 = vmax.f32 %v372, 0.0
      %vm437 = vcmask 1040384
      %v438 = vrot.slane %v373, 7
      %v439 = vrot.slane %v374, 7
      %v440 = vsel %vm437, %v438, %v439
      %v441 = vrot.slane %v375, 7
      %v442 = vrot.slane %v376, 7
      %v443 = vsel %vm437, %v441, %v442
      %v444 = vrot.slane %v377, 7
      %v445 = vrot.slane %v378, 7
      %v446 = vsel %vm437, %v444, %v445
      %v447 = vrot.slane %v379, 7
      %v448 = vrot.slane %v380, 7
      %v449 = vsel %vm437, %v447, %v448
      %v450 = vrot.slane %v381, 7
      %v451 = vrot.slane %v382, 7
      %v452 = vsel %vm437, %v450, %v451
      %v453 = vrot.slane %v383, 7
      %v454 = vrot.slane %v384, 7
      %v455 = vsel %vm437, %v453, %v454
      %v456 = vrot.slane %v385, 7
      %v457 = vrot.slane %v386, 7
      %v458 = vsel %vm437, %v456, %v457
      %v459 = vrot.slane %v387, 7
      %v460 = vrot.slane %v388, 7
      %v461 = vsel %vm437, %v459, %v460
      %v462 = vrot.slane %v389, 7
      %v463 = vrot.slane %v390, 7
      %v464 = vsel %vm437, %v462, %v463
      %v465 = vrot.slane %v391, 7
      %v466 = vrot.slane %v392, 7
      %v467 = vsel %vm437, %v465, %v466
      %v468 = vrot.slane %v393, 7
      %v469 = vrot.slane %v394, 7
      %v470 = vsel %vm437, %v468, %v469
      %v471 = vrot.slane %v395, 7
      %v472 = vrot.slane %v396, 7
      %v473 = vsel %vm437, %v471, %v472
      %v474 = vrot.slane %v397, 7
      %v475 = vrot.slane %v398, 7
      %v476 = vsel %vm437, %v474, %v475
      %v477 = vrot.slane %v399, 7
      %v478 = vrot.slane %v400, 7
      %v479 = vsel %vm437, %v477, %v478
      %v480 = vrot.slane %v401, 7
      %v481 = vrot.slane %v402, 7
      %v482 = vsel %vm437, %v480, %v481
      %v483 = vrot.slane %v403, 7
      %v484 = vrot.slane %v404, 7
      %v485 = vsel %vm437, %v483, %v484
      %v534 = vsel %vm437, 0.0, %v438
      %v535 = vsel %vm437, 0.0, %v441
      %v536 = vsel %vm437, 0.0, %v444
      %v537 = vsel %vm437, 0.0, %v447
      %v538 = vsel %vm437, 0.0, %v450
      %v539 = vsel %vm437, 0.0, %v453
      %v540 = vsel %vm437, 0.0, %v456
      %v541 = vsel %vm437, 0.0, %v459
      %v542 = vsel %vm437, 0.0, %v462
      %v543 = vsel %vm437, 0.0, %v465
      %v544 = vsel %vm437, 0.0, %v468
      %v545 = vsel %vm437, 0.0, %v471
      %v546 = vsel %vm437, 0.0, %v474
      %v547 = vsel %vm437, 0.0, %v477
      %v548 = vsel %vm437, 0.0, %v480
      %v549 = vsel %vm437, 0.0, %v483
      %v550 = vsel %vm437, %v439, 0.0
      %v551 = vsel %vm437, %v442, 0.0
      %v552 = vsel %vm437, %v445, 0.0
      %v553 = vsel %vm437, %v448, 0.0
      %v554 = vsel %vm437, %v451, 0.0
      %v555 = vsel %vm437, %v454, 0.0
      %v556 = vsel %vm437, %v457, 0.0
      %v557 = vsel %vm437, %v460, 0.0
      %v558 = vsel %vm437, %v463, 0.0
      %v559 = vsel %vm437, %v466, 0.0
      %v560 = vsel %vm437, %v469, 0.0
      %v561 = vsel %vm437, %v472, 0.0
      %v562 = vsel %vm437, %v475, 0.0
      %v563 = vsel %vm437, %v478, 0.0
      %v564 = vsel %vm437, %v481, 0.0
      %v565 = vsel %vm437, %v484, 0.0
      %v566 = vpack.c.bf16 0.0, 0.0
      %v567 = vpack.c.bf16 %v440, %v534
      %v568 = vpack.c.bf16 %v443, %v535
      %v569 = vpack.c.bf16 %v446, %v536
      %v570 = vpack.c.bf16 %v449, %v537
      %v571 = vpack.c.bf16 %v452, %v538
      %v572 = vpack.c.bf16 %v455, %v539
      %v573 = vpack.c.bf16 %v458, %v540
      %v574 = vpack.c.bf16 %v461, %v541
      %v575 = vpack.c.bf16 %v464, %v542
      %v576 = vpack.c.bf16 %v467, %v543
      %v577 = vpack.c.bf16 %v470, %v544
      %v578 = vpack.c.bf16 %v473, %v545
      %v579 = vpack.c.bf16 %v476, %v546
      %v580 = vpack.c.bf16 %v479, %v547
      %v581 = vpack.c.bf16 %v482, %v548
      %v582 = vld [vmem:[%s3] sm:$0xf]
      %vm614 = vcmask 1046528
      %v615 = vrot.slane 0.0, 1
      %v616 = vsel %vm614, %v615, %v615
      %v617 = vrot.slane %v534, 1
      %v618 = vrot.slane %v440, 1
      %v619 = vsel %vm614, %v617, %v618
      %v620 = vrot.slane %v550, 1
      %v621 = vsel %vm614, %v618, %v620
      %v622 = vrot.slane %v535, 1
      %v623 = vrot.slane %v443, 1
      %v624 = vsel %vm614, %v622, %v623
      %v625 = vrot.slane %v551, 1
      %v626 = vsel %vm614, %v623, %v625
      %v627 = vrot.slane %v536, 1
      %v628 = vrot.slane %v446, 1
      %v629 = vsel %vm614, %v627, %v628
      %v630 = vrot.slane %v552, 1
      %v631 = vsel %vm614, %v628, %v630
      %v632 = vrot.slane %v537, 1
      %v633 = vrot.slane %v449, 1
      %v634 = vsel %vm614, %v632, %v633
      %v635 = vrot.slane %v553, 1
      %v636 = vsel %vm614, %v633, %v635
      %v637 = vrot.slane %v538, 1
      %v638 = vrot.slane %v452, 1
      %v639 = vsel %vm614, %v637, %v638
      %v640 = vrot.slane %v554, 1
      %v641 = vsel %vm614, %v638, %v640
      %v642 = vrot.slane %v539, 1
      %v643 = vrot.slane %v455, 1
      %v644 = vsel %vm614, %v642, %v643
      %v645 = vrot.slane %v555, 1
      %v646 = vsel %vm614, %v643, %v645
      %v647 = vrot.slane %v540, 1
      %v648 = vrot.slane %v458, 1
      %v649 = vsel %vm614, %v647, %v648
      %v650 = vrot.slane %v556, 1
      %v651 = vsel %vm614, %v648, %v650
      %v652 = vrot.slane %v541, 1
      %v653 = vrot.slane %v461, 1
      %v654 = vsel %vm614, %v652, %v653
      %v655 = vrot.slane %v557, 1
      %v656 = vsel %vm614, %v653, %v655
      %v657 = vrot.slane %v542, 1
      %v658 = vrot.slane %v464, 1
      %v659 = vsel %vm614, %v657, %v658
      %v660 = vrot.slane %v558, 1
      %v661 = vsel %vm614, %v658, %v660
      %v662 = vrot.slane %v543, 1
      %v663 = vrot.slane %v467, 1
      %v664 = vsel %vm614, %v662, %v663
      %v665 = vrot.slane %v559, 1
      %v666 = vsel %vm614, %v663, %v665
      %v667 = vrot.slane %v544, 1
      %v668 = vrot.slane %v470, 1
      %v669 = vsel %vm614, %v667, %v668
      %v670 = vrot.slane %v560, 1
      %v671 = vsel %vm614, %v668, %v670
      %v672 = vrot.slane %v545, 1
      %v673 = vrot.slane %v473, 1
      %v674 = vsel %vm614, %v672, %v673
      %v675 = vrot.slane %v561, 1
      %v676 = vsel %vm614, %v673, %v675
      %v677 = vrot.slane %v546, 1
      %v678 = vrot.slane %v476, 1
      %v679 = vsel %vm614, %v677, %v678
      %v680 = vrot.slane %v562, 1
      %v681 = vsel %vm614, %v678, %v680
      %v682 = vrot.slane %v547, 1
      %v683 = vrot.slane %v479, 1
      %v684 = vsel %vm614, %v682, %v683
      %v685 = vrot.slane %v563, 1
      %v686 = vsel %vm614, %v683, %v685
      %v687 = vrot.slane %v548, 1
      %v688 = vrot.slane %v482, 1
      %v689 = vsel %vm614, %v687, %v688
      %v690 = vrot.slane %v564, 1
      %v691 = vsel %vm614, %v688, %v690
      %v723 = vpack.c.bf16 %v616, %v616
      %v724 = vpack.c.bf16 %v621, %v619
      %v725 = vpack.c.bf16 %v626, %v624
      %v726 = vpack.c.bf16 %v631, %v629
      %v727 = vpack.c.bf16 %v636, %v634
      %v728 = vpack.c.bf16 %v641, %v639
      %v729 = vpack.c.bf16 %v646, %v644
      %v730 = vpack.c.bf16 %v651, %v649
      %v731 = vpack.c.bf16 %v656, %v654
      %v732 = vpack.c.bf16 %v661, %v659
      %v733 = vpack.c.bf16 %v666, %v664
      %v734 = vpack.c.bf16 %v671, %v669
      %v735 = vpack.c.bf16 %v676, %v674
      %v736 = vpack.c.bf16 %v681, %v679
      %v737 = vpack.c.bf16 %v686, %v684
      %v738 = vpack.c.bf16 %v691, %v689
      %s739 = scalar_lea.vmem %s3, 4
      %v740 = vld [vmem:[%s739] sm:$0xf]
      %vm741 = vcmask 64512
      %v743 = vsel %vm741, %v723, 0
      %v746 = vsel %vm741, %v724, 0
      %v749 = vsel %vm741, %v725, 0
      %v752 = vsel %vm741, %v726, 0
      %v755 = vsel %vm741, %v727, 0
      %v758 = vsel %vm741, %v728, 0
      %v761 = vsel %vm741, %v729, 0
      %v764 = vsel %vm741, %v730, 0
      %v767 = vsel %vm741, %v731, 0
      %v770 = vsel %vm741, %v732, 0
      %v773 = vsel %vm741, %v733, 0
      %v776 = vsel %vm741, %v734, 0
      %v779 = vsel %vm741, %v735, 0
      %v782 = vsel %vm741, %v736, 0
      %v785 = vsel %vm741, %v737, 0
      %v788 = vsel %vm741, %v738, 0
      %vm790 = vcmask 1043456
      %v792 = vsel %vm790, %v740, 0
      %794 = vmatpush.bf16.msra.mxu0 0
      %795 = vmatpush.bf16.msra.mxu0 0
      %796 = vmatpush.bf16.msra.mxu0 0
      %797 = vmatpush.bf16.msra.mxu0 0
      %798 = vmatpush.bf16.msra.mxu0 0
      %799 = vmatpush.bf16.msra.mxu0 0
      %800 = vmatpush.bf16.msra.mxu0 0
      %801 = vmatpush.bf16.msra.mxu0 %v792
      %802 = vmatmul.bf16.gmra.mxu0 %v743
      %v803 = vpop.f32.mrf.mxu0
      %v804 = vadd.f32 0.0, %v803
      %v805 = vpop.f32.mrf.mxu0
      %v806 = vadd.f32 0.0, %v805
      %807 = vmatmul.bf16.gmra.mxu0 %v746
      %v808 = vpop.f32.mrf.mxu0
      %v809 = vadd.f32 0.0, %v808
      %v810 = vpop.f32.mrf.mxu0
      %v811 = vadd.f32 0.0, %v810
      %812 = vmatmul.bf16.gmra.mxu0 %v749
      %v813 = vpop.f32.mrf.mxu0
      %v814 = vadd.f32 0.0, %v813
      %v815 = vpop.f32.mrf.mxu0
      %v816 = vadd.f32 0.0, %v815
      %817 = vmatmul.bf16.gmra.mxu0 %v752
      %v818 = vpop.f32.mrf.mxu0
      %v819 = vadd.f32 0.0, %v818
      %v820 = vpop.f32.mrf.mxu0
      %v821 = vadd.f32 0.0, %v820
      %822 = vmatmul.bf16.gmra.mxu0 %v755
      %v823 = vpop.f32.mrf.mxu0
      %v824 = vadd.f32 0.0, %v823
      %v825 = vpop.f32.mrf.mxu0
      %v826 = vadd.f32 0.0, %v825
      %827 = vmatmul.bf16.gmra.mxu0 %v758
      %v828 = vpop.f32.mrf.mxu0
      %v829 = vadd.f32 0.0, %v828
      %v830 = vpop.f32.mrf.mxu0
      %v831 = vadd.f32 0.0, %v830
      %832 = vmatmul.bf16.gmra.mxu0 %v761
      %v833 = vpop.f32.mrf.mxu0
      %v834 = vadd.f32 0.0, %v833
      %v835 = vpop.f32.mrf.mxu0
      %v836 = vadd.f32 0.0, %v835
      %837 = vmatmul.bf16.gmra.mxu0 %v764
      %v838 = vpop.f32.mrf.mxu0
      %v839 = vadd.f32 0.0, %v838
      %v840 = vpop.f32.mrf.mxu0
      %v841 = vadd.f32 0.0, %v840
      %842 = vmatmul.bf16.gmra.mxu0 %v767
      %v843 = vpop.f32.mrf.mxu0
      %v844 = vadd.f32 0.0, %v843
      %v845 = vpop.f32.mrf.mxu0
      %v846 = vadd.f32 0.0, %v845
      %847 = vmatmul.bf16.gmra.mxu0 %v770
      %v848 = vpop.f32.mrf.mxu0
      %v849 = vadd.f32 0.0, %v848
      %v850 = vpop.f32.mrf.mxu0
      %v851 = vadd.f32 0.0, %v850
      %852 = vmatmul.bf16.gmra.mxu0 %v773
      %v853 = vpop.f32.mrf.mxu0
      %v854 = vadd.f32 0.0, %v853
      %v855 = vpop.f32.mrf.mxu0
      %v856 = vadd.f32 0.0, %v855
      %857 = vmatmul.bf16.gmra.mxu0 %v776
      %v858 = vpop.f32.mrf.mxu0
      %v859 = vadd.f32 0.0, %v858
      %v860 = vpop.f32.mrf.mxu0
      %v861 = vadd.f32 0.0, %v860
      %862 = vmatmul.bf16.gmra.mxu0 %v779
      %v863 = vpop.f32.mrf.mxu0
      %v864 = vadd.f32 0.0, %v863
      %v865 = vpop.f32.mrf.mxu0
      %v866 = vadd.f32 0.0, %v865
      %867 = vmatmul.bf16.gmra.mxu0 %v782
      %v868 = vpop.f32.mrf.mxu0
      %v869 = vadd.f32 0.0, %v868
      %v870 = vpop.f32.mrf.mxu0
      %v871 = vadd.f32 0.0, %v870
      %872 = vmatmul.bf16.gmra.mxu0 %v785
      %v873 = vpop.f32.mrf.mxu0
      %v874 = vadd.f32 0.0, %v873
      %v875 = vpop.f32.mrf.mxu0
      %v876 = vadd.f32 0.0, %v875
      %877 = vmatmul.bf16.gmra.mxu0 %v788
      %v878 = vpop.f32.mrf.mxu0
      %v879 = vadd.f32 0.0, %v878
      %v880 = vpop.f32.mrf.mxu0
      %v881 = vadd.f32 0.0, %v880
      %882 = vdwg.mxu0
      %v884 = vsel %vm741, %v566, 0
      %v887 = vsel %vm741, %v567, 0
      %v890 = vsel %vm741, %v568, 0
      %v893 = vsel %vm741, %v569, 0
      %v896 = vsel %vm741, %v570, 0
      %v899 = vsel %vm741, %v571, 0
      %v902 = vsel %vm741, %v572, 0
      %v905 = vsel %vm741, %v573, 0
      %v908 = vsel %vm741, %v574, 0
      %v911 = vsel %vm741, %v575, 0
      %v914 = vsel %vm741, %v576, 0
      %v917 = vsel %vm741, %v577, 0
      %v920 = vsel %vm741, %v578, 0
      %v923 = vsel %vm741, %v579, 0
      %v926 = vsel %vm741, %v580, 0
      %v929 = vsel %vm741, %v581, 0
      %v932 = vsel %vm790, %v582, 0
      %934 = vmatpush.bf16.msra.mxu0 0
      %935 = vmatpush.bf16.msra.mxu0 0
      %936 = vmatpush.bf16.msra.mxu0 0
      %937 = vmatpush.bf16.msra.mxu0 0
      %938 = vmatpush.bf16.msra.mxu0 0
      %939 = vmatpush.bf16.msra.mxu0 0
      %940 = vmatpush.bf16.msra.mxu0 0
      %941 = vmatpush.bf16.msra.mxu0 %v932
      %942 = vmatmul.bf16.gmra.mxu0 %v884
      %v943 = vpop.f32.mrf.mxu0
      %v944 = vadd.f32 %v804, %v943
      %v945 = vpop.f32.mrf.mxu0
      %v946 = vadd.f32 %v806, %v945
      %947 = vmatmul.bf16.gmra.mxu0 %v887
      %v948 = vpop.f32.mrf.mxu0
      %v949 = vadd.f32 %v809, %v948
      %v950 = vpop.f32.mrf.mxu0
      %v951 = vadd.f32 %v811, %v950
      %952 = vmatmul.bf16.gmra.mxu0 %v890
      %v953 = vpop.f32.mrf.mxu0
      %v954 = vadd.f32 %v814, %v953
      %v955 = vpop.f32.mrf.mxu0
      %v956 = vadd.f32 %v816, %v955
      %957 = vmatmul.bf16.gmra.mxu0 %v893
      %v958 = vpop.f32.mrf.mxu0
      %v959 = vadd.f32 %v819, %v958
      %v960 = vpop.f32.mrf.mxu0
      %v961 = vadd.f32 %v821, %v960
      %962 = vmatmul.bf16.gmra.mxu0 %v896
      %v963 = vpop.f32.mrf.mxu0
      %v964 = vadd.f32 %v824, %v963
      %v965 = vpop.f32.mrf.mxu0
      %v966 = vadd.f32 %v826, %v965
      %967 = vmatmul.bf16.gmra.mxu0 %v899
      %v968 = vpop.f32.mrf.mxu0
      %v969 = vadd.f32 %v829, %v968
      %v970 = vpop.f32.mrf.mxu0
      %v971 = vadd.f32 %v831, %v970
      %972 = vmatmul.bf16.gmra.mxu0 %v902
      %v973 = vpop.f32.mrf.mxu0
      %v974 = vadd.f32 %v834, %v973
      %v975 = vpop.f32.mrf.mxu0
      %v976 = vadd.f32 %v836, %v975
      %977 = vmatmul.bf16.gmra.mxu0 %v905
      %v978 = vpop.f32.mrf.mxu0
      %v979 = vadd.f32 %v839, %v978
      %v980 = vpop.f32.mrf.mxu0
      %v981 = vadd.f32 %v841, %v980
      %982 = vmatmul.bf16.gmra.mxu0 %v908
      %v983 = vpop.f32.mrf.mxu0
      %v984 = vadd.f32 %v844, %v983
      %v985 = vpop.f32.mrf.mxu0
      %v986 = vadd.f32 %v846, %v985
      %987 = vmatmul.bf16.gmra.mxu0 %v911
      %v988 = vpop.f32.mrf.mxu0
      %v989 = vadd.f32 %v849, %v988
      %v990 = vpop.f32.mrf.mxu0
      %v991 = vadd.f32 %v851, %v990
      %992 = vmatmul.bf16.gmra.mxu0 %v914
      %v993 = vpop.f32.mrf.mxu0
      %v994 = vadd.f32 %v854, %v993
      %v995 = vpop.f32.mrf.mxu0
      %v996 = vadd.f32 %v856, %v995
      %997 = vmatmul.bf16.gmra.mxu0 %v917
      %v998 = vpop.f32.mrf.mxu0
      %v999 = vadd.f32 %v859, %v998
      %v1000 = vpop.f32.mrf.mxu0
      %v1001 = vadd.f32 %v861, %v1000
      %1002 = vmatmul.bf16.gmra.mxu0 %v920
      %v1003 = vpop.f32.mrf.mxu0
      %v1004 = vadd.f32 %v864, %v1003
      %v1005 = vpop.f32.mrf.mxu0
      %v1006 = vadd.f32 %v866, %v1005
      %1007 = vmatmul.bf16.gmra.mxu0 %v923
      %v1008 = vpop.f32.mrf.mxu0
      %v1009 = vadd.f32 %v869, %v1008
      %v1010 = vpop.f32.mrf.mxu0
      %v1011 = vadd.f32 %v871, %v1010
      %1012 = vmatmul.bf16.gmra.mxu0 %v926
      %v1013 = vpop.f32.mrf.mxu0
      %v1014 = vadd.f32 %v874, %v1013
      %v1015 = vpop.f32.mrf.mxu0
      %v1016 = vadd.f32 %v876, %v1015
      %1017 = vmatmul.bf16.gmra.mxu0 %v929
      %v1018 = vpop.f32.mrf.mxu0
      %v1019 = vadd.f32 %v879, %v1018
      %v1020 = vpop.f32.mrf.mxu0
      %v1021 = vadd.f32 %v881, %v1020
      %1022 = vdwg.mxu0
      %vm1023 = vcmask 1045504
      %v1024 = vrot.slane 0.0, 2
      %v1025 = vsel %vm1023, %v1024, %v1024
      %v1026 = vrot.slane %v534, 2
      %v1027 = vrot.slane %v440, 2
      %v1028 = vsel %vm1023, %v1026, %v1027
      %v1029 = vrot.slane %v550, 2
      %v1030 = vsel %vm1023, %v1027, %v1029
      %v1031 = vrot.slane %v535, 2
      %v1032 = vrot.slane %v443, 2
      %v1033 = vsel %vm1023, %v1031, %v1032
      %v1034 = vrot.slane %v551, 2
      %v1035 = vsel %vm1023, %v1032, %v1034
      %v1036 = vrot.slane %v536, 2
      %v1037 = vrot.slane %v446, 2
      %v1038 = vsel %vm1023, %v1036, %v1037
      %v1039 = vrot.slane %v552, 2
      %v1040 = vsel %vm1023, %v1037, %v1039
      %v1041 = vrot.slane %v537, 2
      %v1042 = vrot.slane %v449, 2
      %v1043 = vsel %vm1023, %v1041, %v1042
      %v1044 = vrot.slane %v553, 2
      %v1045 = vsel %vm1023, %v1042, %v1044
      %v1046 = vrot.slane %v538, 2
      %v1047 = vrot.slane %v452, 2
      %v1048 = vsel %vm1023, %v1046, %v1047
      %v1049 = vrot.slane %v554, 2
      %v1050 = vsel %vm1023, %v1047, %v1049
      %v1051 = vrot.slane %v539, 2
      %v1052 = vrot.slane %v455, 2
      %v1053 = vsel %vm1023, %v1051, %v1052
      %v1054 = vrot.slane %v555, 2
      %v1055 = vsel %vm1023, %v1052, %v1054
      %v1056 = vrot.slane %v540, 2
      %v1057 = vrot.slane %v458, 2
      %v1058 = vsel %vm1023, %v1056, %v1057
      %v1059 = vrot.slane %v556, 2
      %v1060 = vsel %vm1023, %v1057, %v1059
      %v1061 = vrot.slane %v541, 2
      %v1062 = vrot.slane %v461, 2
      %v1063 = vsel %vm1023, %v1061, %v1062
      %v1064 = vrot.slane %v557, 2
      %v1065 = vsel %vm1023, %v1062, %v1064
      %v1066 = vrot.slane %v542, 2
      %v1067 = vrot.slane %v464, 2
      %v1068 = vsel %vm1023, %v1066, %v1067
      %v1069 = vrot.slane %v558, 2
      %v1070 = vsel %vm1023, %v1067, %v1069
      %v1071 = vrot.slane %v543, 2
      %v1072 = vrot.slane %v467, 2
      %v1073 = vsel %vm1023, %v1071, %v1072
      %v1074 = vrot.slane %v559, 2
      %v1075 = vsel %vm1023, %v1072, %v1074
      %v1076 = vrot.slane %v544, 2
      %v1077 = vrot.slane %v470, 2
      %v1078 = vsel %vm1023, %v1076, %v1077
      %v1079 = vrot.slane %v560, 2
      %v1080 = vsel %vm1023, %v1077, %v1079
      %v1081 = vrot.slane %v545, 2
      %v1082 = vrot.slane %v473, 2
      %v1083 = vsel %vm1023, %v1081, %v1082
      %v1084 = vrot.slane %v561, 2
      %v1085 = vsel %vm1023, %v1082, %v1084
      %v1086 = vrot.slane %v546, 2
      %v1087 = vrot.slane %v476, 2
      %v1088 = vsel %vm1023, %v1086, %v1087
      %v1089 = vrot.slane %v562, 2
      %v1090 = vsel %vm1023, %v1087, %v1089
      %v1091 = vrot.slane %v547, 2
      %v1092 = vrot.slane %v479, 2
      %v1093 = vsel %vm1023, %v1091, %v1092
      %v1094 = vrot.slane %v563, 2
      %v1095 = vsel %vm1023, %v1092, %v1094
      %v1096 = vrot.slane %v548, 2
      %v1097 = vrot.slane %v482, 2
      %v1098 = vsel %vm1023, %v1096, %v1097
      %v1099 = vrot.slane %v564, 2
      %v1100 = vsel %vm1023, %v1097, %v1099
      %v1132 = vpack.c.bf16 %v1025, %v1025
      %v1133 = vpack.c.bf16 %v1030, %v1028
      %v1134 = vpack.c.bf16 %v1035, %v1033
      %v1135 = vpack.c.bf16 %v1040, %v1038
      %v1136 = vpack.c.bf16 %v1045, %v1043
      %v1137 = vpack.c.bf16 %v1050, %v1048
      %v1138 = vpack.c.bf16 %v1055, %v1053
      %v1139 = vpack.c.bf16 %v1060, %v1058
      %v1140 = vpack.c.bf16 %v1065, %v1063
      %v1141 = vpack.c.bf16 %v1070, %v1068
      %v1142 = vpack.c.bf16 %v1075, %v1073
      %v1143 = vpack.c.bf16 %v1080, %v1078
      %v1144 = vpack.c.bf16 %v1085, %v1083
      %v1145 = vpack.c.bf16 %v1090, %v1088
      %v1146 = vpack.c.bf16 %v1095, %v1093
      %v1147 = vpack.c.bf16 %v1100, %v1098
      %s1148 = scalar_lea.vmem %s3, 8
      %v1149 = vld [vmem:[%s1148] sm:$0xf]
      %v1151 = vsel %vm741, %v1132, 0
      %v1154 = vsel %vm741, %v1133, 0
      %v1157 = vsel %vm741, %v1134, 0
      %v1160 = vsel %vm741, %v1135, 0
      %v1163 = vsel %vm741, %v1136, 0
      %v1166 = vsel %vm741, %v1137, 0
      %v1169 = vsel %vm741, %v1138, 0
      %v1172 = vsel %vm741, %v1139, 0
      %v1175 = vsel %vm741, %v1140, 0
      %v1178 = vsel %vm741, %v1141, 0
      %v1181 = vsel %vm741, %v1142, 0
      %v1184 = vsel %vm741, %v1143, 0
      %v1187 = vsel %vm741, %v1144, 0
      %v1190 = vsel %vm741, %v1145, 0
      %v1193 = vsel %vm741, %v1146, 0
      %v1196 = vsel %vm741, %v1147, 0
      %v1199 = vsel %vm790, %v1149, 0
      %1201 = vmatpush.bf16.msra.mxu0 0
      %1202 = vmatpush.bf16.msra.mxu0 0
      %1203 = vmatpush.bf16.msra.mxu0 0
      %1204 = vmatpush.bf16.msra.mxu0 0
      %1205 = vmatpush.bf16.msra.mxu0 0
      %1206 = vmatpush.bf16.msra.mxu0 0
      %1207 = vmatpush.bf16.msra.mxu0 0
      %1208 = vmatpush.bf16.msra.mxu0 %v1199
      %1209 = vmatmul.bf16.gmra.mxu0 %v1151
      %v1210 = vpop.f32.mrf.mxu0
      %v1211 = vadd.f32 0.0, %v1210
      %v1212 = vpop.f32.mrf.mxu0
      %v1213 = vadd.f32 0.0, %v1212
      %1214 = vmatmul.bf16.gmra.mxu0 %v1154
      %v1215 = vpop.f32.mrf.mxu0
      %v1216 = vadd.f32 0.0, %v1215
      %v1217 = vpop.f32.mrf.mxu0
      %v1218 = vadd.f32 0.0, %v1217
      %1219 = vmatmul.bf16.gmra.mxu0 %v1157
      %v1220 = vpop.f32.mrf.mxu0
      %v1221 = vadd.f32 0.0, %v1220
      %v1222 = vpop.f32.mrf.mxu0
      %v1223 = vadd.f32 0.0, %v1222
      %1224 = vmatmul.bf16.gmra.mxu0 %v1160
      %v1225 = vpop.f32.mrf.mxu0
      %v1226 = vadd.f32 0.0, %v1225
      %v1227 = vpop.f32.mrf.mxu0
      %v1228 = vadd.f32 0.0, %v1227
      %1229 = vmatmul.bf16.gmra.mxu0 %v1163
      %v1230 = vpop.f32.mrf.mxu0
      %v1231 = vadd.f32 0.0, %v1230
      %v1232 = vpop.f32.mrf.mxu0
      %v1233 = vadd.f32 0.0, %v1232
      %1234 = vmatmul.bf16.gmra.mxu0 %v1166
      %v1235 = vpop.f32.mrf.mxu0
      %v1236 = vadd.f32 0.0, %v1235
      %v1237 = vpop.f32.mrf.mxu0
      %v1238 = vadd.f32 0.0, %v1237
      %1239 = vmatmul.bf16.gmra.mxu0 %v1169
      %v1240 = vpop.f32.mrf.mxu0
      %v1241 = vadd.f32 0.0, %v1240
      %v1242 = vpop.f32.mrf.mxu0
      %v1243 = vadd.f32 0.0, %v1242
      %1244 = vmatmul.bf16.gmra.mxu0 %v1172
      %v1245 = vpop.f32.mrf.mxu0
      %v1246 = vadd.f32 0.0, %v1245
      %v1247 = vpop.f32.mrf.mxu0
      %v1248 = vadd.f32 0.0, %v1247
      %1249 = vmatmul.bf16.gmra.mxu0 %v1175
      %v1250 = vpop.f32.mrf.mxu0
      %v1251 = vadd.f32 0.0, %v1250
      %v1252 = vpop.f32.mrf.mxu0
      %v1253 = vadd.f32 0.0, %v1252
      %1254 = vmatmul.bf16.gmra.mxu0 %v1178
      %v1255 = vpop.f32.mrf.mxu0
      %v1256 = vadd.f32 0.0, %v1255
      %v1257 = vpop.f32.mrf.mxu0
      %v1258 = vadd.f32 0.0, %v1257
      %1259 = vmatmul.bf16.gmra.mxu0 %v1181
      %v1260 = vpop.f32.mrf.mxu0
      %v1261 = vadd.f32 0.0, %v1260
      %v1262 = vpop.f32.mrf.mxu0
      %v1263 = vadd.f32 0.0, %v1262
      %1264 = vmatmul.bf16.gmra.mxu0 %v1184
      %v1265 = vpop.f32.mrf.mxu0
      %v1266 = vadd.f32 0.0, %v1265
      %v1267 = vpop.f32.mrf.mxu0
      %v1268 = vadd.f32 0.0, %v1267
      %1269 = vmatmul.bf16.gmra.mxu0 %v1187
      %v1270 = vpop.f32.mrf.mxu0
      %v1271 = vadd.f32 0.0, %v1270
      %v1272 = vpop.f32.mrf.mxu0
      %v1273 = vadd.f32 0.0, %v1272
      %1274 = vmatmul.bf16.gmra.mxu0 %v1190
      %v1275 = vpop.f32.mrf.mxu0
      %v1276 = vadd.f32 0.0, %v1275
      %v1277 = vpop.f32.mrf.mxu0
      %v1278 = vadd.f32 0.0, %v1277
      %1279 = vmatmul.bf16.gmra.mxu0 %v1193
      %v1280 = vpop.f32.mrf.mxu0
      %v1281 = vadd.f32 0.0, %v1280
      %v1282 = vpop.f32.mrf.mxu0
      %v1283 = vadd.f32 0.0, %v1282
      %1284 = vmatmul.bf16.gmra.mxu0 %v1196
      %v1285 = vpop.f32.mrf.mxu0
      %v1286 = vadd.f32 0.0, %v1285
      %v1287 = vpop.f32.mrf.mxu0
      %v1288 = vadd.f32 0.0, %v1287
      %1289 = vdwg.mxu0
      %v1290 = vadd.f32 %v944, %v1211
      %v1291 = vadd.f32 %v946, %v1213
      %v1292 = vadd.f32 %v949, %v1216
      %v1293 = vadd.f32 %v951, %v1218
      %v1294 = vadd.f32 %v954, %v1221
      %v1295 = vadd.f32 %v956, %v1223
      %v1296 = vadd.f32 %v959, %v1226
      %v1297 = vadd.f32 %v961, %v1228
      %v1298 = vadd.f32 %v964, %v1231
      %v1299 = vadd.f32 %v966, %v1233
      %v1300 = vadd.f32 %v969, %v1236
      %v1301 = vadd.f32 %v971, %v1238
      %v1302 = vadd.f32 %v974, %v1241
      %v1303 = vadd.f32 %v976, %v1243
      %v1304 = vadd.f32 %v979, %v1246
      %v1305 = vadd.f32 %v981, %v1248
      %v1306 = vadd.f32 %v984, %v1251
      %v1307 = vadd.f32 %v986, %v1253
      %v1308 = vadd.f32 %v989, %v1256
      %v1309 = vadd.f32 %v991, %v1258
      %v1310 = vadd.f32 %v994, %v1261
      %v1311 = vadd.f32 %v996, %v1263
      %v1312 = vadd.f32 %v999, %v1266
      %v1313 = vadd.f32 %v1001, %v1268
      %v1314 = vadd.f32 %v1004, %v1271
      %v1315 = vadd.f32 %v1006, %v1273
      %v1316 = vadd.f32 %v1009, %v1276
      %v1317 = vadd.f32 %v1011, %v1278
      %v1318 = vadd.f32 %v1014, %v1281
      %v1319 = vadd.f32 %v1016, %v1283
      %v1320 = vadd.f32 %v1019, %v1286
      %v1321 = vadd.f32 %v1021, %v1288
      %v1322 = vpack.c.bf16 %v485, %v549
      %s1323 = scalar_lea.vmem %s3, 12
      %v1324 = vld [vmem:[%s1323] sm:$0xf]
      %v1326 = vsel %vm741, %v1322, 0
      %v1329 = vsel %vm790, %v1324, 0
      %1331 = vmatpush.bf16.msra.mxu0 0
      %1332 = vmatpush.bf16.msra.mxu0 0
      %1333 = vmatpush.bf16.msra.mxu0 0
      %1334 = vmatpush.bf16.msra.mxu0 0
      %1335 = vmatpush.bf16.msra.mxu0 0
      %1336 = vmatpush.bf16.msra.mxu0 0
      %1337 = vmatpush.bf16.msra.mxu0 0
      %1338 = vmatpush.bf16.msra.mxu0 %v1329
      %1339 = vmatmul.bf16.gmra.mxu0 %v887
      %v1340 = vpop.f32.mrf.mxu0
      %v1341 = vadd.f32 0.0, %v1340
      %v1342 = vpop.f32.mrf.mxu0
      %v1343 = vadd.f32 0.0, %v1342
      %1344 = vmatmul.bf16.gmra.mxu0 %v890
      %v1345 = vpop.f32.mrf.mxu0
      %v1346 = vadd.f32 0.0, %v1345
      %v1347 = vpop.f32.mrf.mxu0
      %v1348 = vadd.f32 0.0, %v1347
      %1349 = vmatmul.bf16.gmra.mxu0 %v893
      %v1350 = vpop.f32.mrf.mxu0
      %v1351 = vadd.f32 0.0, %v1350
      %v1352 = vpop.f32.mrf.mxu0
      %v1353 = vadd.f32 0.0, %v1352
      %1354 = vmatmul.bf16.gmra.mxu0 %v896
      %v1355 = vpop.f32.mrf.mxu0
      %v1356 = vadd.f32 0.0, %v1355
      %v1357 = vpop.f32.mrf.mxu0
      %v1358 = vadd.f32 0.0, %v1357
      %1359 = vmatmul.bf16.gmra.mxu0 %v899
      %v1360 = vpop.f32.mrf.mxu0
      %v1361 = vadd.f32 0.0, %v1360
      %v1362 = vpop.f32.mrf.mxu0
      %v1363 = vadd.f32 0.0, %v1362
      %1364 = vmatmul.bf16.gmra.mxu0 %v902
      %v1365 = vpop.f32.mrf.mxu0
      %v1366 = vadd.f32 0.0, %v1365
      %v1367 = vpop.f32.mrf.mxu0
      %v1368 = vadd.f32 0.0, %v1367
      %1369 = vmatmul.bf16.gmra.mxu0 %v905
      %v1370 = vpop.f32.mrf.mxu0
      %v1371 = vadd.f32 0.0, %v1370
      %v1372 = vpop.f32.mrf.mxu0
      %v1373 = vadd.f32 0.0, %v1372
      %1374 = vmatmul.bf16.gmra.mxu0 %v908
      %v1375 = vpop.f32.mrf.mxu0
      %v1376 = vadd.f32 0.0, %v1375
      %v1377 = vpop.f32.mrf.mxu0
      %v1378 = vadd.f32 0.0, %v1377
      %1379 = vmatmul.bf16.gmra.mxu0 %v911
      %v1380 = vpop.f32.mrf.mxu0
      %v1381 = vadd.f32 0.0, %v1380
      %v1382 = vpop.f32.mrf.mxu0
      %v1383 = vadd.f32 0.0, %v1382
      %1384 = vmatmul.bf16.gmra.mxu0 %v914
      %v1385 = vpop.f32.mrf.mxu0
      %v1386 = vadd.f32 0.0, %v1385
      %v1387 = vpop.f32.mrf.mxu0
      %v1388 = vadd.f32 0.0, %v1387
      %1389 = vmatmul.bf16.gmra.mxu0 %v917
      %v1390 = vpop.f32.mrf.mxu0
      %v1391 = vadd.f32 0.0, %v1390
      %v1392 = vpop.f32.mrf.mxu0
      %v1393 = vadd.f32 0.0, %v1392
      %1394 = vmatmul.bf16.gmra.mxu0 %v920
      %v1395 = vpop.f32.mrf.mxu0
      %v1396 = vadd.f32 0.0, %v1395
      %v1397 = vpop.f32.mrf.mxu0
      %v1398 = vadd.f32 0.0, %v1397
      %1399 = vmatmul.bf16.gmra.mxu0 %v923
      %v1400 = vpop.f32.mrf.mxu0
      %v1401 = vadd.f32 0.0, %v1400
      %v1402 = vpop.f32.mrf.mxu0
      %v1403 = vadd.f32 0.0, %v1402
      %1404 = vmatmul.bf16.gmra.mxu0 %v926
      %v1405 = vpop.f32.mrf.mxu0
      %v1406 = vadd.f32 0.0, %v1405
      %v1407 = vpop.f32.mrf.mxu0
      %v1408 = vadd.f32 0.0, %v1407
      %1409 = vmatmul.bf16.gmra.mxu0 %v929
      %v1410 = vpop.f32.mrf.mxu0
      %v1411 = vadd.f32 0.0, %v1410
      %v1412 = vpop.f32.mrf.mxu0
      %v1413 = vadd.f32 0.0, %v1412
      %1414 = vmatmul.bf16.gmra.mxu0 %v1326
      %v1415 = vpop.f32.mrf.mxu0
      %v1416 = vadd.f32 0.0, %v1415
      %v1417 = vpop.f32.mrf.mxu0
      %v1418 = vadd.f32 0.0, %v1417
      %1419 = vdwg.mxu0
      %v1420 = vadd.f32 %v1290, %v1341
      %v1421 = vadd.f32 %v1291, %v1343
      %v1422 = vadd.f32 %v1292, %v1346
      %v1423 = vadd.f32 %v1293, %v1348
      %v1424 = vadd.f32 %v1294, %v1351
      %v1425 = vadd.f32 %v1295, %v1353
      %v1426 = vadd.f32 %v1296, %v1356
      %v1427 = vadd.f32 %v1297, %v1358
      %v1428 = vadd.f32 %v1298, %v1361
      %v1429 = vadd.f32 %v1299, %v1363
      %v1430 = vadd.f32 %v1300, %v1366
      %v1431 = vadd.f32 %v1301, %v1368
      %v1432 = vadd.f32 %v1302, %v1371
      %v1433 = vadd.f32 %v1303, %v1373
      %v1434 = vadd.f32 %v1304, %v1376
      %v1435 = vadd.f32 %v1305, %v1378
      %v1436 = vadd.f32 %v1306, %v1381
      %v1437 = vadd.f32 %v1307, %v1383
      %v1438 = vadd.f32 %v1308, %v1386
      %v1439 = vadd.f32 %v1309, %v1388
      %v1440 = vadd.f32 %v1310, %v1391
      %v1441 = vadd.f32 %v1311, %v1393
      %v1442 = vadd.f32 %v1312, %v1396
      %v1443 = vadd.f32 %v1313, %v1398
      %v1444 = vadd.f32 %v1314, %v1401
      %v1445 = vadd.f32 %v1315, %v1403
      %v1446 = vadd.f32 %v1316, %v1406
      %v1447 = vadd.f32 %v1317, %v1408
      %v1448 = vadd.f32 %v1318, %v1411
      %v1449 = vadd.f32 %v1319, %v1413
      %v1450 = vadd.f32 %v1320, %v1416
      %v1451 = vadd.f32 %v1321, %v1418
      %v1454 = vrot.slane %v549, 1
      %v1455 = vrot.slane %v485, 1
      %v1456 = vsel %vm614, %v1454, %v1455
      %v1457 = vrot.slane %v565, 1
      %v1458 = vsel %vm614, %v1455, %v1457
      %v1461 = vpack.c.bf16 %v1458, %v1456
      %s1462 = scalar_lea.vmem %s3, 16
      %v1463 = vld [vmem:[%s1462] sm:$0xf]
      %v1465 = vsel %vm741, %v1461, 0
      %v1468 = vsel %vm790, %v1463, 0
      %1470 = vmatpush.bf16.msra.mxu0 0
      %1471 = vmatpush.bf16.msra.mxu0 0
      %1472 = vmatpush.bf16.msra.mxu0 0
      %1473 = vmatpush.bf16.msra.mxu0 0
      %1474 = vmatpush.bf16.msra.mxu0 0
      %1475 = vmatpush.bf16.msra.mxu0 0
      %1476 = vmatpush.bf16.msra.mxu0 0
      %1477 = vmatpush.bf16.msra.mxu0 %v1468
      %1478 = vmatmul.bf16.gmra.mxu0 %v746
      %v1479 = vpop.f32.mrf.mxu0
      %v1480 = vadd.f32 0.0, %v1479
      %v1481 = vpop.f32.mrf.mxu0
      %v1482 = vadd.f32 0.0, %v1481
      %1483 = vmatmul.bf16.gmra.mxu0 %v749
      %v1484 = vpop.f32.mrf.mxu0
      %v1485 = vadd.f32 0.0, %v1484
      %v1486 = vpop.f32.mrf.mxu0
      %v1487 = vadd.f32 0.0, %v1486
      %1488 = vmatmul.bf16.gmra.mxu0 %v752
      %v1489 = vpop.f32.mrf.mxu0
      %v1490 = vadd.f32 0.0, %v1489
      %v1491 = vpop.f32.mrf.mxu0
      %v1492 = vadd.f32 0.0, %v1491
      %1493 = vmatmul.bf16.gmra.mxu0 %v755
      %v1494 = vpop.f32.mrf.mxu0
      %v1495 = vadd.f32 0.0, %v1494
      %v1496 = vpop.f32.mrf.mxu0
      %v1497 = vadd.f32 0.0, %v1496
      %1498 = vmatmul.bf16.gmra.mxu0 %v758
      %v1499 = vpop.f32.mrf.mxu0
      %v1500 = vadd.f32 0.0, %v1499
      %v1501 = vpop.f32.mrf.mxu0
      %v1502 = vadd.f32 0.0, %v1501
      %1503 = vmatmul.bf16.gmra.mxu0 %v761
      %v1504 = vpop.f32.mrf.mxu0
      %v1505 = vadd.f32 0.0, %v1504
      %v1506 = vpop.f32.mrf.mxu0
      %v1507 = vadd.f32 0.0, %v1506
      %1508 = vmatmul.bf16.gmra.mxu0 %v764
      %v1509 = vpop.f32.mrf.mxu0
      %v1510 = vadd.f32 0.0, %v1509
      %v1511 = vpop.f32.mrf.mxu0
      %v1512 = vadd.f32 0.0, %v1511
      %1513 = vmatmul.bf16.gmra.mxu0 %v767
      %v1514 = vpop.f32.mrf.mxu0
      %v1515 = vadd.f32 0.0, %v1514
      %v1516 = vpop.f32.mrf.mxu0
      %v1517 = vadd.f32 0.0, %v1516
      %1518 = vmatmul.bf16.gmra.mxu0 %v770
      %v1519 = vpop.f32.mrf.mxu0
      %v1520 = vadd.f32 0.0, %v1519
      %v1521 = vpop.f32.mrf.mxu0
      %v1522 = vadd.f32 0.0, %v1521
      %1523 = vmatmul.bf16.gmra.mxu0 %v773
      %v1524 = vpop.f32.mrf.mxu0
      %v1525 = vadd.f32 0.0, %v1524
      %v1526 = vpop.f32.mrf.mxu0
      %v1527 = vadd.f32 0.0, %v1526
      %1528 = vmatmul.bf16.gmra.mxu0 %v776
      %v1529 = vpop.f32.mrf.mxu0
      %v1530 = vadd.f32 0.0, %v1529
      %v1531 = vpop.f32.mrf.mxu0
      %v1532 = vadd.f32 0.0, %v1531
      %1533 = vmatmul.bf16.gmra.mxu0 %v779
      %v1534 = vpop.f32.mrf.mxu0
      %v1535 = vadd.f32 0.0, %v1534
      %v1536 = vpop.f32.mrf.mxu0
      %v1537 = vadd.f32 0.0, %v1536
      %1538 = vmatmul.bf16.gmra.mxu0 %v782
      %v1539 = vpop.f32.mrf.mxu0
      %v1540 = vadd.f32 0.0, %v1539
      %v1541 = vpop.f32.mrf.mxu0
      %v1542 = vadd.f32 0.0, %v1541
      %1543 = vmatmul.bf16.gmra.mxu0 %v785
      %v1544 = vpop.f32.mrf.mxu0
      %v1545 = vadd.f32 0.0, %v1544
      %v1546 = vpop.f32.mrf.mxu0
      %v1547 = vadd.f32 0.0, %v1546
      %1548 = vmatmul.bf16.gmra.mxu0 %v788
      %v1549 = vpop.f32.mrf.mxu0
      %v1550 = vadd.f32 0.0, %v1549
      %v1551 = vpop.f32.mrf.mxu0
      %v1552 = vadd.f32 0.0, %v1551
      %1553 = vmatmul.bf16.gmra.mxu0 %v1465
      %v1554 = vpop.f32.mrf.mxu0
      %v1555 = vadd.f32 0.0, %v1554
      %v1556 = vpop.f32.mrf.mxu0
      %v1557 = vadd.f32 0.0, %v1556
      %1558 = vdwg.mxu0
      %v1559 = vadd.f32 %v1420, %v1480
      %v1560 = vadd.f32 %v1421, %v1482
      %v1561 = vadd.f32 %v1422, %v1485
      %v1562 = vadd.f32 %v1423, %v1487
      %v1563 = vadd.f32 %v1424, %v1490
      %v1564 = vadd.f32 %v1425, %v1492
      %v1565 = vadd.f32 %v1426, %v1495
      %v1566 = vadd.f32 %v1427, %v1497
      %v1567 = vadd.f32 %v1428, %v1500
      %v1568 = vadd.f32 %v1429, %v1502
      %v1569 = vadd.f32 %v1430, %v1505
      %v1570 = vadd.f32 %v1431, %v1507
      %v1571 = vadd.f32 %v1432, %v1510
      %v1572 = vadd.f32 %v1433, %v1512
      %v1573 = vadd.f32 %v1434, %v1515
      %v1574 = vadd.f32 %v1435, %v1517
      %v1575 = vadd.f32 %v1436, %v1520
      %v1576 = vadd.f32 %v1437, %v1522
      %v1577 = vadd.f32 %v1438, %v1525
      %v1578 = vadd.f32 %v1439, %v1527
      %v1579 = vadd.f32 %v1440, %v1530
      %v1580 = vadd.f32 %v1441, %v1532
      %v1581 = vadd.f32 %v1442, %v1535
      %v1582 = vadd.f32 %v1443, %v1537
      %v1583 = vadd.f32 %v1444, %v1540
      %v1584 = vadd.f32 %v1445, %v1542
      %v1585 = vadd.f32 %v1446, %v1545
      %v1586 = vadd.f32 %v1447, %v1547
      %v1587 = vadd.f32 %v1448, %v1550
      %v1588 = vadd.f32 %v1449, %v1552
      %v1589 = vadd.f32 %v1450, %v1555
      %v1590 = vadd.f32 %v1451, %v1557
      %v1591 = vrot.slane %v549, 2
      %v1592 = vrot.slane %v485, 2
      %v1593 = vsel %vm1023, %v1591, %v1592
      %v1594 = vrot.slane %v565, 2
      %v1595 = vsel %vm1023, %v1592, %v1594
      %v1598 = vpack.c.bf16 %v1595, %v1593
      %s1599 = scalar_lea.vmem %s3, 20
      %v1600 = vld [vmem:[%s1599] sm:$0xf]
      %v1602 = vsel %vm741, %v1598, 0
      %v1605 = vsel %vm790, %v1600, 0
      %1607 = vmatpush.bf16.msra.mxu0 0
      %1608 = vmatpush.bf16.msra.mxu0 0
      %1609 = vmatpush.bf16.msra.mxu0 0
      %1610 = vmatpush.bf16.msra.mxu0 0
      %1611 = vmatpush.bf16.msra.mxu0 0
      %1612 = vmatpush.bf16.msra.mxu0 0
      %1613 = vmatpush.bf16.msra.mxu0 0
      %1614 = vmatpush.bf16.msra.mxu0 %v1605
      %1615 = vmatmul.bf16.gmra.mxu0 %v1154
      %v1616 = vpop.f32.mrf.mxu0
      %v1617 = vadd.f32 0.0, %v1616
      %v1618 = vpop.f32.mrf.mxu0
      %v1619 = vadd.f32 0.0, %v1618
      %1620 = vmatmul.bf16.gmra.mxu0 %v1157
      %v1621 = vpop.f32.mrf.mxu0
      %v1622 = vadd.f32 0.0, %v1621
      %v1623 = vpop.f32.mrf.mxu0
      %v1624 = vadd.f32 0.0, %v1623
      %1625 = vmatmul.bf16.gmra.mxu0 %v1160
      %v1626 = vpop.f32.mrf.mxu0
      %v1627 = vadd.f32 0.0, %v1626
      %v1628 = vpop.f32.mrf.mxu0
      %v1629 = vadd.f32 0.0, %v1628
      %1630 = vmatmul.bf16.gmra.mxu0 %v1163
      %v1631 = vpop.f32.mrf.mxu0
      %v1632 = vadd.f32 0.0, %v1631
      %v1633 = vpop.f32.mrf.mxu0
      %v1634 = vadd.f32 0.0, %v1633
      %1635 = vmatmul.bf16.gmra.mxu0 %v1166
      %v1636 = vpop.f32.mrf.mxu0
      %v1637 = vadd.f32 0.0, %v1636
      %v1638 = vpop.f32.mrf.mxu0
      %v1639 = vadd.f32 0.0, %v1638
      %1640 = vmatmul.bf16.gmra.mxu0 %v1169
      %v1641 = vpop.f32.mrf.mxu0
      %v1642 = vadd.f32 0.0, %v1641
      %v1643 = vpop.f32.mrf.mxu0
      %v1644 = vadd.f32 0.0, %v1643
      %1645 = vmatmul.bf16.gmra.mxu0 %v1172
      %v1646 = vpop.f32.mrf.mxu0
      %v1647 = vadd.f32 0.0, %v1646
      %v1648 = vpop.f32.mrf.mxu0
      %v1649 = vadd.f32 0.0, %v1648
      %1650 = vmatmul.bf16.gmra.mxu0 %v1175
      %v1651 = vpop.f32.mrf.mxu0
      %v1652 = vadd.f32 0.0, %v1651
      %v1653 = vpop.f32.mrf.mxu0
      %v1654 = vadd.f32 0.0, %v1653
      %1655 = vmatmul.bf16.gmra.mxu0 %v1178
      %v1656 = vpop.f32.mrf.mxu0
      %v1657 = vadd.f32 0.0, %v1656
      %v1658 = vpop.f32.mrf.mxu0
      %v1659 = vadd.f32 0.0, %v1658
      %1660 = vmatmul.bf16.gmra.mxu0 %v1181
      %v1661 = vpop.f32.mrf.mxu0
      %v1662 = vadd.f32 0.0, %v1661
      %v1663 = vpop.f32.mrf.mxu0
      %v1664 = vadd.f32 0.0, %v1663
      %1665 = vmatmul.bf16.gmra.mxu0 %v1184
      %v1666 = vpop.f32.mrf.mxu0
      %v1667 = vadd.f32 0.0, %v1666
      %v1668 = vpop.f32.mrf.mxu0
      %v1669 = vadd.f32 0.0, %v1668
      %1670 = vmatmul.bf16.gmra.mxu0 %v1187
      %v1671 = vpop.f32.mrf.mxu0
      %v1672 = vadd.f32 0.0, %v1671
      %v1673 = vpop.f32.mrf.mxu0
      %v1674 = vadd.f32 0.0, %v1673
      %1675 = vmatmul.bf16.gmra.mxu0 %v1190
      %v1676 = vpop.f32.mrf.mxu0
      %v1677 = vadd.f32 0.0, %v1676
      %v1678 = vpop.f32.mrf.mxu0
      %v1679 = vadd.f32 0.0, %v1678
      %1680 = vmatmul.bf16.gmra.mxu0 %v1193
      %v1681 = vpop.f32.mrf.mxu0
      %v1682 = vadd.f32 0.0, %v1681
      %v1683 = vpop.f32.mrf.mxu0
      %v1684 = vadd.f32 0.0, %v1683
      %1685 = vmatmul.bf16.gmra.mxu0 %v1196
      %v1686 = vpop.f32.mrf.mxu0
      %v1687 = vadd.f32 0.0, %v1686
      %v1688 = vpop.f32.mrf.mxu0
      %v1689 = vadd.f32 0.0, %v1688
      %1690 = vmatmul.bf16.gmra.mxu0 %v1602
      %v1691 = vpop.f32.mrf.mxu0
      %v1692 = vadd.f32 0.0, %v1691
      %v1693 = vpop.f32.mrf.mxu0
      %v1694 = vadd.f32 0.0, %v1693
      %1695 = vdwg.mxu0
      %v1696 = vadd.f32 %v1559, %v1617
      %v1697 = vadd.f32 %v1560, %v1619
      %v1698 = vadd.f32 %v1561, %v1622
      %v1699 = vadd.f32 %v1562, %v1624
      %v1700 = vadd.f32 %v1563, %v1627
      %v1701 = vadd.f32 %v1564, %v1629
      %v1702 = vadd.f32 %v1565, %v1632
      %v1703 = vadd.f32 %v1566, %v1634
      %v1704 = vadd.f32 %v1567, %v1637
      %v1705 = vadd.f32 %v1568, %v1639
      %v1706 = vadd.f32 %v1569, %v1642
      %v1707 = vadd.f32 %v1570, %v1644
      %v1708 = vadd.f32 %v1571, %v1647
      %v1709 = vadd.f32 %v1572, %v1649
      %v1710 = vadd.f32 %v1573, %v1652
      %v1711 = vadd.f32 %v1574, %v1654
      %v1712 = vadd.f32 %v1575, %v1657
      %v1713 = vadd.f32 %v1576, %v1659
      %v1714 = vadd.f32 %v1577, %v1662
      %v1715 = vadd.f32 %v1578, %v1664
      %v1716 = vadd.f32 %v1579, %v1667
      %v1717 = vadd.f32 %v1580, %v1669
      %v1718 = vadd.f32 %v1581, %v1672
      %v1719 = vadd.f32 %v1582, %v1674
      %v1720 = vadd.f32 %v1583, %v1677
      %v1721 = vadd.f32 %v1584, %v1679
      %v1722 = vadd.f32 %v1585, %v1682
      %v1723 = vadd.f32 %v1586, %v1684
      %v1724 = vadd.f32 %v1587, %v1687
      %v1725 = vadd.f32 %v1588, %v1689
      %v1726 = vadd.f32 %v1589, %v1692
      %v1727 = vadd.f32 %v1590, %v1694
      %s1728 = scalar_lea.vmem %s3, 24
      %v1729 = vld [vmem:[%s1728] sm:$0xf]
      %v1731 = vsel %vm790, %v1729, 0
      %1733 = vmatpush.bf16.msra.mxu0 0
      %1734 = vmatpush.bf16.msra.mxu0 0
      %1735 = vmatpush.bf16.msra.mxu0 0
      %1736 = vmatpush.bf16.msra.mxu0 0
      %1737 = vmatpush.bf16.msra.mxu0 0
      %1738 = vmatpush.bf16.msra.mxu0 0
      %1739 = vmatpush.bf16.msra.mxu0 0
      %1740 = vmatpush.bf16.msra.mxu0 %v1731
      %1741 = vmatmul.bf16.gmra.mxu0 %v890
      %v1742 = vpop.f32.mrf.mxu0
      %v1743 = vadd.f32 0.0, %v1742
      %v1744 = vpop.f32.mrf.mxu0
      %v1745 = vadd.f32 0.0, %v1744
      %1746 = vmatmul.bf16.gmra.mxu0 %v893
      %v1747 = vpop.f32.mrf.mxu0
      %v1748 = vadd.f32 0.0, %v1747
      %v1749 = vpop.f32.mrf.mxu0
      %v1750 = vadd.f32 0.0, %v1749
      %1751 = vmatmul.bf16.gmra.mxu0 %v896
      %v1752 = vpop.f32.mrf.mxu0
      %v1753 = vadd.f32 0.0, %v1752
      %v1754 = vpop.f32.mrf.mxu0
      %v1755 = vadd.f32 0.0, %v1754
      %1756 = vmatmul.bf16.gmra.mxu0 %v899
      %v1757 = vpop.f32.mrf.mxu0
      %v1758 = vadd.f32 0.0, %v1757
      %v1759 = vpop.f32.mrf.mxu0
      %v1760 = vadd.f32 0.0, %v1759
      %1761 = vmatmul.bf16.gmra.mxu0 %v902
      %v1762 = vpop.f32.mrf.mxu0
      %v1763 = vadd.f32 0.0, %v1762
      %v1764 = vpop.f32.mrf.mxu0
      %v1765 = vadd.f32 0.0, %v1764
      %1766 = vmatmul.bf16.gmra.mxu0 %v905
      %v1767 = vpop.f32.mrf.mxu0
      %v1768 = vadd.f32 0.0, %v1767
      %v1769 = vpop.f32.mrf.mxu0
      %v1770 = vadd.f32 0.0, %v1769
      %1771 = vmatmul.bf16.gmra.mxu0 %v908
      %v1772 = vpop.f32.mrf.mxu0
      %v1773 = vadd.f32 0.0, %v1772
      %v1774 = vpop.f32.mrf.mxu0
      %v1775 = vadd.f32 0.0, %v1774
      %1776 = vmatmul.bf16.gmra.mxu0 %v911
      %v1777 = vpop.f32.mrf.mxu0
      %v1778 = vadd.f32 0.0, %v1777
      %v1779 = vpop.f32.mrf.mxu0
      %v1780 = vadd.f32 0.0, %v1779
      %1781 = vmatmul.bf16.gmra.mxu0 %v914
      %v1782 = vpop.f32.mrf.mxu0
      %v1783 = vadd.f32 0.0, %v1782
      %v1784 = vpop.f32.mrf.mxu0
      %v1785 = vadd.f32 0.0, %v1784
      %1786 = vmatmul.bf16.gmra.mxu0 %v917
      %v1787 = vpop.f32.mrf.mxu0
      %v1788 = vadd.f32 0.0, %v1787
      %v1789 = vpop.f32.mrf.mxu0
      %v1790 = vadd.f32 0.0, %v1789
      %1791 = vmatmul.bf16.gmra.mxu0 %v920
      %v1792 = vpop.f32.mrf.mxu0
      %v1793 = vadd.f32 0.0, %v1792
      %v1794 = vpop.f32.mrf.mxu0
      %v1795 = vadd.f32 0.0, %v1794
      %1796 = vmatmul.bf16.gmra.mxu0 %v923
      %v1797 = vpop.f32.mrf.mxu0
      %v1798 = vadd.f32 0.0, %v1797
      %v1799 = vpop.f32.mrf.mxu0
      %v1800 = vadd.f32 0.0, %v1799
      %1801 = vmatmul.bf16.gmra.mxu0 %v926
      %v1802 = vpop.f32.mrf.mxu0
      %v1803 = vadd.f32 0.0, %v1802
      %v1804 = vpop.f32.mrf.mxu0
      %v1805 = vadd.f32 0.0, %v1804
      %1806 = vmatmul.bf16.gmra.mxu0 %v929
      %v1807 = vpop.f32.mrf.mxu0
      %v1808 = vadd.f32 0.0, %v1807
      %v1809 = vpop.f32.mrf.mxu0
      %v1810 = vadd.f32 0.0, %v1809
      %1811 = vmatmul.bf16.gmra.mxu0 %v1326
      %v1812 = vpop.f32.mrf.mxu0
      %v1813 = vadd.f32 0.0, %v1812
      %v1814 = vpop.f32.mrf.mxu0
      %v1815 = vadd.f32 0.0, %v1814
      %1816 = vmatmul.bf16.gmra.mxu0 %v884
      %v1817 = vpop.f32.mrf.mxu0
      %v1818 = vadd.f32 0.0, %v1817
      %v1819 = vpop.f32.mrf.mxu0
      %v1820 = vadd.f32 0.0, %v1819
      %1821 = vdwg.mxu0
      %v1822 = vadd.f32 %v1696, %v1743
      %v1823 = vadd.f32 %v1697, %v1745
      %v1824 = vadd.f32 %v1698, %v1748
      %v1825 = vadd.f32 %v1699, %v1750
      %v1826 = vadd.f32 %v1700, %v1753
      %v1827 = vadd.f32 %v1701, %v1755
      %v1828 = vadd.f32 %v1702, %v1758
      %v1829 = vadd.f32 %v1703, %v1760
      %v1830 = vadd.f32 %v1704, %v1763
      %v1831 = vadd.f32 %v1705, %v1765
      %v1832 = vadd.f32 %v1706, %v1768
      %v1833 = vadd.f32 %v1707, %v1770
      %v1834 = vadd.f32 %v1708, %v1773
      %v1835 = vadd.f32 %v1709, %v1775
      %v1836 = vadd.f32 %v1710, %v1778
      %v1837 = vadd.f32 %v1711, %v1780
      %v1838 = vadd.f32 %v1712, %v1783
      %v1839 = vadd.f32 %v1713, %v1785
      %v1840 = vadd.f32 %v1714, %v1788
      %v1841 = vadd.f32 %v1715, %v1790
      %v1842 = vadd.f32 %v1716, %v1793
      %v1843 = vadd.f32 %v1717, %v1795
      %v1844 = vadd.f32 %v1718, %v1798
      %v1845 = vadd.f32 %v1719, %v1800
      %v1846 = vadd.f32 %v1720, %v1803
      %v1847 = vadd.f32 %v1721, %v1805
      %v1848 = vadd.f32 %v1722, %v1808
      %v1849 = vadd.f32 %v1723, %v1810
      %v1850 = vadd.f32 %v1724, %v1813
      %v1851 = vadd.f32 %v1725, %v1815
      %v1852 = vadd.f32 %v1726, %v1818
      %v1853 = vadd.f32 %v1727, %v1820
      %s1854 = scalar_lea.vmem %s3, 28
      %v1855 = vld [vmem:[%s1854] sm:$0xf]
      %v1857 = vsel %vm790, %v1855, 0
      %1859 = vmatpush.bf16.msra.mxu0 0
      %1860 = vmatpush.bf16.msra.mxu0 0
      %1861 = vmatpush.bf16.msra.mxu0 0
      %1862 = vmatpush.bf16.msra.mxu0 0
      %1863 = vmatpush.bf16.msra.mxu0 0
      %1864 = vmatpush.bf16.msra.mxu0 0
      %1865 = vmatpush.bf16.msra.mxu0 0
      %1866 = vmatpush.bf16.msra.mxu0 %v1857
      %1867 = vmatmul.bf16.gmra.mxu0 %v749
      %v1868 = vpop.f32.mrf.mxu0
      %v1869 = vadd.f32 0.0, %v1868
      %v1870 = vpop.f32.mrf.mxu0
      %v1871 = vadd.f32 0.0, %v1870
      %1872 = vmatmul.bf16.gmra.mxu0 %v752
      %v1873 = vpop.f32.mrf.mxu0
      %v1874 = vadd.f32 0.0, %v1873
      %v1875 = vpop.f32.mrf.mxu0
      %v1876 = vadd.f32 0.0, %v1875
      %1877 = vmatmul.bf16.gmra.mxu0 %v755
      %v1878 = vpop.f32.mrf.mxu0
      %v1879 = vadd.f32 0.0, %v1878
      %v1880 = vpop.f32.mrf.mxu0
      %v1881 = vadd.f32 0.0, %v1880
      %1882 = vmatmul.bf16.gmra.mxu0 %v758
      %v1883 = vpop.f32.mrf.mxu0
      %v1884 = vadd.f32 0.0, %v1883
      %v1885 = vpop.f32.mrf.mxu0
      %v1886 = vadd.f32 0.0, %v1885
      %1887 = vmatmul.bf16.gmra.mxu0 %v761
      %v1888 = vpop.f32.mrf.mxu0
      %v1889 = vadd.f32 0.0, %v1888
      %v1890 = vpop.f32.mrf.mxu0
      %v1891 = vadd.f32 0.0, %v1890
      %1892 = vmatmul.bf16.gmra.mxu0 %v764
      %v1893 = vpop.f32.mrf.mxu0
      %v1894 = vadd.f32 0.0, %v1893
      %v1895 = vpop.f32.mrf.mxu0
      %v1896 = vadd.f32 0.0, %v1895
      %1897 = vmatmul.bf16.gmra.mxu0 %v767
      %v1898 = vpop.f32.mrf.mxu0
      %v1899 = vadd.f32 0.0, %v1898
      %v1900 = vpop.f32.mrf.mxu0
      %v1901 = vadd.f32 0.0, %v1900
      %1902 = vmatmul.bf16.gmra.mxu0 %v770
      %v1903 = vpop.f32.mrf.mxu0
      %v1904 = vadd.f32 0.0, %v1903
      %v1905 = vpop.f32.mrf.mxu0
      %v1906 = vadd.f32 0.0, %v1905
      %1907 = vmatmul.bf16.gmra.mxu0 %v773
      %v1908 = vpop.f32.mrf.mxu0
      %v1909 = vadd.f32 0.0, %v1908
      %v1910 = vpop.f32.mrf.mxu0
      %v1911 = vadd.f32 0.0, %v1910
      %1912 = vmatmul.bf16.gmra.mxu0 %v776
      %v1913 = vpop.f32.mrf.mxu0
      %v1914 = vadd.f32 0.0, %v1913
      %v1915 = vpop.f32.mrf.mxu0
      %v1916 = vadd.f32 0.0, %v1915
      %1917 = vmatmul.bf16.gmra.mxu0 %v779
      %v1918 = vpop.f32.mrf.mxu0
      %v1919 = vadd.f32 0.0, %v1918
      %v1920 = vpop.f32.mrf.mxu0
      %v1921 = vadd.f32 0.0, %v1920
      %1922 = vmatmul.bf16.gmra.mxu0 %v782
      %v1923 = vpop.f32.mrf.mxu0
      %v1924 = vadd.f32 0.0, %v1923
      %v1925 = vpop.f32.mrf.mxu0
      %v1926 = vadd.f32 0.0, %v1925
      %1927 = vmatmul.bf16.gmra.mxu0 %v785
      %v1928 = vpop.f32.mrf.mxu0
      %v1929 = vadd.f32 0.0, %v1928
      %v1930 = vpop.f32.mrf.mxu0
      %v1931 = vadd.f32 0.0, %v1930
      %1932 = vmatmul.bf16.gmra.mxu0 %v788
      %v1933 = vpop.f32.mrf.mxu0
      %v1934 = vadd.f32 0.0, %v1933
      %v1935 = vpop.f32.mrf.mxu0
      %v1936 = vadd.f32 0.0, %v1935
      %1937 = vmatmul.bf16.gmra.mxu0 %v1465
      %v1938 = vpop.f32.mrf.mxu0
      %v1939 = vadd.f32 0.0, %v1938
      %v1940 = vpop.f32.mrf.mxu0
      %v1941 = vadd.f32 0.0, %v1940
      %1942 = vmatmul.bf16.gmra.mxu0 %v743
      %v1943 = vpop.f32.mrf.mxu0
      %v1944 = vadd.f32 0.0, %v1943
      %v1945 = vpop.f32.mrf.mxu0
      %v1946 = vadd.f32 0.0, %v1945
      %1947 = vdwg.mxu0
      %v1948 = vadd.f32 %v1822, %v1869
      %v1949 = vadd.f32 %v1823, %v1871
      %v1950 = vadd.f32 %v1824, %v1874
      %v1951 = vadd.f32 %v1825, %v1876
      %v1952 = vadd.f32 %v1826, %v1879
      %v1953 = vadd.f32 %v1827, %v1881
      %v1954 = vadd.f32 %v1828, %v1884
      %v1955 = vadd.f32 %v1829, %v1886
      %v1956 = vadd.f32 %v1830, %v1889
      %v1957 = vadd.f32 %v1831, %v1891
      %v1958 = vadd.f32 %v1832, %v1894
      %v1959 = vadd.f32 %v1833, %v1896
      %v1960 = vadd.f32 %v1834, %v1899
      %v1961 = vadd.f32 %v1835, %v1901
      %v1962 = vadd.f32 %v1836, %v1904
      %v1963 = vadd.f32 %v1837, %v1906
      %v1964 = vadd.f32 %v1838, %v1909
      %v1965 = vadd.f32 %v1839, %v1911
      %v1966 = vadd.f32 %v1840, %v1914
      %v1967 = vadd.f32 %v1841, %v1916
      %v1968 = vadd.f32 %v1842, %v1919
      %v1969 = vadd.f32 %v1843, %v1921
      %v1970 = vadd.f32 %v1844, %v1924
      %v1971 = vadd.f32 %v1845, %v1926
      %v1972 = vadd.f32 %v1846, %v1929
      %v1973 = vadd.f32 %v1847, %v1931
      %v1974 = vadd.f32 %v1848, %v1934
      %v1975 = vadd.f32 %v1849, %v1936
      %v1976 = vadd.f32 %v1850, %v1939
      %v1977 = vadd.f32 %v1851, %v1941
      %v1978 = vadd.f32 %v1852, %v1944
      %v1979 = vadd.f32 %v1853, %v1946
      %s1980 = scalar_lea.vmem %s3, 32
      %v1981 = vld [vmem:[%s1980] sm:$0xf]
      %v1983 = vsel %vm790, %v1981, 0
      %1985 = vmatpush.bf16.msra.mxu0 0
      %1986 = vmatpush.bf16.msra.mxu0 0
      %1987 = vmatpush.bf16.msra.mxu0 0
      %1988 = vmatpush.bf16.msra.mxu0 0
      %1989 = vmatpush.bf16.msra.mxu0 0
      %1990 = vmatpush.bf16.msra.mxu0 0
      %1991 = vmatpush.bf16.msra.mxu0 0
      %1992 = vmatpush.bf16.msra.mxu0 %v1983
      %1993 = vmatmul.bf16.gmra.mxu0 %v1157
      %v1994 = vpop.f32.mrf.mxu0
      %v1995 = vadd.f32 0.0, %v1994
      %v1996 = vpop.f32.mrf.mxu0
      %v1997 = vadd.f32 0.0, %v1996
      %1998 = vmatmul.bf16.gmra.mxu0 %v1160
      %v1999 = vpop.f32.mrf.mxu0
      %v2000 = vadd.f32 0.0, %v1999
      %v2001 = vpop.f32.mrf.mxu0
      %v2002 = vadd.f32 0.0, %v2001
      %2003 = vmatmul.bf16.gmra.mxu0 %v1163
      %v2004 = vpop.f32.mrf.mxu0
      %v2005 = vadd.f32 0.0, %v2004
      %v2006 = vpop.f32.mrf.mxu0
      %v2007 = vadd.f32 0.0, %v2006
      %2008 = vmatmul.bf16.gmra.mxu0 %v1166
      %v2009 = vpop.f32.mrf.mxu0
      %v2010 = vadd.f32 0.0, %v2009
      %v2011 = vpop.f32.mrf.mxu0
      %v2012 = vadd.f32 0.0, %v2011
      %2013 = vmatmul.bf16.gmra.mxu0 %v1169
      %v2014 = vpop.f32.mrf.mxu0
      %v2015 = vadd.f32 0.0, %v2014
      %v2016 = vpop.f32.mrf.mxu0
      %v2017 = vadd.f32 0.0, %v2016
      %2018 = vmatmul.bf16.gmra.mxu0 %v1172
      %v2019 = vpop.f32.mrf.mxu0
      %v2020 = vadd.f32 0.0, %v2019
      %v2021 = vpop.f32.mrf.mxu0
      %v2022 = vadd.f32 0.0, %v2021
      %2023 = vmatmul.bf16.gmra.mxu0 %v1175
      %v2024 = vpop.f32.mrf.mxu0
      %v2025 = vadd.f32 0.0, %v2024
      %v2026 = vpop.f32.mrf.mxu0
      %v2027 = vadd.f32 0.0, %v2026
      %2028 = vmatmul.bf16.gmra.mxu0 %v1178
      %v2029 = vpop.f32.mrf.mxu0
      %v2030 = vadd.f32 0.0, %v2029
      %v2031 = vpop.f32.mrf.mxu0
      %v2032 = vadd.f32 0.0, %v2031
      %2033 = vmatmul.bf16.gmra.mxu0 %v1181
      %v2034 = vpop.f32.mrf.mxu0
      %v2035 = vadd.f32 0.0, %v2034
      %v2036 = vpop.f32.mrf.mxu0
      %v2037 = vadd.f32 0.0, %v2036
      %2038 = vmatmul.bf16.gmra.mxu0 %v1184
      %v2039 = vpop.f32.mrf.mxu0
      %v2040 = vadd.f32 0.0, %v2039
      %v2041 = vpop.f32.mrf.mxu0
      %v2042 = vadd.f32 0.0, %v2041
      %2043 = vmatmul.bf16.gmra.mxu0 %v1187
      %v2044 = vpop.f32.mrf.mxu0
      %v2045 = vadd.f32 0.0, %v2044
      %v2046 = vpop.f32.mrf.mxu0
      %v2047 = vadd.f32 0.0, %v2046
      %2048 = vmatmul.bf16.gmra.mxu0 %v1190
      %v2049 = vpop.f32.mrf.mxu0
      %v2050 = vadd.f32 0.0, %v2049
      %v2051 = vpop.f32.mrf.mxu0
      %v2052 = vadd.f32 0.0, %v2051
      %2053 = vmatmul.bf16.gmra.mxu0 %v1193
      %v2054 = vpop.f32.mrf.mxu0
      %v2055 = vadd.f32 0.0, %v2054
      %v2056 = vpop.f32.mrf.mxu0
      %v2057 = vadd.f32 0.0, %v2056
      %2058 = vmatmul.bf16.gmra.mxu0 %v1196
      %v2059 = vpop.f32.mrf.mxu0
      %v2060 = vadd.f32 0.0, %v2059
      %v2061 = vpop.f32.mrf.mxu0
      %v2062 = vadd.f32 0.0, %v2061
      %2063 = vmatmul.bf16.gmra.mxu0 %v1602
      %v2064 = vpop.f32.mrf.mxu0
      %v2065 = vadd.f32 0.0, %v2064
      %v2066 = vpop.f32.mrf.mxu0
      %v2067 = vadd.f32 0.0, %v2066
      %2068 = vmatmul.bf16.gmra.mxu0 %v1151
      %v2069 = vpop.f32.mrf.mxu0
      %v2070 = vadd.f32 0.0, %v2069
      %v2071 = vpop.f32.mrf.mxu0
      %v2072 = vadd.f32 0.0, %v2071
      %2073 = vdwg.mxu0
      %v2074 = vadd.f32 %v1948, %v1995
      %v2075 = vadd.f32 %v1949, %v1997
      %v2076 = vadd.f32 %v1950, %v2000
      %v2077 = vadd.f32 %v1951, %v2002
      %v2078 = vadd.f32 %v1952, %v2005
      %v2079 = vadd.f32 %v1953, %v2007
      %v2080 = vadd.f32 %v1954, %v2010
      %v2081 = vadd.f32 %v1955, %v2012
      %v2082 = vadd.f32 %v1956, %v2015
      %v2083 = vadd.f32 %v1957, %v2017
      %v2084 = vadd.f32 %v1958, %v2020
      %v2085 = vadd.f32 %v1959, %v2022
      %v2086 = vadd.f32 %v1960, %v2025
      %v2087 = vadd.f32 %v1961, %v2027
      %v2088 = vadd.f32 %v1962, %v2030
      %v2089 = vadd.f32 %v1963, %v2032
      %v2090 = vadd.f32 %v1964, %v2035
      %v2091 = vadd.f32 %v1965, %v2037
      %v2092 = vadd.f32 %v1966, %v2040
      %v2093 = vadd.f32 %v1967, %v2042
      %v2094 = vadd.f32 %v1968, %v2045
      %v2095 = vadd.f32 %v1969, %v2047
      %v2096 = vadd.f32 %v1970, %v2050
      %v2097 = vadd.f32 %v1971, %v2052
      %v2098 = vadd.f32 %v1972, %v2055
      %v2099 = vadd.f32 %v1973, %v2057
      %v2100 = vadd.f32 %v1974, %v2060
      %v2101 = vadd.f32 %v1975, %v2062
      %v2102 = vadd.f32 %v1976, %v2065
      %v2103 = vadd.f32 %v1977, %v2067
      %v2104 = vadd.f32 %v1978, %v2070
      %v2105 = vadd.f32 %v1979, %v2072
      %v2106 = vpack.c.bf16 %v2074, %v2074
      %v2107 = vpack.c.bf16 %v2075, %v2075
      %v2108 = vpack.c.bf16 %v2076, %v2076
      %v2109 = vpack.c.bf16 %v2077, %v2077
      %v2110 = vpack.c.bf16 %v2078, %v2078
      %v2111 = vpack.c.bf16 %v2079, %v2079
      %v2112 = vpack.c.bf16 %v2080, %v2080
      %v2113 = vpack.c.bf16 %v2081, %v2081
      %v2114 = vpack.c.bf16 %v2082, %v2082
      %v2115 = vpack.c.bf16 %v2083, %v2083
      %v2116 = vpack.c.bf16 %v2084, %v2084
      %v2117 = vpack.c.bf16 %v2085, %v2085
      %v2118 = vpack.c.bf16 %v2086, %v2086
      %v2119 = vpack.c.bf16 %v2087, %v2087
      %v2120 = vpack.c.bf16 %v2088, %v2088
      %v2121 = vpack.c.bf16 %v2089, %v2089
      %v2122 = vpack.c.bf16 %v2090, %v2090
      %v2123 = vpack.c.bf16 %v2091, %v2091
      %v2124 = vpack.c.bf16 %v2092, %v2092
      %v2125 = vpack.c.bf16 %v2093, %v2093
      %v2126 = vpack.c.bf16 %v2094, %v2094
      %v2127 = vpack.c.bf16 %v2095, %v2095
      %v2128 = vpack.c.bf16 %v2096, %v2096
      %v2129 = vpack.c.bf16 %v2097, %v2097
      %v2130 = vpack.c.bf16 %v2098, %v2098
      %v2131 = vpack.c.bf16 %v2099, %v2099
      %v2132 = vpack.c.bf16 %v2100, %v2100
      %v2133 = vpack.c.bf16 %v2101, %v2101
      %v2134 = vpack.c.bf16 %v2102, %v2102
      %v2135 = vpack.c.bf16 %v2103, %v2103
      %v2136 = vpack.c.bf16 %v2104, %v2104
      %v2137 = vpack.c.bf16 %v2105, %v2105
      %vm2138 = vcmask 60416
      %2139 = vst.msk [vmem:[%s231] sm:$0xf] %vm2138, %v2106
      %2140 = vst.msk [vmem:[%s231 + $0x4] sm:$0xf] %vm2138, %v2107
      %2141 = vst.msk [vmem:[%s231 + $0x8] sm:$0xf] %vm2138, %v2108
      %2142 = vst.msk [vmem:[%s231 + $0xc] sm:$0xf] %vm2138, %v2109
      %2143 = vst.msk [vmem:[%s231 + $0x10] sm:$0xf] %vm2138, %v2110
      %2144 = vst.msk [vmem:[%s231 + $0x14] sm:$0xf] %vm2138, %v2111
      %2145 = vst.msk [vmem:[%s231 + $0x18] sm:$0xf] %vm2138, %v2112
      %2146 = vst.msk [vmem:[%s231 + $0x1c] sm:$0xf] %vm2138, %v2113
      %2147 = vst.msk [vmem:[%s231 + $0x20] sm:$0xf] %vm2138, %v2114
      %2148 = vst.msk [vmem:[%s231 + $0x24] sm:$0xf] %vm2138, %v2115
      %2149 = vst.msk [vmem:[%s231 + $0x28] sm:$0xf] %vm2138, %v2116
      %2150 = vst.msk [vmem:[%s231 + $0x2c] sm:$0xf] %vm2138, %v2117
      %2151 = vst.msk [vmem:[%s231 + $0x30] sm:$0xf] %vm2138, %v2118
      %2152 = vst.msk [vmem:[%s231 + $0x34] sm:$0xf] %vm2138, %v2119
      %2153 = vst.msk [vmem:[%s231 + $0x38] sm:$0xf] %vm2138, %v2120
      %2154 = vst.msk [vmem:[%s231 + $0x3c] sm:$0xf] %vm2138, %v2121
      %2155 = vst.msk [vmem:[%s231 + $0x40] sm:$0xf] %vm2138, %v2122
      %2156 = vst.msk [vmem:[%s231 + $0x44] sm:$0xf] %vm2138, %v2123
      %2157 = vst.msk [vmem:[%s231 + $0x48] sm:$0xf] %vm2138, %v2124
      %2158 = vst.msk [vmem:[%s231 + $0x4c] sm:$0xf] %vm2138, %v2125
      %2159 = vst.msk [vmem:[%s231 + $0x50] sm:$0xf] %vm2138, %v2126
      %2160 = vst.msk [vmem:[%s231 + $0x54] sm:$0xf] %vm2138, %v2127
      %2161 = vst.msk [vmem:[%s231 + $0x58] sm:$0xf] %vm2138, %v2128
      %2162 = vst.msk [vmem:[%s231 + $0x5c] sm:$0xf] %vm2138, %v2129
      %2163 = vst.msk [vmem:[%s231 + $0x60] sm:$0xf] %vm2138, %v2130
      %2164 = vst.msk [vmem:[%s231 + $0x64] sm:$0xf] %vm2138, %v2131
      %2165 = vst.msk [vmem:[%s231 + $0x68] sm:$0xf] %vm2138, %v2132
      %2166 = vst.msk [vmem:[%s231 + $0x6c] sm:$0xf] %vm2138, %v2133
      %2167 = vst.msk [vmem:[%s231 + $0x70] sm:$0xf] %vm2138, %v2134
      %2168 = vst.msk [vmem:[%s231 + $0x74] sm:$0xf] %vm2138, %v2135
      %2169 = vst.msk [vmem:[%s231 + $0x78] sm:$0xf] %vm2138, %v2136
      %2170 = vst.msk [vmem:[%s231 + $0x7c] sm:$0xf] %vm2138, %v2137
      %v2171 = vsel %vm741, %v2074, 0.0
      %v2172 = vsel %vm741, %v2075, 0.0
      %v2173 = vadd.f32 %v2171, %v2172
      %v2174 = vsel %vm741, %v2076, 0.0
      %v2175 = vadd.f32 %v2173, %v2174
      %v2176 = vsel %vm741, %v2077, 0.0
      %v2177 = vadd.f32 %v2175, %v2176
      %v2178 = vsel %vm741, %v2078, 0.0
      %v2179 = vadd.f32 %v2177, %v2178
      %v2180 = vsel %vm741, %v2079, 0.0
      %v2181 = vadd.f32 %v2179, %v2180
      %v2182 = vsel %vm741, %v2080, 0.0
      %v2183 = vadd.f32 %v2181, %v2182
      %v2184 = vsel %vm741, %v2081, 0.0
      %v2185 = vadd.f32 %v2183, %v2184
      %v2186 = vsel %vm741, %v2082, 0.0
      %v2187 = vadd.f32 %v2185, %v2186
      %v2188 = vsel %vm741, %v2083, 0.0
      %v2189 = vadd.f32 %v2187, %v2188
      %v2190 = vsel %vm741, %v2084, 0.0
      %v2191 = vadd.f32 %v2189, %v2190
      %v2192 = vsel %vm741, %v2085, 0.0
      %v2193 = vadd.f32 %v2191, %v2192
      %v2194 = vsel %vm741, %v2086, 0.0
      %v2195 = vadd.f32 %v2193, %v2194
      %v2196 = vsel %vm741, %v2087, 0.0
      %v2197 = vadd.f32 %v2195, %v2196
      %v2198 = vsel %vm741, %v2088, 0.0
      %v2199 = vadd.f32 %v2197, %v2198
      %v2200 = vsel %vm741, %v2089, 0.0
      %v2201 = vadd.f32 %v2199, %v2200
      %v2202 = vsel %vm741, %v2090, 0.0
      %v2203 = vadd.f32 %v2201, %v2202
      %v2204 = vsel %vm741, %v2091, 0.0
      %v2205 = vadd.f32 %v2203, %v2204
      %v2206 = vsel %vm741, %v2092, 0.0
      %v2207 = vadd.f32 %v2205, %v2206
      %v2208 = vsel %vm741, %v2093, 0.0
      %v2209 = vadd.f32 %v2207, %v2208
      %v2210 = vsel %vm741, %v2094, 0.0
      %v2211 = vadd.f32 %v2209, %v2210
      %v2212 = vsel %vm741, %v2095, 0.0
      %v2213 = vadd.f32 %v2211, %v2212
      %v2214 = vsel %vm741, %v2096, 0.0
      %v2215 = vadd.f32 %v2213, %v2214
      %v2216 = vsel %vm741, %v2097, 0.0
      %v2217 = vadd.f32 %v2215, %v2216
      %v2218 = vsel %vm741, %v2098, 0.0
      %v2219 = vadd.f32 %v2217, %v2218
      %v2220 = vsel %vm741, %v2099, 0.0
      %v2221 = vadd.f32 %v2219, %v2220
      %v2222 = vsel %vm741, %v2100, 0.0
      %v2223 = vadd.f32 %v2221, %v2222
      %v2224 = vsel %vm741, %v2101, 0.0
      %v2225 = vadd.f32 %v2223, %v2224
      %v2226 = vsel %vm741, %v2102, 0.0
      %v2227 = vadd.f32 %v2225, %v2226
      %v2228 = vsel %vm741, %v2103, 0.0
      %v2229 = vadd.f32 %v2227, %v2228
      %v2230 = vsel %vm741, %v2104, 0.0
      %v2231 = vadd.f32 %v2229, %v2230
      %v2232 = vsel %vm741, %v2105, 0.0
      %v2233 = vadd.f32 %v2231, %v2232
      %v2234 = vrot.slane %v2233, 4
      %v2235 = vadd.f32 %v2233, %v2234
      %v2236 = vrot.slane %v2235, 2
      %v2237 = vadd.f32 %v2235, %v2236
      %v2238 = vrot.slane %v2237, 1
      %v2239 = vadd.f32 %v2237, %v2238
      %v2240 = vmul.f32 %v2074, %v2074
      %v2241 = vmul.f32 %v2075, %v2075
      %v2242 = vmul.f32 %v2076, %v2076
      %v2243 = vmul.f32 %v2077, %v2077
      %v2244 = vmul.f32 %v2078, %v2078
      %v2245 = vmul.f32 %v2079, %v2079
      %v2246 = vmul.f32 %v2080, %v2080
      %v2247 = vmul.f32 %v2081, %v2081
      %v2248 = vmul.f32 %v2082, %v2082
      %v2249 = vmul.f32 %v2083, %v2083
      %v2250 = vmul.f32 %v2084, %v2084
      %v2251 = vmul.f32 %v2085, %v2085
      %v2252 = vmul.f32 %v2086, %v2086
      %v2253 = vmul.f32 %v2087, %v2087
      %v2254 = vmul.f32 %v2088, %v2088
      %v2255 = vmul.f32 %v2089, %v2089
      %v2256 = vmul.f32 %v2090, %v2090
      %v2257 = vmul.f32 %v2091, %v2091
      %v2258 = vmul.f32 %v2092, %v2092
      %v2259 = vmul.f32 %v2093, %v2093
      %v2260 = vmul.f32 %v2094, %v2094
      %v2261 = vmul.f32 %v2095, %v2095
      %v2262 = vmul.f32 %v2096, %v2096
      %v2263 = vmul.f32 %v2097, %v2097
      %v2264 = vmul.f32 %v2098, %v2098
      %v2265 = vmul.f32 %v2099, %v2099
      %v2266 = vmul.f32 %v2100, %v2100
      %v2267 = vmul.f32 %v2101, %v2101
      %v2268 = vmul.f32 %v2102, %v2102
      %v2269 = vmul.f32 %v2103, %v2103
      %v2270 = vmul.f32 %v2104, %v2104
      %v2271 = vmul.f32 %v2105, %v2105
      %v2272 = vsel %vm741, %v2240, 0.0
      %v2273 = vsel %vm741, %v2241, 0.0
      %v2274 = vadd.f32 %v2272, %v2273
      %v2275 = vsel %vm741, %v2242, 0.0
      %v2276 = vadd.f32 %v2274, %v2275
      %v2277 = vsel %vm741, %v2243, 0.0
      %v2278 = vadd.f32 %v2276, %v2277
      %v2279 = vsel %vm741, %v2244, 0.0
      %v2280 = vadd.f32 %v2278, %v2279
      %v2281 = vsel %vm741, %v2245, 0.0
      %v2282 = vadd.f32 %v2280, %v2281
      %v2283 = vsel %vm741, %v2246, 0.0
      %v2284 = vadd.f32 %v2282, %v2283
      %v2285 = vsel %vm741, %v2247, 0.0
      %v2286 = vadd.f32 %v2284, %v2285
      %v2287 = vsel %vm741, %v2248, 0.0
      %v2288 = vadd.f32 %v2286, %v2287
      %v2289 = vsel %vm741, %v2249, 0.0
      %v2290 = vadd.f32 %v2288, %v2289
      %v2291 = vsel %vm741, %v2250, 0.0
      %v2292 = vadd.f32 %v2290, %v2291
      %v2293 = vsel %vm741, %v2251, 0.0
      %v2294 = vadd.f32 %v2292, %v2293
      %v2295 = vsel %vm741, %v2252, 0.0
      %v2296 = vadd.f32 %v2294, %v2295
      %v2297 = vsel %vm741, %v2253, 0.0
      %v2298 = vadd.f32 %v2296, %v2297
      %v2299 = vsel %vm741, %v2254, 0.0
      %v2300 = vadd.f32 %v2298, %v2299
      %v2301 = vsel %vm741, %v2255, 0.0
      %v2302 = vadd.f32 %v2300, %v2301
      %v2303 = vsel %vm741, %v2256, 0.0
      %v2304 = vadd.f32 %v2302, %v2303
      %v2305 = vsel %vm741, %v2257, 0.0
      %v2306 = vadd.f32 %v2304, %v2305
      %v2307 = vsel %vm741, %v2258, 0.0
      %v2308 = vadd.f32 %v2306, %v2307
      %v2309 = vsel %vm741, %v2259, 0.0
      %v2310 = vadd.f32 %v2308, %v2309
      %v2311 = vsel %vm741, %v2260, 0.0
      %v2312 = vadd.f32 %v2310, %v2311
      %v2313 = vsel %vm741, %v2261, 0.0
      %v2314 = vadd.f32 %v2312, %v2313
      %v2315 = vsel %vm741, %v2262, 0.0
      %v2316 = vadd.f32 %v2314, %v2315
      %v2317 = vsel %vm741, %v2263, 0.0
      %v2318 = vadd.f32 %v2316, %v2317
      %v2319 = vsel %vm741, %v2264, 0.0
      %v2320 = vadd.f32 %v2318, %v2319
      %v2321 = vsel %vm741, %v2265, 0.0
      %v2322 = vadd.f32 %v2320, %v2321
      %v2323 = vsel %vm741, %v2266, 0.0
      %v2324 = vadd.f32 %v2322, %v2323
      %v2325 = vsel %vm741, %v2267, 0.0
      %v2326 = vadd.f32 %v2324, %v2325
      %v2327 = vsel %vm741, %v2268, 0.0
      %v2328 = vadd.f32 %v2326, %v2327
      %v2329 = vsel %vm741, %v2269, 0.0
      %v2330 = vadd.f32 %v2328, %v2329
      %v2331 = vsel %vm741, %v2270, 0.0
      %v2332 = vadd.f32 %v2330, %v2331
      %v2333 = vsel %vm741, %v2271, 0.0
      %v2334 = vadd.f32 %v2332, %v2333
      %v2335 = vrot.slane %v2334, 4
      %v2336 = vadd.f32 %v2334, %v2335
      %v2337 = vrot.slane %v2336, 2
      %v2338 = vadd.f32 %v2336, %v2337
      %v2339 = vrot.slane %v2338, 1
      %v2340 = vadd.f32 %v2338, %v2339
      %v2341 = vsel %vm437, %v2239, %v2340
      %vm2342 = vcmask 58368
      %2343 = vst.msk [vmem:[%s235] sm:$0x3] %vm2342, %v2341
      %p2344 = scmp.lt.s32.totalorder %s17, 1
      %s2345 = scalar_select %p2344, %s17, 1
      %s2346 = smul.addr %s2345, 32
      %s2347 = smul.addr %s2346, 4
      %s2348 = scalar_lea.vmem %s4, %s2347
      %p2349 = scmp.lt.s32.totalorder %s17, 1
      %s2350 = scalar_select %p2349, %s17, 1
      %s2351 = smul.addr %s2350, 2
      %s2352 = scalar_lea.vmem %s5, %s2351
      // Predicated region
      $region37: #{bottleneck_forward.5} parent=35 // pred_check
        %p2353 = pneg %p124
      $region38: #{bottleneck_forward.5} parent=35 // pred_check_branch
        %2355 = sbr.rel (%p2353) target = $region40
      $region39: #{bottleneck_forward.5} parent=35 // pred_region
        _
      $region40: #{bottleneck_forward.5} parent=35 // pred_fallthru
        _
      // Predicated region
      $region41: #{bottleneck_forward.5} parent=35 // pred_check
        %p2356 = pneg %p150
      $region42: #{bottleneck_forward.5} parent=35 // pred_check_branch
        %2358 = sbr.rel (%p2356) target = $region44
      $region43: #{bottleneck_forward.5} parent=35 // pred_region
        _
      $region44: #{bottleneck_forward.5} parent=35 // pred_fallthru
        _
    $region36: #{bottleneck_forward.5} parent=5 // pred_fallthru
      _
    %p2359 = scmp.le.s32.totalorder 2, %s12
    // Predicated region
    $region45: #{bottleneck_forward.5} parent=5 // pred_check
      %p2360 = pneg %p2359
    $region46: #{bottleneck_forward.5} parent=5 // pred_check_branch
      %2362 = sbr.rel (%p2360) target = $region48
    $region47: #{bottleneck_forward.5} parent=5 // pred_region
      %s2363 = ssub.s32 %s12, 2
      // Predicated region
      $region49: #{bottleneck_forward.5} parent=47 // pred_check
        %p2364 = pneg %p130
      $region50: #{bottleneck_forward.5} parent=47 // pred_check_branch
        %2366 = sbr.rel (%p2364) target = $region52
      $region51: #{bottleneck_forward.5} parent=47 // pred_region
        %p2367 = scmp.lt.s32.totalorder %s18, 1
        %s2368 = scalar_select %p2367, %s18, 1
        %s2369 = smul.addr %s2368, 32
        %s2370 = smul.addr %s2369, 4
        %s2371 = scalar_lea.vmem %s4, %s2370
      $region52: #{bottleneck_forward.5} parent=47 // pred_fallthru
        _
      // Predicated region
      $region53: #{bottleneck_forward.5} parent=47 // pred_check
        %p2372 = pneg %p156
      $region54: #{bottleneck_forward.5} parent=47 // pred_check_branch
        %2374 = sbr.rel (%p2372) target = $region56
      $region55: #{bottleneck_forward.5} parent=47 // pred_region
        %p2375 = scmp.lt.s32.totalorder %s18, 1
        %s2376 = scalar_select %p2375, %s18, 1
        %s2377 = smul.addr %s2376, 2
        %s2378 = scalar_lea.vmem %s5, %s2377
      $region56: #{bottleneck_forward.5} parent=47 // pred_fallthru
        _
    $region48: #{bottleneck_forward.5} parent=5 // pred_fallthru
      _
  $region6: #{bottleneck_forward.5} parent=0 // loop_footer
    %s16 = sadd.s32 1, %s12
  $region7: #{bottleneck_forward.5} parent=0 // loop_footer_branch
    %11 = sbr.rel target = $region3
  $region8: #{bottleneck_forward.5} parent=0 // loop_exit
    _

</llo_original>
